<compile_context>
chip_gen: v6e
topology: v6e:2x2x1
jax: 0.10.0
libtpu: 0.0.40
codegen_flags: <defaults>
</compile_context>

<pallas_src>
import jax
import jax.numpy as jnp
from jax.experimental import pallas as pl
from jax.experimental.pallas import tpu as pltpu


def _round_up(x, m):
    return ((x + m - 1) // m) * m


def _num_tensorcores():
    """Best-effort TensorCore count of device 0 (v7x has 2 per chip)."""
    try:
        kind = jax.devices()[0].device_kind.lower()
    except Exception:
        return 1
    return 2 if ("v7" in kind or "tpu7" in kind) else 1


# Rows of the packed (8, PF) per-feature parameter buffer.
_ROW_B1, _ROW_G1, _ROW_BE1 = 0, 1, 2
_ROW_B2, _ROW_G2, _ROW_BE2 = 3, 4, 5
_ROW_BA, _ROW_WQ = 6, 7


def _make_kernel(fc1_dims, fc2_dims, pf):
    # Python-float closure constants only (jnp constants would become captured
    # consts, which pallas_call rejects).
    eps = 1e-5
    inv1 = 1.0 / float(fc1_dims)
    inv2 = 1.0 / float(fc2_dims)

    def critic_kernel(xin_ref, wbig_ref, w2_ref, vec_ref, bq_ref, out_ref):
        # Static row views of the packed per-feature parameter buffer.
        b1 = vec_ref[_ROW_B1:_ROW_B1 + 1, :]
        g1 = vec_ref[_ROW_G1:_ROW_G1 + 1, :]
        be1 = vec_ref[_ROW_BE1:_ROW_BE1 + 1, :]
        b2 = vec_ref[_ROW_B2:_ROW_B2 + 1, :]
        g2 = vec_ref[_ROW_G2:_ROW_G2 + 1, :]
        be2 = vec_ref[_ROW_BE2:_ROW_BE2 + 1, :]
        ba = vec_ref[_ROW_BA:_ROW_BA + 1, :]
        wq = vec_ref[_ROW_WQ:_ROW_WQ + 1, :]
        bq = bq_ref[0]                                # SMEM scalar

        # One MXU matmul against the block-diagonal big weight yields BOTH the
        # fc1 pre-activation (lanes [0, pf)) and the action_value pre-activation
        # (lanes [pf, 2*pf)).  Zero-padded lanes stay exactly zero.
        y = jnp.dot(xin_ref[...], wbig_ref[...],
                    preferred_element_type=jnp.float32)
        x = y[:, :pf] + b1
        a = jnp.maximum(y[:, pf:] + ba, 0.0)

        # LayerNorm 1 (+ relu).  Sum over the full 128-lane tile divided by the
        # true feature count equals the mean over real features (pads are zero);
        # gamma/beta pads are zero so padded lanes come out as exactly zero.
        s1 = jnp.sum(x, axis=-1, keepdims=True) * inv1
        s2 = jnp.sum(x * x, axis=-1, keepdims=True) * inv1
        var = jnp.maximum(s2 - s1 * s1, 0.0)          # single-pass biased var
        x = (x - s1) * jax.lax.rsqrt(var + eps) * g1 + be1
        x = jnp.maximum(x, 0.0)

        # fc2 -> LayerNorm 2 (no relu here; matches the reference module).
        x = jnp.dot(x, w2_ref[...], preferred_element_type=jnp.float32) + b2
        s1 = jnp.sum(x, axis=-1, keepdims=True) * inv2
        s2 = jnp.sum(x * x, axis=-1, keepdims=True) * inv2
        var = jnp.maximum(s2 - s1 * s1, 0.0)
        x = (x - s1) * jax.lax.rsqrt(var + eps) * g2 + be2

        # Combine, relu, width-1 Q head as VPU multiply + lane reduce (no MXU),
        # stored as a lane-dense (1, block_b) row (no masked column stores).
        sa = jnp.maximum(x + a, 0.0)
        q = jnp.sum(sa * wq, axis=-1)                 # (block_b,)
        out_ref[...] = q[None, :] + bq

    return critic_kernel


def _pack_params(params, in_dims, n_act, fc1_dims, fc2_dims, kp, pf):
    """Pad / pack all parameters into 128-lane-aligned buffers."""
    # Block-diagonal "big" weight: [ w1  0 ; 0  wa ], feature dims padded to pf.
    wbig = jnp.zeros((kp, 2 * pf), jnp.float32)
    wbig = wbig.at[:in_dims, :fc1_dims].set(params["w1"].astype(jnp.float32))
    wbig = wbig.at[in_dims:in_dims + n_act, pf:pf + fc2_dims].set(
        params["wa"].astype(jnp.float32))

    w2p = jnp.zeros((pf, pf), jnp.float32)
    w2p = w2p.at[:fc1_dims, :fc2_dims].set(params["w2"].astype(jnp.float32))

    vec = jnp.zeros((8, pf), jnp.float32)
    vec = vec.at[_ROW_B1, :fc1_dims].set(params["b1"].reshape(-1))
    vec = vec.at[_ROW_G1, :fc1_dims].set(params["g1"].reshape(-1))
    vec = vec.at[_ROW_BE1, :fc1_dims].set(params["be1"].reshape(-1))
    vec = vec.at[_ROW_B2, :fc2_dims].set(params["b2"].reshape(-1))
    vec = vec.at[_ROW_G2, :fc2_dims].set(params["g2"].reshape(-1))
    vec = vec.at[_ROW_BE2, :fc2_dims].set(params["be2"].reshape(-1))
    vec = vec.at[_ROW_BA, :fc2_dims].set(params["ba"].reshape(-1))
    vec = vec.at[_ROW_WQ, :fc2_dims].set(params["wq"].reshape(-1))

    bq = params["bq"].reshape(-1).astype(jnp.float32)     # (1,) SMEM scalar
    return wbig, w2p, vec, bq


def critic_forward(state, action, params, *, max_block_b=1024):
    """Fused DDPG-critic forward.  Grids over the batch in lane-dense blocks."""
    B, in_dims = state.shape
    n_act = action.shape[1]
    fc1_dims = params["w1"].shape[1]
    fc2_dims = params["w2"].shape[1]

    pf = _round_up(max(fc1_dims, fc2_dims, 1), 128)   # padded feature width
    kp = _round_up(in_dims + n_act, 128)              # padded concat-input width

    wbig, w2p, vec, bq = _pack_params(
        params, in_dims, n_act, fc1_dims, fc2_dims, kp, pf)

    # Grid sizing: 1 block on 1-TC chips (v5e/v6e), 2 on v7x; cap block rows so
    # per-step intermediates stay comfortably inside scoped VMEM for any batch.
    n_tc = _num_tensorcores()
    block_b = min(_round_up(pl.cdiv(B, n_tc), 128), max_block_b)
    b_pad = _round_up(B, block_b)
    grid_n = b_pad // block_b

    # Single concatenated + zero-padded batch input: one DMA stream per step.
    # Padded rows compute harmless finite garbage and are sliced away.
    xin = jnp.concatenate(
        [state.astype(jnp.float32), action.astype(jnp.float32)], axis=1)
    xin = jnp.pad(xin, ((0, b_pad - B), (0, kp - (in_dims + n_act))))

    kernel = _make_kernel(fc1_dims, fc2_dims, pf)

    # Weights / packed vectors use constant index_maps -> fetched once, resident
    # in VMEM across grid steps.  (bf16 weight storage on v6e/v7x and
    # pipeline_mode=pl.Buffered(1) on the resident blocks are further micro-opts,
    # skipped here to keep exact f32 parity and maximum portability.)
    out = pl.pallas_call(
        kernel,
        out_shape=jax.ShapeDtypeStruct((grid_n, 1, block_b), jnp.float32),
        grid=(grid_n,),
        in_specs=[
            pl.BlockSpec((block_b, kp), lambda i: (i, 0)),      # [state|action]
            pl.BlockSpec((kp, 2 * pf), lambda i: (0, 0)),       # block-diag w1/wa
            pl.BlockSpec((pf, pf), lambda i: (0, 0)),           # w2 (padded)
            pl.BlockSpec((8, pf), lambda i: (0, 0)),            # packed vectors
            pl.BlockSpec(memory_space=pltpu.MemorySpace.SMEM),  # q bias scalar
        ],
        out_specs=pl.BlockSpec((None, 1, block_b), lambda i: (i, 0, 0)),
        compiler_params=pltpu.CompilerParams(
            dimension_semantics=("parallel",)),   # shards batch blocks across TCs
    )(xin, wbig, w2p, vec, bq)

    return out.reshape(b_pad, 1)[:B]


def critic_reference(state, action, params):
    """Pure-JAX reference (two-pass LayerNorm, unpadded) for correctness check."""
    def ln(x, g, b):
        mu = jnp.mean(x, axis=-1, keepdims=True)
        var = jnp.mean((x - mu) ** 2, axis=-1, keepdims=True)
        return (x - mu) * jax.lax.rsqrt(var + 1e-5) * g + b

    x = state @ params["w1"] + params["b1"]
    x = jax.nn.relu(ln(x, params["g1"], params["be1"]))
    x = x @ params["w2"] + params["b2"]
    x = ln(x, params["g2"], params["be2"])
    a = jax.nn.relu(action @ params["wa"] + params["ba"])
    sa = jax.nn.relu(x + a)
    return sa @ params["wq"] + params["bq"]


def init_params(key, input_dims, fc1_dims, fc2_dims, n_actions):
    """Synthetic init mirroring the PyTorch __init__ bounds.

    PyTorch nn.Linear.weight is (out, in); here we store the transpose (in, out).
    f1 = 1/sqrt(fc1.weight.size(0)) = 1/sqrt(fc1_dims)
    f2 = 1/sqrt(fc2.weight.size(0)) = 1/sqrt(fc2_dims)
    f3 = 0.003
    """
    ks = jax.random.split(key, 8)
    f1 = 1.0 / float(jnp.sqrt(jnp.float32(fc1_dims)))
    f2 = 1.0 / float(jnp.sqrt(jnp.float32(fc2_dims)))
    f3 = 0.003
    fa = 1.0 / float(jnp.sqrt(jnp.float32(n_actions)))  # default-ish bound for action_value

    u = lambda k, shape, b: jax.random.uniform(k, shape, jnp.float32, -b, b)

    return {
        "w1": u(ks[0], (input_dims, fc1_dims), f1),
        "b1": u(ks[1], (1, fc1_dims), f1),
        "g1": jnp.ones((1, fc1_dims), jnp.float32),
        "be1": jnp.zeros((1, fc1_dims), jnp.float32),
        "w2": u(ks[2], (fc1_dims, fc2_dims), f2),
        "b2": u(ks[3], (1, fc2_dims), f2),
        "g2": jnp.ones((1, fc2_dims), jnp.float32),
        "be2": jnp.zeros((1, fc2_dims), jnp.float32),
        "wa": u(ks[4], (n_actions, fc2_dims), fa),
        "ba": u(ks[5], (1, fc2_dims), fa),
        "wq": u(ks[6], (fc2_dims, 1), f3),
        "bq": u(ks[7], (1, 1), f3),
    }


if __name__ == "__main__":
    # Realistic-but-small DDPG replay-buffer batch; all operands remain tiny.
    B = 256
    INPUT_DIMS = 32
    FC1_DIMS = 64
    FC2_DIMS = 32
    N_ACTIONS = 4

    key = jax.random.PRNGKey(0)
    k_state, k_action, k_params = jax.random.split(key, 3)

    state = jax.random.normal(k_state, (B, INPUT_DIMS), jnp.float32)
    action = jax.random.normal(k_action, (B, N_ACTIONS), jnp.float32)
    params = init_params(k_params, INPUT_DIMS, FC1_DIMS, FC2_DIMS, N_ACTIONS)

    q = critic_forward(state, action, params)
    q = jax.block_until_ready(q)
    assert q.shape == (B, 1) and q.dtype == jnp.float32

    q_ref = critic_reference(state, action, params)
    max_err = float(jnp.max(jnp.abs(q - q_ref)))
    assert jnp.allclose(q, q_ref, atol=1e-4, rtol=1e-4), f"max abs err {max_err}"

    print("KERNEL_OK")
</pallas_src>

<mosaic_0001>
module attributes {stable_mosaic.version = 11 : i64} {
  func.func @critic_kernel(%arg0: i32, %arg1: memref<256x128xf32, #tpu.memory_space<vmem>>, %arg2: memref<128x256xf32, #tpu.memory_space<vmem>>, %arg3: memref<128x128xf32, #tpu.memory_space<vmem>>, %arg4: memref<8x128xf32, #tpu.memory_space<vmem>>, %arg5: memref<1xf32, #tpu.memory_space<smem>>, %arg6: memref<1x1x256xf32, #tpu.memory_space<vmem>>) attributes {dimension_semantics = [#tpu.dimension_semantics<parallel>], iteration_bounds = array<i64: 1>, scalar_prefetch = 0 : i64, scratch_operands = 0 : i64, tpu.core_type = #tpu.core_type<tc>, window_params = [{transform_indices = @transform_0, window_bounds = array<i64: 256, 128>}, {pipeline_mode = #tpu.pipeline_mode<synchronous>, transform_indices = @transform_1, window_bounds = array<i64: 128, 256>}, {pipeline_mode = #tpu.pipeline_mode<synchronous>, transform_indices = @transform_2, window_bounds = array<i64: 128, 128>}, {pipeline_mode = #tpu.pipeline_mode<synchronous>, transform_indices = @transform_3, window_bounds = array<i64: 8, 128>}, {transform_indices = @transform_4, window_bounds = array<i64: 1>}, {transform_indices = @transform_5, window_bounds = array<i64: 1, 1, 256>}]} {
    %c0 = arith.constant 0 : index
    %c0_0 = arith.constant 0 : index
    %0 = vector.load %arg4[%c0, %c0_0] : memref<8x128xf32, #tpu.memory_space<vmem>>, vector<1x128xf32>
    %c1 = arith.constant 1 : index
    %c0_1 = arith.constant 0 : index
    %1 = vector.load %arg4[%c1, %c0_1] : memref<8x128xf32, #tpu.memory_space<vmem>>, vector<1x128xf32>
    %c2 = arith.constant 2 : index
    %c0_2 = arith.constant 0 : index
    %2 = vector.load %arg4[%c2, %c0_2] : memref<8x128xf32, #tpu.memory_space<vmem>>, vector<1x128xf32>
    %c3 = arith.constant 3 : index
    %c0_3 = arith.constant 0 : index
    %3 = vector.load %arg4[%c3, %c0_3] : memref<8x128xf32, #tpu.memory_space<vmem>>, vector<1x128xf32>
    %c4 = arith.constant 4 : index
    %c0_4 = arith.constant 0 : index
    %4 = vector.load %arg4[%c4, %c0_4] : memref<8x128xf32, #tpu.memory_space<vmem>>, vector<1x128xf32>
    %c5 = arith.constant 5 : index
    %c0_5 = arith.constant 0 : index
    %5 = vector.load %arg4[%c5, %c0_5] : memref<8x128xf32, #tpu.memory_space<vmem>>, vector<1x128xf32>
    %c6 = arith.constant 6 : index
    %c0_6 = arith.constant 0 : index
    %6 = vector.load %arg4[%c6, %c0_6] : memref<8x128xf32, #tpu.memory_space<vmem>>, vector<1x128xf32>
    %c7 = arith.constant 7 : index
    %c0_7 = arith.constant 0 : index
    %7 = vector.load %arg4[%c7, %c0_7] : memref<8x128xf32, #tpu.memory_space<vmem>>, vector<1x128xf32>
    %c0_8 = arith.constant 0 : index
    %8 = memref.load %arg5[%c0_8] : memref<1xf32, #tpu.memory_space<smem>>
    %c0_9 = arith.constant 0 : index
    %c0_10 = arith.constant 0 : index
    %9 = vector.load %arg1[%c0_9, %c0_10] : memref<256x128xf32, #tpu.memory_space<vmem>>, vector<256x128xf32>
    %c0_11 = arith.constant 0 : index
    %c0_12 = arith.constant 0 : index
    %10 = vector.load %arg2[%c0_11, %c0_12] : memref<128x256xf32, #tpu.memory_space<vmem>>, vector<128x256xf32>
    %cst = arith.constant dense<0.000000e+00> : vector<256x256xf32>
    %11 = tpu.matmul %9, %10, %cst {dimension_numbers = #tpu.dot_dimension_numbers<[1], [0], [0], [1], [0, 0, 1, 1], [], []>} : vector<256x128xf32>, vector<128x256xf32>, vector<256x256xf32> -> vector<256x256xf32>
    %12 = vector.extract_strided_slice %11 {offsets = [0, 0], sizes = [256, 128], strides = [1, 1]} : vector<256x256xf32> to vector<256x128xf32>
    %13 = vector.broadcast %0 : vector<1x128xf32> to vector<256x128xf32>
    %14 = arith.addf %12, %13 : vector<256x128xf32>
    %15 = vector.extract_strided_slice %11 {offsets = [0, 128], sizes = [256, 128], strides = [1, 1]} : vector<256x256xf32> to vector<256x128xf32>
    %16 = vector.broadcast %6 : vector<1x128xf32> to vector<256x128xf32>
    %17 = arith.addf %15, %16 : vector<256x128xf32>
    %cst_13 = arith.constant 0.000000e+00 : f32
    %18 = vector.broadcast %cst_13 : f32 to vector<256x128xf32>
    %19 = arith.maximumf %17, %18 : vector<256x128xf32>
    %cst_14 = arith.constant dense<0.000000e+00> : vector<256xf32>
    %20 = vector.multi_reduction <add>, %14, %cst_14 [1] : vector<256x128xf32> to vector<256xf32>
    %21 = vector.shape_cast %20 : vector<256xf32> to vector<256x1xf32>
    %cst_15 = arith.constant 1.562500e-02 : f32
    %22 = vector.broadcast %cst_15 : f32 to vector<256x1xf32>
    %23 = arith.mulf %21, %22 : vector<256x1xf32>
    %24 = arith.mulf %14, %14 : vector<256x128xf32>
    %cst_16 = arith.constant dense<0.000000e+00> : vector<256xf32>
    %25 = vector.multi_reduction <add>, %24, %cst_16 [1] : vector<256x128xf32> to vector<256xf32>
    %26 = vector.shape_cast %25 : vector<256xf32> to vector<256x1xf32>
    %cst_17 = arith.constant 1.562500e-02 : f32
    %27 = vector.broadcast %cst_17 : f32 to vector<256x1xf32>
    %28 = arith.mulf %26, %27 : vector<256x1xf32>
    %29 = arith.mulf %23, %23 : vector<256x1xf32>
    %30 = arith.subf %28, %29 : vector<256x1xf32>
    %cst_18 = arith.constant 0.000000e+00 : f32
    %31 = vector.broadcast %cst_18 : f32 to vector<256x1xf32>
    %32 = arith.maximumf %30, %31 : vector<256x1xf32>
    %33 = vector.broadcast %23 : vector<256x1xf32> to vector<256x128xf32>
    %34 = arith.subf %14, %33 : vector<256x128xf32>
    %cst_19 = arith.constant 9.99999974E-6 : f32
    %35 = vector.broadcast %cst_19 : f32 to vector<256x1xf32>
    %36 = arith.addf %32, %35 : vector<256x1xf32>
    %37 = math.rsqrt %36 : vector<256x1xf32>
    %38 = vector.broadcast %37 : vector<256x1xf32> to vector<256x128xf32>
    %39 = arith.mulf %34, %38 : vector<256x128xf32>
    %40 = vector.broadcast %1 : vector<1x128xf32> to vector<256x128xf32>
    %41 = arith.mulf %39, %40 : vector<256x128xf32>
    %42 = vector.broadcast %2 : vector<1x128xf32> to vector<256x128xf32>
    %43 = arith.addf %41, %42 : vector<256x128xf32>
    %cst_20 = arith.constant 0.000000e+00 : f32
    %44 = vector.broadcast %cst_20 : f32 to vector<256x128xf32>
    %45 = arith.maximumf %43, %44 : vector<256x128xf32>
    %c0_21 = arith.constant 0 : index
    %c0_22 = arith.constant 0 : index
    %46 = vector.load %arg3[%c0_21, %c0_22] : memref<128x128xf32, #tpu.memory_space<vmem>>, vector<128x128xf32>
    %cst_23 = arith.constant dense<0.000000e+00> : vector<256x128xf32>
    %47 = tpu.matmul %45, %46, %cst_23 {dimension_numbers = #tpu.dot_dimension_numbers<[1], [0], [0], [1], [0, 0, 1, 1], [], []>} : vector<256x128xf32>, vector<128x128xf32>, vector<256x128xf32> -> vector<256x128xf32>
    %48 = vector.broadcast %3 : vector<1x128xf32> to vector<256x128xf32>
    %49 = arith.addf %47, %48 : vector<256x128xf32>
    %cst_24 = arith.constant dense<0.000000e+00> : vector<256xf32>
    %50 = vector.multi_reduction <add>, %49, %cst_24 [1] : vector<256x128xf32> to vector<256xf32>
    %51 = vector.shape_cast %50 : vector<256xf32> to vector<256x1xf32>
    %cst_25 = arith.constant 3.125000e-02 : f32
    %52 = vector.broadcast %cst_25 : f32 to vector<256x1xf32>
    %53 = arith.mulf %51, %52 : vector<256x1xf32>
    %54 = arith.mulf %49, %49 : vector<256x128xf32>
    %cst_26 = arith.constant dense<0.000000e+00> : vector<256xf32>
    %55 = vector.multi_reduction <add>, %54, %cst_26 [1] : vector<256x128xf32> to vector<256xf32>
    %56 = vector.shape_cast %55 : vector<256xf32> to vector<256x1xf32>
    %cst_27 = arith.constant 3.125000e-02 : f32
    %57 = vector.broadcast %cst_27 : f32 to vector<256x1xf32>
    %58 = arith.mulf %56, %57 : vector<256x1xf32>
    %59 = arith.mulf %53, %53 : vector<256x1xf32>
    %60 = arith.subf %58, %59 : vector<256x1xf32>
    %cst_28 = arith.constant 0.000000e+00 : f32
    %61 = vector.broadcast %cst_28 : f32 to vector<256x1xf32>
    %62 = arith.maximumf %60, %61 : vector<256x1xf32>
    %63 = vector.broadcast %53 : vector<256x1xf32> to vector<256x128xf32>
    %64 = arith.subf %49, %63 : vector<256x128xf32>
    %cst_29 = arith.constant 9.99999974E-6 : f32
    %65 = vector.broadcast %cst_29 : f32 to vector<256x1xf32>
    %66 = arith.addf %62, %65 : vector<256x1xf32>
    %67 = math.rsqrt %66 : vector<256x1xf32>
    %68 = vector.broadcast %67 : vector<256x1xf32> to vector<256x128xf32>
    %69 = arith.mulf %64, %68 : vector<256x128xf32>
    %70 = vector.broadcast %4 : vector<1x128xf32> to vector<256x128xf32>
    %71 = arith.mulf %69, %70 : vector<256x128xf32>
    %72 = vector.broadcast %5 : vector<1x128xf32> to vector<256x128xf32>
    %73 = arith.addf %71, %72 : vector<256x128xf32>
    %74 = arith.addf %73, %19 : vector<256x128xf32>
    %cst_30 = arith.constant 0.000000e+00 : f32
    %75 = vector.broadcast %cst_30 : f32 to vector<256x128xf32>
    %76 = arith.maximumf %74, %75 : vector<256x128xf32>
    %77 = vector.broadcast %7 : vector<1x128xf32> to vector<256x128xf32>
    %78 = arith.mulf %76, %77 : vector<256x128xf32>
    %cst_31 = arith.constant dense<0.000000e+00> : vector<256xf32>
    %79 = vector.multi_reduction <add>, %78, %cst_31 [1] : vector<256x128xf32> to vector<256xf32>
    %80 = vector.shape_cast %79 : vector<256xf32> to vector<1x256xf32>
    %81 = vector.broadcast %8 : f32 to vector<1x256xf32>
    %82 = arith.addf %80, %81 : vector<1x256xf32>
    %c0_32 = arith.constant 0 : index
    %c0_33 = arith.constant 0 : index
    %c0_34 = arith.constant 0 : index
    %83 = vector.load %arg6[%c0_32, %c0_33, %c0_34] : memref<1x1x256xf32, #tpu.memory_space<vmem>>, vector<1x1x256xf32>
    %84 = vector.shape_cast %83 : vector<1x1x256xf32> to vector<1x256xf32>
    %85 = vector.shape_cast %82 : vector<1x256xf32> to vector<1x1x256xf32>
    tpu.vector_store %arg6[%c0_32, %c0_33, %c0_34], %85 {strides = array<i32>} : memref<1x1x256xf32, #tpu.memory_space<vmem>>, vector<1x1x256xf32>,
    return
  }
  func.func @transform_0(%arg0: i32) -> (i32, i32) {
    %c0_i32 = arith.constant 0 : i32
    %c0_i32_0 = arith.constant 0 : i32
    return %arg0, %c0_i32 : i32, i32
  }
  func.func @transform_1(%arg0: i32) -> (i32, i32) {
    %c0_i32 = arith.constant 0 : i32
    %c0_i32_0 = arith.constant 0 : i32
    %c0_i32_1 = arith.constant 0 : i32
    return %c0_i32, %c0_i32_0 : i32, i32
  }
  func.func @transform_2(%arg0: i32) -> (i32, i32) {
    %c0_i32 = arith.constant 0 : i32
    %c0_i32_0 = arith.constant 0 : i32
    %c0_i32_1 = arith.constant 0 : i32
    return %c0_i32, %c0_i32_0 : i32, i32
  }
  func.func @transform_3(%arg0: i32) -> (i32, i32) {
    %c0_i32 = arith.constant 0 : i32
    %c0_i32_0 = arith.constant 0 : i32
    %c0_i32_1 = arith.constant 0 : i32
    return %c0_i32, %c0_i32_0 : i32, i32
  }
  func.func @transform_4(%arg0: i32) -> i32 {
    %c0_i32 = arith.constant 0 : i32
    %c0_i32_0 = arith.constant 0 : i32
    return %c0_i32 : i32
  }
  func.func @transform_5(%arg0: i32) -> (i32, i32, i32) {
    %c0_i32 = arith.constant 0 : i32
    %c0_i32_0 = arith.constant 0 : i32
    %c0_i32_1 = arith.constant 0 : i32
    return %arg0, %c0_i32, %c0_i32_0 : i32, i32, i32
  }
}

</mosaic_0001>

<llo_original>
// kernel: tpu_custom_call.1
$region0: #{tpu_custom_call.1}
  #allocation0 [shape = 'u32[]', space=smem, size = 0x4, offset = 0x4, fixed_abs, tag = 'smem constant byte address 0x4 - core index']
  #allocation1 [shape = 'u32[144,128]{1,0:T(1,128)}', space=vmem, size = 0x12000, scoped, tag = 'internal scratch']
  #allocation2 [shape = 'f32[1]{0:T(128)S(6)}', space=smem, size = 0x200, scoped, tag = 'scoped memory for tpu_custom_call.1']
  %s0 = inlined_call_operand.hbm [shape: f32[256,128], index: 0, kind: input, shape index: {}]
  %s1 = inlined_call_operand.hbm [shape: f32[128,256], index: 1, kind: input, shape index: {}]
  %s2 = inlined_call_operand.hbm [shape: f32[128,128], index: 2, kind: input, shape index: {}]
  %s3 = inlined_call_operand.hbm [shape: f32[8,128], index: 3, kind: input, shape index: {}]
  %s4 = inlined_call_operand.<no memory space> [shape: f32[1], index: 4, kind: input, shape index: {}]
  %s5 = inlined_call_operand.hbm [shape: f32[1,1,256], index: 5, kind: output, shape index: {}]
  %s6 = sld [smem:[#allocation0]]
  $region46: #{tpu_custom_call.1} parent=0
    _
  %s8 = ssub.s32 1, %s6
  %s9 = scalar_select 0, %s8, %s6
  %10 = sst [smem:[#allocation2]] %s4
  $region1: #{tpu_custom_call.1} parent=0
    #allocation3 [shape = 'u8[131072]{0}', space=vmem, size = 0x20000, scoped, tag = 'input window, operand 0, single buffered']
    #allocation4 [shape = 's32[1]{0}', space=sflag, size = 0x4, scoped, tag = 'scoped memory for tpu_custom_call.1']
    #allocation5 [shape = 's32[1]{0}', space=sflag, size = 0x4, scoped, tag = 'scoped memory for tpu_custom_call.1']
    #allocation6 [shape = 'u8[131072]{0}', space=vmem, size = 0x20000, scoped, tag = 'input window, operand 1, single buffered']
    #allocation7 [shape = 's32[1]{0}', space=sflag, size = 0x4, scoped, tag = 'scoped memory for tpu_custom_call.1']
    #allocation8 [shape = 'u8[65536]{0}', space=vmem, size = 0x10000, scoped, tag = 'input window, operand 2, single buffered']
    #allocation9 [shape = 'u8[4096]{0}', space=vmem, size = 0x1000, scoped, tag = 'input window, operand 3, single buffered']
    #allocation10 [shape = 's32[1]{0}', space=sflag, size = 0x4, scoped, tag = 'scoped memory for tpu_custom_call.1']
    #allocation11 [shape = 'u8[1024]{0}', space=vmem, size = 0x400, scoped, tag = 'output window, operand 0, single buffered']
    %11 = vsyncpa [#allocation4], 0
    %12 = vsyncpa [#allocation7], 0
    %13 = vsyncpa [#allocation10], 0
    %14 = vsyncpa [#allocation5], 0
    // Predicated region
    $region2: #{tpu_custom_call.1} parent=1 // pred_check
      _
    $region3: #{tpu_custom_call.1} parent=1 // pred_check_branch
      %16 = sbr.rel (0) target = $region5
    $region4: #{tpu_custom_call.1} parent=1 // pred_region
      %s18 = ssub.s32 4096, 4096
      %19 = vsyncadd [#allocation4], %s18
      %s20 = sshll.u32 [#allocation3], 4
      %s21 = int_to_ptr.vmem [resolvable:$true] %s20
      %26 = dma.hbm_to_vmem [thread:$0]  %s0, 4096, %s21, [#allocation4], 128, 128, 8
    $region5: #{tpu_custom_call.1} parent=1 // pred_fallthru
      _
    // Predicated region
    $region6: #{tpu_custom_call.1} parent=1 // pred_check
      _
    $region7: #{tpu_custom_call.1} parent=1 // pred_check_branch
      %28 = sbr.rel (0) target = $region9
    $region8: #{tpu_custom_call.1} parent=1 // pred_region
      %s30 = ssub.s32 4096, 4096
      %31 = vsyncadd [#allocation7], %s30
      %s32 = sshll.u32 [#allocation6], 4
      %s33 = int_to_ptr.vmem [resolvable:$true] %s32
      %38 = dma.hbm_to_vmem [thread:$0]  %s1, 4096, %s33, [#allocation7], 256, 256, 16
    $region9: #{tpu_custom_call.1} parent=1 // pred_fallthru
      _
    // Predicated region
    $region10: #{tpu_custom_call.1} parent=1 // pred_check
      _
    $region11: #{tpu_custom_call.1} parent=1 // pred_check_branch
      %40 = sbr.rel (0) target = $region13
    $region12: #{tpu_custom_call.1} parent=1 // pred_region
      %s42 = ssub.s32 2048, 2048
      %43 = vsyncadd [#allocation7], %s42
      %s44 = sshll.u32 [#allocation8], 4
      %s45 = int_to_ptr.vmem [resolvable:$true] %s44
      %50 = dma.hbm_to_vmem [thread:$0]  %s2, 2048, %s45, [#allocation7], 128, 128, 8
    $region13: #{tpu_custom_call.1} parent=1 // pred_fallthru
      _
    // Predicated region
    $region14: #{tpu_custom_call.1} parent=1 // pred_check
      _
    $region15: #{tpu_custom_call.1} parent=1 // pred_check_branch
      %52 = sbr.rel (0) target = $region17
    $region16: #{tpu_custom_call.1} parent=1 // pred_region
      %s54 = ssub.s32 128, 128
      %55 = vsyncadd [#allocation10], %s54
      %s57 = sshll.u32 [#allocation9], 4
      %s58 = int_to_ptr.vmem [resolvable:$true] %s57
      %60 = dma.hbm_to_vmem [thread:$0]  %s3, 128, %s58, [#allocation10]
    $region17: #{tpu_custom_call.1} parent=1 // pred_fallthru
      _
    // Predicated region
    $region18: #{tpu_custom_call.1} parent=1 // pred_check
      _
    $region19: #{tpu_custom_call.1} parent=1 // pred_check_branch
      %62 = sbr.rel (0) target = $region21
    $region20: #{tpu_custom_call.1} parent=1 // pred_region
      _
    $region21: #{tpu_custom_call.1} parent=1 // pred_fallthru
      _
    // Predicated region
    $region22: #{tpu_custom_call.1} parent=1 // pred_check
      _
    $region23: #{tpu_custom_call.1} parent=1 // pred_check_branch
      %64 = sbr.rel (0) target = $region25
    $region24: #{tpu_custom_call.1} parent=1 // pred_region
      %65 = dma.done [#allocation4], 4096
    $region25: #{tpu_custom_call.1} parent=1 // pred_fallthru
      _
    // Predicated region
    $region26: #{tpu_custom_call.1} parent=1 // pred_check
      _
    $region27: #{tpu_custom_call.1} parent=1 // pred_check_branch
      %67 = sbr.rel (0) target = $region29
    $region28: #{tpu_custom_call.1} parent=1 // pred_region
      %68 = dma.done [#allocation7], 4096
    $region29: #{tpu_custom_call.1} parent=1 // pred_fallthru
      _
    // Predicated region
    $region30: #{tpu_custom_call.1} parent=1 // pred_check
      _
    $region31: #{tpu_custom_call.1} parent=1 // pred_check_branch
      %70 = sbr.rel (0) target = $region33
    $region32: #{tpu_custom_call.1} parent=1 // pred_region
      %71 = dma.done [#allocation7], 2048
    $region33: #{tpu_custom_call.1} parent=1 // pred_fallthru
      _
    // Predicated region
    $region34: #{tpu_custom_call.1} parent=1 // pred_check
      _
    $region35: #{tpu_custom_call.1} parent=1 // pred_check_branch
      %73 = sbr.rel (0) target = $region37
    $region36: #{tpu_custom_call.1} parent=1 // pred_region
      %74 = dma.done [#allocation10], 128
    $region37: #{tpu_custom_call.1} parent=1 // pred_fallthru
      _
    %v75 = vld [vmem:[#allocation9] sm:$0x1]
    %v76 = vld [vmem:[#allocation9 + $0x1] sm:$0x1]
    %v77 = vld [vmem:[#allocation9 + $0x2] sm:$0x1]
    %v78 = vld [vmem:[#allocation9 + $0x3] sm:$0x1]
    %v79 = vld [vmem:[#allocation9 + $0x4] sm:$0x1]
    %v80 = vld [vmem:[#allocation9 + $0x5] sm:$0x1]
    %v81 = vld [vmem:[#allocation9 + $0x6] sm:$0x1]
    %v82 = vld [vmem:[#allocation9 + $0x7] sm:$0x1]
    %s83 = sld [smem:[#allocation2]]
    %v84 = vld [vmem:[#allocation3] sm:$0xff]
    %v85 = vld [vmem:[#allocation3 + $0x8] sm:$0xff]
    %v86 = vld [vmem:[#allocation3 + $0x10] sm:$0xff]
    %v87 = vld [vmem:[#allocation3 + $0x18] sm:$0xff]
    %v88 = vld [vmem:[#allocation3 + $0x20] sm:$0xff]
    %v89 = vld [vmem:[#allocation3 + $0x28] sm:$0xff]
    %v90 = vld [vmem:[#allocation3 + $0x30] sm:$0xff]
    %v91 = vld [vmem:[#allocation3 + $0x38] sm:$0xff]
    %v92 = vld [vmem:[#allocation3 + $0x40] sm:$0xff]
    %v93 = vld [vmem:[#allocation3 + $0x48] sm:$0xff]
    %v94 = vld [vmem:[#allocation3 + $0x50] sm:$0xff]
    %v95 = vld [vmem:[#allocation3 + $0x58] sm:$0xff]
    %v96 = vld [vmem:[#allocation3 + $0x60] sm:$0xff]
    %v97 = vld [vmem:[#allocation3 + $0x68] sm:$0xff]
    %v98 = vld [vmem:[#allocation3 + $0x70] sm:$0xff]
    %v99 = vld [vmem:[#allocation3 + $0x78] sm:$0xff]
    %v100 = vld [vmem:[#allocation3 + $0x80] sm:$0xff]
    %v101 = vld [vmem:[#allocation3 + $0x88] sm:$0xff]
    %v102 = vld [vmem:[#allocation3 + $0x90] sm:$0xff]
    %v103 = vld [vmem:[#allocation3 + $0x98] sm:$0xff]
    %v104 = vld [vmem:[#allocation3 + $0xa0] sm:$0xff]
    %v105 = vld [vmem:[#allocation3 + $0xa8] sm:$0xff]
    %v106 = vld [vmem:[#allocation3 + $0xb0] sm:$0xff]
    %v107 = vld [vmem:[#allocation3 + $0xb8] sm:$0xff]
    %v108 = vld [vmem:[#allocation3 + $0xc0] sm:$0xff]
    %v109 = vld [vmem:[#allocation3 + $0xc8] sm:$0xff]
    %v110 = vld [vmem:[#allocation3 + $0xd0] sm:$0xff]
    %v111 = vld [vmem:[#allocation3 + $0xd8] sm:$0xff]
    %v112 = vld [vmem:[#allocation3 + $0xe0] sm:$0xff]
    %v113 = vld [vmem:[#allocation3 + $0xe8] sm:$0xff]
    %v114 = vld [vmem:[#allocation3 + $0xf0] sm:$0xff]
    %v115 = vld [vmem:[#allocation3 + $0xf8] sm:$0xff]
    %v116 = vld [vmem:[#allocation6] sm:$0xff]
    %v117 = vld [vmem:[#allocation6 + $0x8] sm:$0xff]
    %v118 = vld [vmem:[#allocation6 + $0x10] sm:$0xff]
    %v119 = vld [vmem:[#allocation6 + $0x18] sm:$0xff]
    %v120 = vld [vmem:[#allocation6 + $0x20] sm:$0xff]
    %v121 = vld [vmem:[#allocation6 + $0x28] sm:$0xff]
    %v122 = vld [vmem:[#allocation6 + $0x30] sm:$0xff]
    %v123 = vld [vmem:[#allocation6 + $0x38] sm:$0xff]
    %v124 = vld [vmem:[#allocation6 + $0x40] sm:$0xff]
    %v125 = vld [vmem:[#allocation6 + $0x48] sm:$0xff]
    %v126 = vld [vmem:[#allocation6 + $0x50] sm:$0xff]
    %v127 = vld [vmem:[#allocation6 + $0x58] sm:$0xff]
    %v128 = vld [vmem:[#allocation6 + $0x60] sm:$0xff]
    %v129 = vld [vmem:[#allocation6 + $0x68] sm:$0xff]
    %v130 = vld [vmem:[#allocation6 + $0x70] sm:$0xff]
    %v131 = vld [vmem:[#allocation6 + $0x78] sm:$0xff]
    %v132 = vld [vmem:[#allocation6 + $0x80] sm:$0xff]
    %v133 = vld [vmem:[#allocation6 + $0x88] sm:$0xff]
    %v134 = vld [vmem:[#allocation6 + $0x90] sm:$0xff]
    %v135 = vld [vmem:[#allocation6 + $0x98] sm:$0xff]
    %v136 = vld [vmem:[#allocation6 + $0xa0] sm:$0xff]
    %v137 = vld [vmem:[#allocation6 + $0xa8] sm:$0xff]
    %v138 = vld [vmem:[#allocation6 + $0xb0] sm:$0xff]
    %v139 = vld [vmem:[#allocation6 + $0xb8] sm:$0xff]
    %v140 = vld [vmem:[#allocation6 + $0xc0] sm:$0xff]
    %v141 = vld [vmem:[#allocation6 + $0xc8] sm:$0xff]
    %v142 = vld [vmem:[#allocation6 + $0xd0] sm:$0xff]
    %v143 = vld [vmem:[#allocation6 + $0xd8] sm:$0xff]
    %v144 = vld [vmem:[#allocation6 + $0xe0] sm:$0xff]
    %v145 = vld [vmem:[#allocation6 + $0xe8] sm:$0xff]
    %v146 = vld [vmem:[#allocation6 + $0xf0] sm:$0xff]
    %v147 = vld [vmem:[#allocation6 + $0xf8] sm:$0xff]
    %148 = vmatprep.subr.mxu0 %v147
    %149 = vmatpush1.msra.mxu0 %v146
    %150 = vmatprep.subr.mxu0 %v145
    %151 = vmatpush1.msra.mxu0 %v144
    %152 = vmatprep.subr.mxu0 %v143
    %153 = vmatpush1.msra.mxu0 %v142
    %154 = vmatprep.subr.mxu0 %v141
    %155 = vmatpush1.msra.mxu0 %v140
    %156 = vmatprep.subr.mxu0 %v139
    %157 = vmatpush1.msra.mxu0 %v138
    %158 = vmatprep.subr.mxu0 %v137
    %159 = vmatpush1.msra.mxu0 %v136
    %160 = vmatprep.subr.mxu0 %v135
    %161 = vmatpush1.msra.mxu0 %v134
    %162 = vmatprep.subr.mxu0 %v133
    %163 = vmatpush1.msra.mxu0 %v132
    %164 = vmatprep.subr.mxu0 %v131
    %165 = vmatpush1.msra.mxu0 %v130
    %166 = vmatprep.subr.mxu0 %v129
    %167 = vmatpush1.msra.mxu0 %v128
    %168 = vmatprep.subr.mxu0 %v127
    %169 = vmatpush1.msra.mxu0 %v126
    %170 = vmatprep.subr.mxu0 %v125
    %171 = vmatpush1.msra.mxu0 %v124
    %172 = vmatprep.subr.mxu0 %v123
    %173 = vmatpush1.msra.mxu0 %v122
    %174 = vmatprep.subr.mxu0 %v121
    %175 = vmatpush1.msra.mxu0 %v120
    %176 = vmatprep.subr.mxu0 %v119
    %177 = vmatpush1.msra.mxu0 %v118
    %178 = vmatprep.subr.mxu0 %v117
    %179 = vmatpush1.msra.mxu0 %v116
    %180 = vmatprep.subr.mxu0 0.0
    %181 = vmatpush2.msra.mxu0 0.0
    %182 = vmatprep.subr.mxu0 0.0
    %183 = vmatpush2.msra.mxu0 0.0
    %184 = vmatprep.subr.mxu0 0.0
    %185 = vmatpush2.msra.mxu0 0.0
    %186 = vmatprep.subr.mxu0 0.0
    %187 = vmatpush2.msra.mxu0 0.0
    %188 = vmatprep.subr.mxu0 0.0
    %189 = vmatpush2.msra.mxu0 0.0
    %190 = vmatprep.subr.mxu0 0.0
    %191 = vmatpush2.msra.mxu0 0.0
    %192 = vmatprep.subr.mxu0 0.0
    %193 = vmatpush2.msra.mxu0 0.0
    %194 = vmatprep.subr.mxu0 0.0
    %195 = vmatpush2.msra.mxu0 0.0
    %196 = vmatprep.subr.mxu0 0.0
    %197 = vmatpush2.msra.mxu0 0.0
    %198 = vmatprep.subr.mxu0 0.0
    %199 = vmatpush2.msra.mxu0 0.0
    %200 = vmatprep.subr.mxu0 0.0
    %201 = vmatpush2.msra.mxu0 0.0
    %202 = vmatprep.subr.mxu0 0.0
    %203 = vmatpush2.msra.mxu0 0.0
    %204 = vmatprep.subr.mxu0 0.0
    %205 = vmatpush2.msra.mxu0 0.0
    %206 = vmatprep.subr.mxu0 0.0
    %207 = vmatpush2.msra.mxu0 0.0
    %208 = vmatprep.subr.mxu0 0.0
    %209 = vmatpush2.msra.mxu0 0.0
    %210 = vmatprep.subr.mxu0 0.0
    %211 = vmatpush2.msra.mxu0 0.0
    %212 = vmatprep.mubr.f32.mxu0 0.0
    %213 = vmatmul.mubr.f32.gmra.mxu0 %v84
    %v214 = vpop.f32.mrf.mxu0
    %v215 = vadd.f32 0.0, %v214
    %v216 = vpop.f32.mrf.mxu0
    %v217 = vadd.f32 0.0, %v216
    %218 = vmatprep.mubr.f32.mxu0 0.0
    %219 = vmatmul.mubr.f32.gmra.mxu0 %v85
    %v220 = vpop.f32.mrf.mxu0
    %v221 = vadd.f32 0.0, %v220
    %v222 = vpop.f32.mrf.mxu0
    %v223 = vadd.f32 0.0, %v222
    %224 = vmatprep.mubr.f32.mxu0 0.0
    %225 = vmatmul.mubr.f32.gmra.mxu0 %v86
    %v226 = vpop.f32.mrf.mxu0
    %v227 = vadd.f32 0.0, %v226
    %v228 = vpop.f32.mrf.mxu0
    %v229 = vadd.f32 0.0, %v228
    %230 = vmatprep.mubr.f32.mxu0 0.0
    %231 = vmatmul.mubr.f32.gmra.mxu0 %v87
    %v232 = vpop.f32.mrf.mxu0
    %v233 = vadd.f32 0.0, %v232
    %v234 = vpop.f32.mrf.mxu0
    %v235 = vadd.f32 0.0, %v234
    %236 = vmatprep.mubr.f32.mxu0 0.0
    %237 = vmatmul.mubr.f32.gmra.mxu0 %v88
    %v238 = vpop.f32.mrf.mxu0
    %v239 = vadd.f32 0.0, %v238
    %v240 = vpop.f32.mrf.mxu0
    %v241 = vadd.f32 0.0, %v240
    %242 = vmatprep.mubr.f32.mxu0 0.0
    %243 = vmatmul.mubr.f32.gmra.mxu0 %v89
    %v244 = vpop.f32.mrf.mxu0
    %v245 = vadd.f32 0.0, %v244
    %v246 = vpop.f32.mrf.mxu0
    %v247 = vadd.f32 0.0, %v246
    %248 = vmatprep.mubr.f32.mxu0 0.0
    %249 = vmatmul.mubr.f32.gmra.mxu0 %v90
    %v250 = vpop.f32.mrf.mxu0
    %v251 = vadd.f32 0.0, %v250
    %v252 = vpop.f32.mrf.mxu0
    %v253 = vadd.f32 0.0, %v252
    %254 = vmatprep.mubr.f32.mxu0 0.0
    %255 = vmatmul.mubr.f32.gmra.mxu0 %v91
    %v256 = vpop.f32.mrf.mxu0
    %v257 = vadd.f32 0.0, %v256
    %v258 = vpop.f32.mrf.mxu0
    %v259 = vadd.f32 0.0, %v258
    %260 = vmatprep.mubr.f32.mxu0 0.0
    %261 = vmatmul.mubr.f32.gmra.mxu0 %v92
    %v262 = vpop.f32.mrf.mxu0
    %v263 = vadd.f32 0.0, %v262
    %v264 = vpop.f32.mrf.mxu0
    %v265 = vadd.f32 0.0, %v264
    %266 = vmatprep.mubr.f32.mxu0 0.0
    %267 = vmatmul.mubr.f32.gmra.mxu0 %v93
    %v268 = vpop.f32.mrf.mxu0
    %v269 = vadd.f32 0.0, %v268
    %v270 = vpop.f32.mrf.mxu0
    %v271 = vadd.f32 0.0, %v270
    %272 = vmatprep.mubr.f32.mxu0 0.0
    %273 = vmatmul.mubr.f32.gmra.mxu0 %v94
    %v274 = vpop.f32.mrf.mxu0
    %v275 = vadd.f32 0.0, %v274
    %v276 = vpop.f32.mrf.mxu0
    %v277 = vadd.f32 0.0, %v276
    %278 = vmatprep.mubr.f32.mxu0 0.0
    %279 = vmatmul.mubr.f32.gmra.mxu0 %v95
    %v280 = vpop.f32.mrf.mxu0
    %v281 = vadd.f32 0.0, %v280
    %v282 = vpop.f32.mrf.mxu0
    %v283 = vadd.f32 0.0, %v282
    %284 = vmatprep.mubr.f32.mxu0 0.0
    %285 = vmatmul.mubr.f32.gmra.mxu0 %v96
    %v286 = vpop.f32.mrf.mxu0
    %v287 = vadd.f32 0.0, %v286
    %v288 = vpop.f32.mrf.mxu0
    %v289 = vadd.f32 0.0, %v288
    %290 = vmatprep.mubr.f32.mxu0 0.0
    %291 = vmatmul.mubr.f32.gmra.mxu0 %v97
    %v292 = vpop.f32.mrf.mxu0
    %v293 = vadd.f32 0.0, %v292
    %v294 = vpop.f32.mrf.mxu0
    %v295 = vadd.f32 0.0, %v294
    %296 = vmatprep.mubr.f32.mxu0 0.0
    %297 = vmatmul.mubr.f32.gmra.mxu0 %v98
    %v298 = vpop.f32.mrf.mxu0
    %v299 = vadd.f32 0.0, %v298
    %v300 = vpop.f32.mrf.mxu0
    %v301 = vadd.f32 0.0, %v300
    %302 = vmatprep.mubr.f32.mxu0 0.0
    %303 = vmatmul.mubr.f32.gmra.mxu0 %v99
    %v304 = vpop.f32.mrf.mxu0
    %v305 = vadd.f32 0.0, %v304
    %v306 = vpop.f32.mrf.mxu0
    %v307 = vadd.f32 0.0, %v306
    %308 = vmatprep.mubr.f32.mxu0 0.0
    %309 = vmatmul.mubr.f32.gmra.mxu0 %v100
    %v310 = vpop.f32.mrf.mxu0
    %v311 = vadd.f32 0.0, %v310
    %v312 = vpop.f32.mrf.mxu0
    %v313 = vadd.f32 0.0, %v312
    %314 = vmatprep.mubr.f32.mxu0 0.0
    %315 = vmatmul.mubr.f32.gmra.mxu0 %v101
    %v316 = vpop.f32.mrf.mxu0
    %v317 = vadd.f32 0.0, %v316
    %v318 = vpop.f32.mrf.mxu0
    %v319 = vadd.f32 0.0, %v318
    %320 = vmatprep.mubr.f32.mxu0 0.0
    %321 = vmatmul.mubr.f32.gmra.mxu0 %v102
    %v322 = vpop.f32.mrf.mxu0
    %v323 = vadd.f32 0.0, %v322
    %v324 = vpop.f32.mrf.mxu0
    %v325 = vadd.f32 0.0, %v324
    %326 = vmatprep.mubr.f32.mxu0 0.0
    %327 = vmatmul.mubr.f32.gmra.mxu0 %v103
    %v328 = vpop.f32.mrf.mxu0
    %v329 = vadd.f32 0.0, %v328
    %v330 = vpop.f32.mrf.mxu0
    %v331 = vadd.f32 0.0, %v330
    %332 = vmatprep.mubr.f32.mxu0 0.0
    %333 = vmatmul.mubr.f32.gmra.mxu0 %v104
    %v334 = vpop.f32.mrf.mxu0
    %v335 = vadd.f32 0.0, %v334
    %v336 = vpop.f32.mrf.mxu0
    %v337 = vadd.f32 0.0, %v336
    %338 = vmatprep.mubr.f32.mxu0 0.0
    %339 = vmatmul.mubr.f32.gmra.mxu0 %v105
    %v340 = vpop.f32.mrf.mxu0
    %v341 = vadd.f32 0.0, %v340
    %v342 = vpop.f32.mrf.mxu0
    %v343 = vadd.f32 0.0, %v342
    %344 = vmatprep.mubr.f32.mxu0 0.0
    %345 = vmatmul.mubr.f32.gmra.mxu0 %v106
    %v346 = vpop.f32.mrf.mxu0
    %v347 = vadd.f32 0.0, %v346
    %v348 = vpop.f32.mrf.mxu0
    %v349 = vadd.f32 0.0, %v348
    %350 = vmatprep.mubr.f32.mxu0 0.0
    %351 = vmatmul.mubr.f32.gmra.mxu0 %v107
    %v352 = vpop.f32.mrf.mxu0
    %v353 = vadd.f32 0.0, %v352
    %v354 = vpop.f32.mrf.mxu0
    %v355 = vadd.f32 0.0, %v354
    %356 = vmatprep.mubr.f32.mxu0 0.0
    %357 = vmatmul.mubr.f32.gmra.mxu0 %v108
    %v358 = vpop.f32.mrf.mxu0
    %v359 = vadd.f32 0.0, %v358
    %v360 = vpop.f32.mrf.mxu0
    %v361 = vadd.f32 0.0, %v360
    %362 = vmatprep.mubr.f32.mxu0 0.0
    %363 = vmatmul.mubr.f32.gmra.mxu0 %v109
    %v364 = vpop.f32.mrf.mxu0
    %v365 = vadd.f32 0.0, %v364
    %v366 = vpop.f32.mrf.mxu0
    %v367 = vadd.f32 0.0, %v366
    %368 = vmatprep.mubr.f32.mxu0 0.0
    %369 = vmatmul.mubr.f32.gmra.mxu0 %v110
    %v370 = vpop.f32.mrf.mxu0
    %v371 = vadd.f32 0.0, %v370
    %v372 = vpop.f32.mrf.mxu0
    %v373 = vadd.f32 0.0, %v372
    %374 = vmatprep.mubr.f32.mxu0 0.0
    %375 = vmatmul.mubr.f32.gmra.mxu0 %v111
    %v376 = vpop.f32.mrf.mxu0
    %v377 = vadd.f32 0.0, %v376
    %v378 = vpop.f32.mrf.mxu0
    %v379 = vadd.f32 0.0, %v378
    %380 = vmatprep.mubr.f32.mxu0 0.0
    %381 = vmatmul.mubr.f32.gmra.mxu0 %v112
    %v382 = vpop.f32.mrf.mxu0
    %v383 = vadd.f32 0.0, %v382
    %v384 = vpop.f32.mrf.mxu0
    %v385 = vadd.f32 0.0, %v384
    %386 = vmatprep.mubr.f32.mxu0 0.0
    %387 = vmatmul.mubr.f32.gmra.mxu0 %v113
    %v388 = vpop.f32.mrf.mxu0
    %v389 = vadd.f32 0.0, %v388
    %v390 = vpop.f32.mrf.mxu0
    %v391 = vadd.f32 0.0, %v390
    %392 = vmatprep.mubr.f32.mxu0 0.0
    %393 = vmatmul.mubr.f32.gmra.mxu0 %v114
    %v394 = vpop.f32.mrf.mxu0
    %v395 = vadd.f32 0.0, %v394
    %v396 = vpop.f32.mrf.mxu0
    %v397 = vadd.f32 0.0, %v396
    %398 = vmatprep.mubr.f32.mxu0 0.0
    %399 = vmatmul.mubr.f32.gmra.mxu0 %v115
    %v400 = vpop.f32.mrf.mxu0
    %v401 = vadd.f32 0.0, %v400
    %v402 = vpop.f32.mrf.mxu0
    %v403 = vadd.f32 0.0, %v402
    %404 = vdwg.mxu0
    %v405 = vlaneseq
    %v406 = vshrl.u32 %v405, 7
    %v407 = vsub.s32 0, %v406
    %v408 = vrot.slane %v75, %v407
    %v409 = vadd.f32 %v215, %v408
    %v410 = vadd.f32 %v221, %v408
    %v411 = vadd.f32 %v227, %v408
    %v412 = vadd.f32 %v233, %v408
    %v413 = vadd.f32 %v239, %v408
    %v414 = vadd.f32 %v245, %v408
    %v415 = vadd.f32 %v251, %v408
    %v416 = vadd.f32 %v257, %v408
    %v417 = vadd.f32 %v263, %v408
    %v418 = vadd.f32 %v269, %v408
    %v419 = vadd.f32 %v275, %v408
    %v420 = vadd.f32 %v281, %v408
    %v421 = vadd.f32 %v287, %v408
    %v422 = vadd.f32 %v293, %v408
    %v423 = vadd.f32 %v299, %v408
    %v424 = vadd.f32 %v305, %v408
    %v425 = vadd.f32 %v311, %v408
    %v426 = vadd.f32 %v317, %v408
    %v427 = vadd.f32 %v323, %v408
    %v428 = vadd.f32 %v329, %v408
    %v429 = vadd.f32 %v335, %v408
    %v430 = vadd.f32 %v341, %v408
    %v431 = vadd.f32 %v347, %v408
    %v432 = vadd.f32 %v353, %v408
    %v433 = vadd.f32 %v359, %v408
    %v434 = vadd.f32 %v365, %v408
    %v435 = vadd.f32 %v371, %v408
    %v436 = vadd.f32 %v377, %v408
    %v437 = vadd.f32 %v383, %v408
    %v438 = vadd.f32 %v389, %v408
    %v439 = vadd.f32 %v395, %v408
    %v440 = vadd.f32 %v401, %v408
    %v441 = vlaneseq
    %v442 = vshrl.u32 %v441, 7
    %v443 = vsub.s32 0, %v442
    %v444 = vrot.slane %v81, %v443
    %v445 = vadd.f32 %v217, %v444
    %v446 = vadd.f32 %v223, %v444
    %v447 = vadd.f32 %v229, %v444
    %v448 = vadd.f32 %v235, %v444
    %v449 = vadd.f32 %v241, %v444
    %v450 = vadd.f32 %v247, %v444
    %v451 = vadd.f32 %v253, %v444
    %v452 = vadd.f32 %v259, %v444
    %v453 = vadd.f32 %v265, %v444
    %v454 = vadd.f32 %v271, %v444
    %v455 = vadd.f32 %v277, %v444
    %v456 = vadd.f32 %v283, %v444
    %v457 = vadd.f32 %v289, %v444
    %v458 = vadd.f32 %v295, %v444
    %v459 = vadd.f32 %v301, %v444
    %v460 = vadd.f32 %v307, %v444
    %v461 = vadd.f32 %v313, %v444
    %v462 = vadd.f32 %v319, %v444
    %v463 = vadd.f32 %v325, %v444
    %v464 = vadd.f32 %v331, %v444
    %v465 = vadd.f32 %v337, %v444
    %v466 = vadd.f32 %v343, %v444
    %v467 = vadd.f32 %v349, %v444
    %v468 = vadd.f32 %v355, %v444
    %v469 = vadd.f32 %v361, %v444
    %v470 = vadd.f32 %v367, %v444
    %v471 = vadd.f32 %v373, %v444
    %v472 = vadd.f32 %v379, %v444
    %v473 = vadd.f32 %v385, %v444
    %v474 = vadd.f32 %v391, %v444
    %v475 = vadd.f32 %v397, %v444
    %v476 = vadd.f32 %v403, %v444
    %v477 = vmax.f32 %v445, 0.0
    %v478 = vmax.f32 %v446, 0.0
    %v479 = vmax.f32 %v447, 0.0
    %v480 = vmax.f32 %v448, 0.0
    %v481 = vmax.f32 %v449, 0.0
    %v482 = vmax.f32 %v450, 0.0
    %v483 = vmax.f32 %v451, 0.0
    %v484 = vmax.f32 %v452, 0.0
    %v485 = vmax.f32 %v453, 0.0
    %v486 = vmax.f32 %v454, 0.0
    %v487 = vmax.f32 %v455, 0.0
    %v488 = vmax.f32 %v456, 0.0
    %v489 = vmax.f32 %v457, 0.0
    %v490 = vmax.f32 %v458, 0.0
    %v491 = vmax.f32 %v459, 0.0
    %v492 = vmax.f32 %v460, 0.0
    %v493 = vmax.f32 %v461, 0.0
    %v494 = vmax.f32 %v462, 0.0
    %v495 = vmax.f32 %v463, 0.0
    %v496 = vmax.f32 %v464, 0.0
    %v497 = vmax.f32 %v465, 0.0
    %v498 = vmax.f32 %v466, 0.0
    %v499 = vmax.f32 %v467, 0.0
    %v500 = vmax.f32 %v468, 0.0
    %v501 = vmax.f32 %v469, 0.0
    %v502 = vmax.f32 %v470, 0.0
    %v503 = vmax.f32 %v471, 0.0
    %v504 = vmax.f32 %v472, 0.0
    %v505 = vmax.f32 %v473, 0.0
    %v506 = vmax.f32 %v474, 0.0
    %v507 = vmax.f32 %v475, 0.0
    %v508 = vmax.f32 %v476, 0.0
    %509 = vadd.xlane.f32.xlu0 %v409
    %v510 = vpop.xlane.xlu0 %509
    %511 = vadd.xlane.f32.xlu0 %v410
    %v512 = vpop.xlane.xlu0 %511
    %513 = vadd.xlane.f32.xlu0 %v411
    %v514 = vpop.xlane.xlu0 %513
    %515 = vadd.xlane.f32.xlu0 %v412
    %v516 = vpop.xlane.xlu0 %515
    %517 = vadd.xlane.f32.xlu0 %v413
    %v518 = vpop.xlane.xlu0 %517
    %519 = vadd.xlane.f32.xlu0 %v414
    %v520 = vpop.xlane.xlu0 %519
    %521 = vadd.xlane.f32.xlu0 %v415
    %v522 = vpop.xlane.xlu0 %521
    %523 = vadd.xlane.f32.xlu0 %v416
    %v524 = vpop.xlane.xlu0 %523
    %525 = vadd.xlane.f32.xlu0 %v417
    %v526 = vpop.xlane.xlu0 %525
    %527 = vadd.xlane.f32.xlu0 %v418
    %v528 = vpop.xlane.xlu0 %527
    %529 = vadd.xlane.f32.xlu0 %v419
    %v530 = vpop.xlane.xlu0 %529
    %531 = vadd.xlane.f32.xlu0 %v420
    %v532 = vpop.xlane.xlu0 %531
    %533 = vadd.xlane.f32.xlu0 %v421
    %v534 = vpop.xlane.xlu0 %533
    %535 = vadd.xlane.f32.xlu0 %v422
    %v536 = vpop.xlane.xlu0 %535
    %537 = vadd.xlane.f32.xlu0 %v423
    %v538 = vpop.xlane.xlu0 %537
    %539 = vadd.xlane.f32.xlu0 %v424
    %v540 = vpop.xlane.xlu0 %539
    %541 = vadd.xlane.f32.xlu0 %v425
    %v542 = vpop.xlane.xlu0 %541
    %543 = vadd.xlane.f32.xlu0 %v426
    %v544 = vpop.xlane.xlu0 %543
    %545 = vadd.xlane.f32.xlu0 %v427
    %v546 = vpop.xlane.xlu0 %545
    %547 = vadd.xlane.f32.xlu0 %v428
    %v548 = vpop.xlane.xlu0 %547
    %549 = vadd.xlane.f32.xlu0 %v429
    %v550 = vpop.xlane.xlu0 %549
    %551 = vadd.xlane.f32.xlu0 %v430
    %v552 = vpop.xlane.xlu0 %551
    %553 = vadd.xlane.f32.xlu0 %v431
    %v554 = vpop.xlane.xlu0 %553
    %555 = vadd.xlane.f32.xlu0 %v432
    %v556 = vpop.xlane.xlu0 %555
    %557 = vadd.xlane.f32.xlu0 %v433
    %v558 = vpop.xlane.xlu0 %557
    %559 = vadd.xlane.f32.xlu0 %v434
    %v560 = vpop.xlane.xlu0 %559
    %561 = vadd.xlane.f32.xlu0 %v435
    %v562 = vpop.xlane.xlu0 %561
    %563 = vadd.xlane.f32.xlu0 %v436
    %v564 = vpop.xlane.xlu0 %563
    %565 = vadd.xlane.f32.xlu0 %v437
    %v566 = vpop.xlane.xlu0 %565
    %567 = vadd.xlane.f32.xlu0 %v438
    %v568 = vpop.xlane.xlu0 %567
    %569 = vadd.xlane.f32.xlu0 %v439
    %v570 = vpop.xlane.xlu0 %569
    %571 = vadd.xlane.f32.xlu0 %v440
    %v572 = vpop.xlane.xlu0 %571
    %v573 = vmul.f32 %v510, 0.015625
    %v574 = vmul.f32 %v512, 0.015625
    %v575 = vmul.f32 %v514, 0.015625
    %v576 = vmul.f32 %v516, 0.015625
    %v577 = vmul.f32 %v518, 0.015625
    %v578 = vmul.f32 %v520, 0.015625
    %v579 = vmul.f32 %v522, 0.015625
    %v580 = vmul.f32 %v524, 0.015625
    %v581 = vmul.f32 %v526, 0.015625
    %v582 = vmul.f32 %v528, 0.015625
    %v583 = vmul.f32 %v530, 0.015625
    %v584 = vmul.f32 %v532, 0.015625
    %v585 = vmul.f32 %v534, 0.015625
    %v586 = vmul.f32 %v536, 0.015625
    %v587 = vmul.f32 %v538, 0.015625
    %v588 = vmul.f32 %v540, 0.015625
    %v589 = vmul.f32 %v542, 0.015625
    %v590 = vmul.f32 %v544, 0.015625
    %v591 = vmul.f32 %v546, 0.015625
    %v592 = vmul.f32 %v548, 0.015625
    %v593 = vmul.f32 %v550, 0.015625
    %v594 = vmul.f32 %v552, 0.015625
    %v595 = vmul.f32 %v554, 0.015625
    %v596 = vmul.f32 %v556, 0.015625
    %v597 = vmul.f32 %v558, 0.015625
    %v598 = vmul.f32 %v560, 0.015625
    %v599 = vmul.f32 %v562, 0.015625
    %v600 = vmul.f32 %v564, 0.015625
    %v601 = vmul.f32 %v566, 0.015625
    %v602 = vmul.f32 %v568, 0.015625
    %v603 = vmul.f32 %v570, 0.015625
    %v604 = vmul.f32 %v572, 0.015625
    %v605 = vmul.f32 %v409, %v409
    %v606 = vmul.f32 %v410, %v410
    %v607 = vmul.f32 %v411, %v411
    %v608 = vmul.f32 %v412, %v412
    %v609 = vmul.f32 %v413, %v413
    %v610 = vmul.f32 %v414, %v414
    %v611 = vmul.f32 %v415, %v415
    %v612 = vmul.f32 %v416, %v416
    %v613 = vmul.f32 %v417, %v417
    %v614 = vmul.f32 %v418, %v418
    %v615 = vmul.f32 %v419, %v419
    %v616 = vmul.f32 %v420, %v420
    %v617 = vmul.f32 %v421, %v421
    %v618 = vmul.f32 %v422, %v422
    %v619 = vmul.f32 %v423, %v423
    %v620 = vmul.f32 %v424, %v424
    %v621 = vmul.f32 %v425, %v425
    %v622 = vmul.f32 %v426, %v426
    %v623 = vmul.f32 %v427, %v427
    %v624 = vmul.f32 %v428, %v428
    %v625 = vmul.f32 %v429, %v429
    %v626 = vmul.f32 %v430, %v430
    %v627 = vmul.f32 %v431, %v431
    %v628 = vmul.f32 %v432, %v432
    %v629 = vmul.f32 %v433, %v433
    %v630 = vmul.f32 %v434, %v434
    %v631 = vmul.f32 %v435, %v435
    %v632 = vmul.f32 %v436, %v436
    %v633 = vmul.f32 %v437, %v437
    %v634 = vmul.f32 %v438, %v438
    %v635 = vmul.f32 %v439, %v439
    %v636 = vmul.f32 %v440, %v440
    %637 = vadd.xlane.f32.xlu0 %v605
    %v638 = vpop.xlane.xlu0 %637
    %639 = vadd.xlane.f32.xlu0 %v606
    %v640 = vpop.xlane.xlu0 %639
    %641 = vadd.xlane.f32.xlu0 %v607
    %v642 = vpop.xlane.xlu0 %641
    %643 = vadd.xlane.f32.xlu0 %v608
    %v644 = vpop.xlane.xlu0 %643
    %645 = vadd.xlane.f32.xlu0 %v609
    %v646 = vpop.xlane.xlu0 %645
    %647 = vadd.xlane.f32.xlu0 %v610
    %v648 = vpop.xlane.xlu0 %647
    %649 = vadd.xlane.f32.xlu0 %v611
    %v650 = vpop.xlane.xlu0 %649
    %651 = vadd.xlane.f32.xlu0 %v612
    %v652 = vpop.xlane.xlu0 %651
    %653 = vadd.xlane.f32.xlu0 %v613
    %v654 = vpop.xlane.xlu0 %653
    %655 = vadd.xlane.f32.xlu0 %v614
    %v656 = vpop.xlane.xlu0 %655
    %657 = vadd.xlane.f32.xlu0 %v615
    %v658 = vpop.xlane.xlu0 %657
    %659 = vadd.xlane.f32.xlu0 %v616
    %v660 = vpop.xlane.xlu0 %659
    %661 = vadd.xlane.f32.xlu0 %v617
    %v662 = vpop.xlane.xlu0 %661
    %663 = vadd.xlane.f32.xlu0 %v618
    %v664 = vpop.xlane.xlu0 %663
    %665 = vadd.xlane.f32.xlu0 %v619
    %v666 = vpop.xlane.xlu0 %665
    %667 = vadd.xlane.f32.xlu0 %v620
    %v668 = vpop.xlane.xlu0 %667
    %669 = vadd.xlane.f32.xlu0 %v621
    %v670 = vpop.xlane.xlu0 %669
    %671 = vadd.xlane.f32.xlu0 %v622
    %v672 = vpop.xlane.xlu0 %671
    %673 = vadd.xlane.f32.xlu0 %v623
    %v674 = vpop.xlane.xlu0 %673
    %675 = vadd.xlane.f32.xlu0 %v624
    %v676 = vpop.xlane.xlu0 %675
    %677 = vadd.xlane.f32.xlu0 %v625
    %v678 = vpop.xlane.xlu0 %677
    %679 = vadd.xlane.f32.xlu0 %v626
    %v680 = vpop.xlane.xlu0 %679
    %681 = vadd.xlane.f32.xlu0 %v627
    %v682 = vpop.xlane.xlu0 %681
    %683 = vadd.xlane.f32.xlu0 %v628
    %v684 = vpop.xlane.xlu0 %683
    %685 = vadd.xlane.f32.xlu0 %v629
    %v686 = vpop.xlane.xlu0 %685
    %687 = vadd.xlane.f32.xlu0 %v630
    %v688 = vpop.xlane.xlu0 %687
    %689 = vadd.xlane.f32.xlu0 %v631
    %v690 = vpop.xlane.xlu0 %689
    %691 = vadd.xlane.f32.xlu0 %v632
    %v692 = vpop.xlane.xlu0 %691
    %693 = vadd.xlane.f32.xlu0 %v633
    %v694 = vpop.xlane.xlu0 %693
    %695 = vadd.xlane.f32.xlu0 %v634
    %v696 = vpop.xlane.xlu0 %695
    %697 = vadd.xlane.f32.xlu0 %v635
    %v698 = vpop.xlane.xlu0 %697
    %699 = vadd.xlane.f32.xlu0 %v636
    %v700 = vpop.xlane.xlu0 %699
    %v701 = vmul.f32 %v638, 0.015625
    %v702 = vmul.f32 %v640, 0.015625
    %v703 = vmul.f32 %v642, 0.015625
    %v704 = vmul.f32 %v644, 0.015625
    %v705 = vmul.f32 %v646, 0.015625
    %v706 = vmul.f32 %v648, 0.015625
    %v707 = vmul.f32 %v650, 0.015625
    %v708 = vmul.f32 %v652, 0.015625
    %v709 = vmul.f32 %v654, 0.015625
    %v710 = vmul.f32 %v656, 0.015625
    %v711 = vmul.f32 %v658, 0.015625
    %v712 = vmul.f32 %v660, 0.015625
    %v713 = vmul.f32 %v662, 0.015625
    %v714 = vmul.f32 %v664, 0.015625
    %v715 = vmul.f32 %v666, 0.015625
    %v716 = vmul.f32 %v668, 0.015625
    %v717 = vmul.f32 %v670, 0.015625
    %v718 = vmul.f32 %v672, 0.015625
    %v719 = vmul.f32 %v674, 0.015625
    %v720 = vmul.f32 %v676, 0.015625
    %v721 = vmul.f32 %v678, 0.015625
    %v722 = vmul.f32 %v680, 0.015625
    %v723 = vmul.f32 %v682, 0.015625
    %v724 = vmul.f32 %v684, 0.015625
    %v725 = vmul.f32 %v686, 0.015625
    %v726 = vmul.f32 %v688, 0.015625
    %v727 = vmul.f32 %v690, 0.015625
    %v728 = vmul.f32 %v692, 0.015625
    %v729 = vmul.f32 %v694, 0.015625
    %v730 = vmul.f32 %v696, 0.015625
    %v731 = vmul.f32 %v698, 0.015625
    %v732 = vmul.f32 %v700, 0.015625
    %v733 = vmul.f32 %v573, %v573
    %v734 = vmul.f32 %v574, %v574
    %v735 = vmul.f32 %v575, %v575
    %v736 = vmul.f32 %v576, %v576
    %v737 = vmul.f32 %v577, %v577
    %v738 = vmul.f32 %v578, %v578
    %v739 = vmul.f32 %v579, %v579
    %v740 = vmul.f32 %v580, %v580
    %v741 = vmul.f32 %v581, %v581
    %v742 = vmul.f32 %v582, %v582
    %v743 = vmul.f32 %v583, %v583
    %v744 = vmul.f32 %v584, %v584
    %v745 = vmul.f32 %v585, %v585
    %v746 = vmul.f32 %v586, %v586
    %v747 = vmul.f32 %v587, %v587
    %v748 = vmul.f32 %v588, %v588
    %v749 = vmul.f32 %v589, %v589
    %v750 = vmul.f32 %v590, %v590
    %v751 = vmul.f32 %v591, %v591
    %v752 = vmul.f32 %v592, %v592
    %v753 = vmul.f32 %v593, %v593
    %v754 = vmul.f32 %v594, %v594
    %v755 = vmul.f32 %v595, %v595
    %v756 = vmul.f32 %v596, %v596
    %v757 = vmul.f32 %v597, %v597
    %v758 = vmul.f32 %v598, %v598
    %v759 = vmul.f32 %v599, %v599
    %v760 = vmul.f32 %v600, %v600
    %v761 = vmul.f32 %v601, %v601
    %v762 = vmul.f32 %v602, %v602
    %v763 = vmul.f32 %v603, %v603
    %v764 = vmul.f32 %v604, %v604
    %v765 = vsub.f32 %v701, %v733
    %v766 = vsub.f32 %v702, %v734
    %v767 = vsub.f32 %v703, %v735
    %v768 = vsub.f32 %v704, %v736
    %v769 = vsub.f32 %v705, %v737
    %v770 = vsub.f32 %v706, %v738
    %v771 = vsub.f32 %v707, %v739
    %v772 = vsub.f32 %v708, %v740
    %v773 = vsub.f32 %v709, %v741
    %v774 = vsub.f32 %v710, %v742
    %v775 = vsub.f32 %v711, %v743
    %v776 = vsub.f32 %v712, %v744
    %v777 = vsub.f32 %v713, %v745
    %v778 = vsub.f32 %v714, %v746
    %v779 = vsub.f32 %v715, %v747
    %v780 = vsub.f32 %v716, %v748
    %v781 = vsub.f32 %v717, %v749
    %v782 = vsub.f32 %v718, %v750
    %v783 = vsub.f32 %v719, %v751
    %v784 = vsub.f32 %v720, %v752
    %v785 = vsub.f32 %v721, %v753
    %v786 = vsub.f32 %v722, %v754
    %v787 = vsub.f32 %v723, %v755
    %v788 = vsub.f32 %v724, %v756
    %v789 = vsub.f32 %v725, %v757
    %v790 = vsub.f32 %v726, %v758
    %v791 = vsub.f32 %v727, %v759
    %v792 = vsub.f32 %v728, %v760
    %v793 = vsub.f32 %v729, %v761
    %v794 = vsub.f32 %v730, %v762
    %v795 = vsub.f32 %v731, %v763
    %v796 = vsub.f32 %v732, %v764
    %v797 = vmax.f32 %v765, 0.0
    %v798 = vmax.f32 %v766, 0.0
    %v799 = vmax.f32 %v767, 0.0
    %v800 = vmax.f32 %v768, 0.0
    %v801 = vmax.f32 %v769, 0.0
    %v802 = vmax.f32 %v770, 0.0
    %v803 = vmax.f32 %v771, 0.0
    %v804 = vmax.f32 %v772, 0.0
    %v805 = vmax.f32 %v773, 0.0
    %v806 = vmax.f32 %v774, 0.0
    %v807 = vmax.f32 %v775, 0.0
    %v808 = vmax.f32 %v776, 0.0
    %v809 = vmax.f32 %v777, 0.0
    %v810 = vmax.f32 %v778, 0.0
    %v811 = vmax.f32 %v779, 0.0
    %v812 = vmax.f32 %v780, 0.0
    %v813 = vmax.f32 %v781, 0.0
    %v814 = vmax.f32 %v782, 0.0
    %v815 = vmax.f32 %v783, 0.0
    %v816 = vmax.f32 %v784, 0.0
    %v817 = vmax.f32 %v785, 0.0
    %v818 = vmax.f32 %v786, 0.0
    %v819 = vmax.f32 %v787, 0.0
    %v820 = vmax.f32 %v788, 0.0
    %v821 = vmax.f32 %v789, 0.0
    %v822 = vmax.f32 %v790, 0.0
    %v823 = vmax.f32 %v791, 0.0
    %v824 = vmax.f32 %v792, 0.0
    %v825 = vmax.f32 %v793, 0.0
    %v826 = vmax.f32 %v794, 0.0
    %v827 = vmax.f32 %v795, 0.0
    %v828 = vmax.f32 %v796, 0.0
    %v829 = vsub.f32 %v409, %v573
    %v830 = vsub.f32 %v410, %v574
    %v831 = vsub.f32 %v411, %v575
    %v832 = vsub.f32 %v412, %v576
    %v833 = vsub.f32 %v413, %v577
    %v834 = vsub.f32 %v414, %v578
    %v835 = vsub.f32 %v415, %v579
    %v836 = vsub.f32 %v416, %v580
    %v837 = vsub.f32 %v417, %v581
    %v838 = vsub.f32 %v418, %v582
    %v839 = vsub.f32 %v419, %v583
    %v840 = vsub.f32 %v420, %v584
    %v841 = vsub.f32 %v421, %v585
    %v842 = vsub.f32 %v422, %v586
    %v843 = vsub.f32 %v423, %v587
    %v844 = vsub.f32 %v424, %v588
    %v845 = vsub.f32 %v425, %v589
    %v846 = vsub.f32 %v426, %v590
    %v847 = vsub.f32 %v427, %v591
    %v848 = vsub.f32 %v428, %v592
    %v849 = vsub.f32 %v429, %v593
    %v850 = vsub.f32 %v430, %v594
    %v851 = vsub.f32 %v431, %v595
    %v852 = vsub.f32 %v432, %v596
    %v853 = vsub.f32 %v433, %v597
    %v854 = vsub.f32 %v434, %v598
    %v855 = vsub.f32 %v435, %v599
    %v856 = vsub.f32 %v436, %v600
    %v857 = vsub.f32 %v437, %v601
    %v858 = vsub.f32 %v438, %v602
    %v859 = vsub.f32 %v439, %v603
    %v860 = vsub.f32 %v440, %v604
    %v861 = vadd.f32 %v797, 1e-05
    %v862 = vadd.f32 %v798, 1e-05
    %v863 = vadd.f32 %v799, 1e-05
    %v864 = vadd.f32 %v800, 1e-05
    %v865 = vadd.f32 %v801, 1e-05
    %v866 = vadd.f32 %v802, 1e-05
    %v867 = vadd.f32 %v803, 1e-05
    %v868 = vadd.f32 %v804, 1e-05
    %v869 = vadd.f32 %v805, 1e-05
    %v870 = vadd.f32 %v806, 1e-05
    %v871 = vadd.f32 %v807, 1e-05
    %v872 = vadd.f32 %v808, 1e-05
    %v873 = vadd.f32 %v809, 1e-05
    %v874 = vadd.f32 %v810, 1e-05
    %v875 = vadd.f32 %v811, 1e-05
    %v876 = vadd.f32 %v812, 1e-05
    %v877 = vadd.f32 %v813, 1e-05
    %v878 = vadd.f32 %v814, 1e-05
    %v879 = vadd.f32 %v815, 1e-05
    %v880 = vadd.f32 %v816, 1e-05
    %v881 = vadd.f32 %v817, 1e-05
    %v882 = vadd.f32 %v818, 1e-05
    %v883 = vadd.f32 %v819, 1e-05
    %v884 = vadd.f32 %v820, 1e-05
    %v885 = vadd.f32 %v821, 1e-05
    %v886 = vadd.f32 %v822, 1e-05
    %v887 = vadd.f32 %v823, 1e-05
    %v888 = vadd.f32 %v824, 1e-05
    %v889 = vadd.f32 %v825, 1e-05
    %v890 = vadd.f32 %v826, 1e-05
    %v891 = vadd.f32 %v827, 1e-05
    %v892 = vadd.f32 %v828, 1e-05
    %v893 = vrsqrt.pop %v861
    %v894 = vrsqrt.pop %v862
    %v895 = vrsqrt.pop %v863
    %v896 = vrsqrt.pop %v864
    %v897 = vrsqrt.pop %v865
    %v898 = vrsqrt.pop %v866
    %v899 = vrsqrt.pop %v867
    %v900 = vrsqrt.pop %v868
    %v901 = vrsqrt.pop %v869
    %v902 = vrsqrt.pop %v870
    %v903 = vrsqrt.pop %v871
    %v904 = vrsqrt.pop %v872
    %v905 = vrsqrt.pop %v873
    %v906 = vrsqrt.pop %v874
    %v907 = vrsqrt.pop %v875
    %v908 = vrsqrt.pop %v876
    %v909 = vrsqrt.pop %v877
    %v910 = vrsqrt.pop %v878
    %v911 = vrsqrt.pop %v879
    %v912 = vrsqrt.pop %v880
    %v913 = vrsqrt.pop %v881
    %v914 = vrsqrt.pop %v882
    %v915 = vrsqrt.pop %v883
    %v916 = vrsqrt.pop %v884
    %v917 = vrsqrt.pop %v885
    %v918 = vrsqrt.pop %v886
    %v919 = vrsqrt.pop %v887
    %v920 = vrsqrt.pop %v888
    %v921 = vrsqrt.pop %v889
    %v922 = vrsqrt.pop %v890
    %v923 = vrsqrt.pop %v891
    %v924 = vrsqrt.pop %v892
    %v925 = vmul.f32 %v829, %v893
    %v926 = vmul.f32 %v830, %v894
    %v927 = vmul.f32 %v831, %v895
    %v928 = vmul.f32 %v832, %v896
    %v929 = vmul.f32 %v833, %v897
    %v930 = vmul.f32 %v834, %v898
    %v931 = vmul.f32 %v835, %v899
    %v932 = vmul.f32 %v836, %v900
    %v933 = vmul.f32 %v837, %v901
    %v934 = vmul.f32 %v838, %v902
    %v935 = vmul.f32 %v839, %v903
    %v936 = vmul.f32 %v840, %v904
    %v937 = vmul.f32 %v841, %v905
    %v938 = vmul.f32 %v842, %v906
    %v939 = vmul.f32 %v843, %v907
    %v940 = vmul.f32 %v844, %v908
    %v941 = vmul.f32 %v845, %v909
    %v942 = vmul.f32 %v846, %v910
    %v943 = vmul.f32 %v847, %v911
    %v944 = vmul.f32 %v848, %v912
    %v945 = vmul.f32 %v849, %v913
    %v946 = vmul.f32 %v850, %v914
    %v947 = vmul.f32 %v851, %v915
    %v948 = vmul.f32 %v852, %v916
    %v949 = vmul.f32 %v853, %v917
    %v950 = vmul.f32 %v854, %v918
    %v951 = vmul.f32 %v855, %v919
    %v952 = vmul.f32 %v856, %v920
    %v953 = vmul.f32 %v857, %v921
    %v954 = vmul.f32 %v858, %v922
    %v955 = vmul.f32 %v859, %v923
    %v956 = vmul.f32 %v860, %v924
    %v957 = vlaneseq
    %v958 = vshrl.u32 %v957, 7
    %v959 = vsub.s32 0, %v958
    %v960 = vrot.slane %v76, %v959
    %v961 = vmul.f32 %v925, %v960
    %v962 = vmul.f32 %v926, %v960
    %v963 = vmul.f32 %v927, %v960
    %v964 = vmul.f32 %v928, %v960
    %v965 = vmul.f32 %v929, %v960
    %v966 = vmul.f32 %v930, %v960
    %v967 = vmul.f32 %v931, %v960
    %v968 = vmul.f32 %v932, %v960
    %v969 = vmul.f32 %v933, %v960
    %v970 = vmul.f32 %v934, %v960
    %v971 = vmul.f32 %v935, %v960
    %v972 = vmul.f32 %v936, %v960
    %v973 = vmul.f32 %v937, %v960
    %v974 = vmul.f32 %v938, %v960
    %v975 = vmul.f32 %v939, %v960
    %v976 = vmul.f32 %v940, %v960
    %v977 = vmul.f32 %v941, %v960
    %v978 = vmul.f32 %v942, %v960
    %v979 = vmul.f32 %v943, %v960
    %v980 = vmul.f32 %v944, %v960
    %v981 = vmul.f32 %v945, %v960
    %v982 = vmul.f32 %v946, %v960
    %v983 = vmul.f32 %v947, %v960
    %v984 = vmul.f32 %v948, %v960
    %v985 = vmul.f32 %v949, %v960
    %v986 = vmul.f32 %v950, %v960
    %v987 = vmul.f32 %v951, %v960
    %v988 = vmul.f32 %v952, %v960
    %v989 = vmul.f32 %v953, %v960
    %v990 = vmul.f32 %v954, %v960
    %v991 = vmul.f32 %v955, %v960
    %v992 = vmul.f32 %v956, %v960
    %v993 = vlaneseq
    %v994 = vshrl.u32 %v993, 7
    %v995 = vsub.s32 0, %v994
    %v996 = vrot.slane %v77, %v995
    %v997 = vadd.f32 %v961, %v996
    %v998 = vadd.f32 %v962, %v996
    %v999 = vadd.f32 %v963, %v996
    %v1000 = vadd.f32 %v964, %v996
    %v1001 = vadd.f32 %v965, %v996
    %v1002 = vadd.f32 %v966, %v996
    %v1003 = vadd.f32 %v967, %v996
    %v1004 = vadd.f32 %v968, %v996
    %v1005 = vadd.f32 %v969, %v996
    %v1006 = vadd.f32 %v970, %v996
    %v1007 = vadd.f32 %v971, %v996
    %v1008 = vadd.f32 %v972, %v996
    %v1009 = vadd.f32 %v973, %v996
    %v1010 = vadd.f32 %v974, %v996
    %v1011 = vadd.f32 %v975, %v996
    %v1012 = vadd.f32 %v976, %v996
    %v1013 = vadd.f32 %v977, %v996
    %v1014 = vadd.f32 %v978, %v996
    %v1015 = vadd.f32 %v979, %v996
    %v1016 = vadd.f32 %v980, %v996
    %v1017 = vadd.f32 %v981, %v996
    %v1018 = vadd.f32 %v982, %v996
    %v1019 = vadd.f32 %v983, %v996
    %v1020 = vadd.f32 %v984, %v996
    %v1021 = vadd.f32 %v985, %v996
    %v1022 = vadd.f32 %v986, %v996
    %v1023 = vadd.f32 %v987, %v996
    %v1024 = vadd.f32 %v988, %v996
    %v1025 = vadd.f32 %v989, %v996
    %v1026 = vadd.f32 %v990, %v996
    %v1027 = vadd.f32 %v991, %v996
    %v1028 = vadd.f32 %v992, %v996
    %v1029 = vmax.f32 %v997, 0.0
    %v1030 = vmax.f32 %v998, 0.0
    %v1031 = vmax.f32 %v999, 0.0
    %v1032 = vmax.f32 %v1000, 0.0
    %v1033 = vmax.f32 %v1001, 0.0
    %v1034 = vmax.f32 %v1002, 0.0
    %v1035 = vmax.f32 %v1003, 0.0
    %v1036 = vmax.f32 %v1004, 0.0
    %v1037 = vmax.f32 %v1005, 0.0
    %v1038 = vmax.f32 %v1006, 0.0
    %v1039 = vmax.f32 %v1007, 0.0
    %v1040 = vmax.f32 %v1008, 0.0
    %v1041 = vmax.f32 %v1009, 0.0
    %v1042 = vmax.f32 %v1010, 0.0
    %v1043 = vmax.f32 %v1011, 0.0
    %v1044 = vmax.f32 %v1012, 0.0
    %v1045 = vmax.f32 %v1013, 0.0
    %v1046 = vmax.f32 %v1014, 0.0
    %v1047 = vmax.f32 %v1015, 0.0
    %v1048 = vmax.f32 %v1016, 0.0
    %v1049 = vmax.f32 %v1017, 0.0
    %v1050 = vmax.f32 %v1018, 0.0
    %v1051 = vmax.f32 %v1019, 0.0
    %v1052 = vmax.f32 %v1020, 0.0
    %v1053 = vmax.f32 %v1021, 0.0
    %v1054 = vmax.f32 %v1022, 0.0
    %v1055 = vmax.f32 %v1023, 0.0
    %v1056 = vmax.f32 %v1024, 0.0
    %v1057 = vmax.f32 %v1025, 0.0
    %v1058 = vmax.f32 %v1026, 0.0
    %v1059 = vmax.f32 %v1027, 0.0
    %v1060 = vmax.f32 %v1028, 0.0
    %v1061 = vld [vmem:[#allocation8] sm:$0xff]
    %v1062 = vld [vmem:[#allocation8 + $0x8] sm:$0xff]
    %v1063 = vld [vmem:[#allocation8 + $0x10] sm:$0xff]
    %v1064 = vld [vmem:[#allocation8 + $0x18] sm:$0xff]
    %v1065 = vld [vmem:[#allocation8 + $0x20] sm:$0xff]
    %v1066 = vld [vmem:[#allocation8 + $0x28] sm:$0xff]
    %v1067 = vld [vmem:[#allocation8 + $0x30] sm:$0xff]
    %v1068 = vld [vmem:[#allocation8 + $0x38] sm:$0xff]
    %v1069 = vld [vmem:[#allocation8 + $0x40] sm:$0xff]
    %v1070 = vld [vmem:[#allocation8 + $0x48] sm:$0xff]
    %v1071 = vld [vmem:[#allocation8 + $0x50] sm:$0xff]
    %v1072 = vld [vmem:[#allocation8 + $0x58] sm:$0xff]
    %v1073 = vld [vmem:[#allocation8 + $0x60] sm:$0xff]
    %v1074 = vld [vmem:[#allocation8 + $0x68] sm:$0xff]
    %v1075 = vld [vmem:[#allocation8 + $0x70] sm:$0xff]
    %v1076 = vld [vmem:[#allocation8 + $0x78] sm:$0xff]
    %v1077 = vlaneseq
    %v1078 = vshrl.u32 %v1077, 7
    %v1079 = vsub.s32 0, %v1078
    %v1080 = vrot.slane %v78, %v1079
    %1081 = vmatprep.subr.mxu0 0.0
    %1082 = vmatpush1.msra.mxu0 %v1076
    %1083 = vmatprep.subr.mxu0 0.0
    %1084 = vmatpush1.msra.mxu0 %v1075
    %1085 = vmatprep.subr.mxu0 0.0
    %1086 = vmatpush1.msra.mxu0 %v1074
    %1087 = vmatprep.subr.mxu0 0.0
    %1088 = vmatpush1.msra.mxu0 %v1073
    %1089 = vmatprep.subr.mxu0 0.0
    %1090 = vmatpush1.msra.mxu0 %v1072
    %1091 = vmatprep.subr.mxu0 0.0
    %1092 = vmatpush1.msra.mxu0 %v1071
    %1093 = vmatprep.subr.mxu0 0.0
    %1094 = vmatpush1.msra.mxu0 %v1070
    %1095 = vmatprep.subr.mxu0 0.0
    %1096 = vmatpush1.msra.mxu0 %v1069
    %1097 = vmatprep.subr.mxu0 0.0
    %1098 = vmatpush1.msra.mxu0 %v1068
    %1099 = vmatprep.subr.mxu0 0.0
    %1100 = vmatpush1.msra.mxu0 %v1067
    %1101 = vmatprep.subr.mxu0 0.0
    %1102 = vmatpush1.msra.mxu0 %v1066
    %1103 = vmatprep.subr.mxu0 0.0
    %1104 = vmatpush1.msra.mxu0 %v1065
    %1105 = vmatprep.subr.mxu0 0.0
    %1106 = vmatpush1.msra.mxu0 %v1064
    %1107 = vmatprep.subr.mxu0 0.0
    %1108 = vmatpush1.msra.mxu0 %v1063
    %1109 = vmatprep.subr.mxu0 0.0
    %1110 = vmatpush1.msra.mxu0 %v1062
    %1111 = vmatprep.subr.mxu0 0.0
    %1112 = vmatpush1.msra.mxu0 %v1061
    %1113 = vmatprep.subr.mxu0 0.0
    %1114 = vmatpush2.msra.mxu0 0.0
    %1115 = vmatprep.subr.mxu0 0.0
    %1116 = vmatpush2.msra.mxu0 0.0
    %1117 = vmatprep.subr.mxu0 0.0
    %1118 = vmatpush2.msra.mxu0 0.0
    %1119 = vmatprep.subr.mxu0 0.0
    %1120 = vmatpush2.msra.mxu0 0.0
    %1121 = vmatprep.subr.mxu0 0.0
    %1122 = vmatpush2.msra.mxu0 0.0
    %1123 = vmatprep.subr.mxu0 0.0
    %1124 = vmatpush2.msra.mxu0 0.0
    %1125 = vmatprep.subr.mxu0 0.0
    %1126 = vmatpush2.msra.mxu0 0.0
    %1127 = vmatprep.subr.mxu0 0.0
    %1128 = vmatpush2.msra.mxu0 0.0
    %1129 = vmatprep.subr.mxu0 0.0
    %1130 = vmatpush2.msra.mxu0 0.0
    %1131 = vmatprep.subr.mxu0 0.0
    %1132 = vmatpush2.msra.mxu0 0.0
    %1133 = vmatprep.subr.mxu0 0.0
    %1134 = vmatpush2.msra.mxu0 0.0
    %1135 = vmatprep.subr.mxu0 0.0
    %1136 = vmatpush2.msra.mxu0 0.0
    %1137 = vmatprep.subr.mxu0 0.0
    %1138 = vmatpush2.msra.mxu0 0.0
    %1139 = vmatprep.subr.mxu0 0.0
    %1140 = vmatpush2.msra.mxu0 0.0
    %1141 = vmatprep.subr.mxu0 0.0
    %1142 = vmatpush2.msra.mxu0 0.0
    %1143 = vmatprep.subr.mxu0 0.0
    %1144 = vmatpush2.msra.mxu0 0.0
    %1145 = vmatprep.mubr.f32.mxu0 0.0
    %1146 = vmatmul.mubr.f32.gmra.mxu0 %v1029
    %v1147 = vpop.f32.mrf.mxu0
    %v1148 = vadd.f32 %v1080, %v1147
    %v1149 = vpop.f32.mrf.mxu0
    %1150 = vmatprep.mubr.f32.mxu0 0.0
    %1151 = vmatmul.mubr.f32.gmra.mxu0 %v1030
    %v1152 = vpop.f32.mrf.mxu0
    %v1153 = vadd.f32 %v1080, %v1152
    %v1154 = vpop.f32.mrf.mxu0
    %1155 = vmatprep.mubr.f32.mxu0 0.0
    %1156 = vmatmul.mubr.f32.gmra.mxu0 %v1031
    %v1157 = vpop.f32.mrf.mxu0
    %v1158 = vadd.f32 %v1080, %v1157
    %v1159 = vpop.f32.mrf.mxu0
    %1160 = vmatprep.mubr.f32.mxu0 0.0
    %1161 = vmatmul.mubr.f32.gmra.mxu0 %v1032
    %v1162 = vpop.f32.mrf.mxu0
    %v1163 = vadd.f32 %v1080, %v1162
    %v1164 = vpop.f32.mrf.mxu0
    %1165 = vmatprep.mubr.f32.mxu0 0.0
    %1166 = vmatmul.mubr.f32.gmra.mxu0 %v1033
    %v1167 = vpop.f32.mrf.mxu0
    %v1168 = vadd.f32 %v1080, %v1167
    %v1169 = vpop.f32.mrf.mxu0
    %1170 = vmatprep.mubr.f32.mxu0 0.0
    %1171 = vmatmul.mubr.f32.gmra.mxu0 %v1034
    %v1172 = vpop.f32.mrf.mxu0
    %v1173 = vadd.f32 %v1080, %v1172
    %v1174 = vpop.f32.mrf.mxu0
    %1175 = vmatprep.mubr.f32.mxu0 0.0
    %1176 = vmatmul.mubr.f32.gmra.mxu0 %v1035
    %v1177 = vpop.f32.mrf.mxu0
    %v1178 = vadd.f32 %v1080, %v1177
    %v1179 = vpop.f32.mrf.mxu0
    %1180 = vmatprep.mubr.f32.mxu0 0.0
    %1181 = vmatmul.mubr.f32.gmra.mxu0 %v1036
    %v1182 = vpop.f32.mrf.mxu0
    %v1183 = vadd.f32 %v1080, %v1182
    %v1184 = vpop.f32.mrf.mxu0
    %1185 = vmatprep.mubr.f32.mxu0 0.0
    %1186 = vmatmul.mubr.f32.gmra.mxu0 %v1037
    %v1187 = vpop.f32.mrf.mxu0
    %v1188 = vadd.f32 %v1080, %v1187
    %v1189 = vpop.f32.mrf.mxu0
    %1190 = vmatprep.mubr.f32.mxu0 0.0
    %1191 = vmatmul.mubr.f32.gmra.mxu0 %v1038
    %v1192 = vpop.f32.mrf.mxu0
    %v1193 = vadd.f32 %v1080, %v1192
    %v1194 = vpop.f32.mrf.mxu0
    %1195 = vmatprep.mubr.f32.mxu0 0.0
    %1196 = vmatmul.mubr.f32.gmra.mxu0 %v1039
    %v1197 = vpop.f32.mrf.mxu0
    %v1198 = vadd.f32 %v1080, %v1197
    %v1199 = vpop.f32.mrf.mxu0
    %1200 = vmatprep.mubr.f32.mxu0 0.0
    %1201 = vmatmul.mubr.f32.gmra.mxu0 %v1040
    %v1202 = vpop.f32.mrf.mxu0
    %v1203 = vadd.f32 %v1080, %v1202
    %v1204 = vpop.f32.mrf.mxu0
    %1205 = vmatprep.mubr.f32.mxu0 0.0
    %1206 = vmatmul.mubr.f32.gmra.mxu0 %v1041
    %v1207 = vpop.f32.mrf.mxu0
    %v1208 = vadd.f32 %v1080, %v1207
    %v1209 = vpop.f32.mrf.mxu0
    %1210 = vmatprep.mubr.f32.mxu0 0.0
    %1211 = vmatmul.mubr.f32.gmra.mxu0 %v1042
    %v1212 = vpop.f32.mrf.mxu0
    %v1213 = vadd.f32 %v1080, %v1212
    %v1214 = vpop.f32.mrf.mxu0
    %1215 = vmatprep.mubr.f32.mxu0 0.0
    %1216 = vmatmul.mubr.f32.gmra.mxu0 %v1043
    %v1217 = vpop.f32.mrf.mxu0
    %v1218 = vadd.f32 %v1080, %v1217
    %v1219 = vpop.f32.mrf.mxu0
    %1220 = vmatprep.mubr.f32.mxu0 0.0
    %1221 = vmatmul.mubr.f32.gmra.mxu0 %v1044
    %v1222 = vpop.f32.mrf.mxu0
    %v1223 = vadd.f32 %v1080, %v1222
    %v1224 = vpop.f32.mrf.mxu0
    %1225 = vmatprep.mubr.f32.mxu0 0.0
    %1226 = vmatmul.mubr.f32.gmra.mxu0 %v1045
    %v1227 = vpop.f32.mrf.mxu0
    %v1228 = vadd.f32 %v1080, %v1227
    %v1229 = vpop.f32.mrf.mxu0
    %1230 = vmatprep.mubr.f32.mxu0 0.0
    %1231 = vmatmul.mubr.f32.gmra.mxu0 %v1046
    %v1232 = vpop.f32.mrf.mxu0
    %v1233 = vadd.f32 %v1080, %v1232
    %v1234 = vpop.f32.mrf.mxu0
    %1235 = vmatprep.mubr.f32.mxu0 0.0
    %1236 = vmatmul.mubr.f32.gmra.mxu0 %v1047
    %v1237 = vpop.f32.mrf.mxu0
    %v1238 = vadd.f32 %v1080, %v1237
    %v1239 = vpop.f32.mrf.mxu0
    %1240 = vmatprep.mubr.f32.mxu0 0.0
    %1241 = vmatmul.mubr.f32.gmra.mxu0 %v1048
    %v1242 = vpop.f32.mrf.mxu0
    %v1243 = vadd.f32 %v1080, %v1242
    %v1244 = vpop.f32.mrf.mxu0
    %1245 = vmatprep.mubr.f32.mxu0 0.0
    %1246 = vmatmul.mubr.f32.gmra.mxu0 %v1049
    %v1247 = vpop.f32.mrf.mxu0
    %v1248 = vadd.f32 %v1080, %v1247
    %v1249 = vpop.f32.mrf.mxu0
    %1250 = vmatprep.mubr.f32.mxu0 0.0
    %1251 = vmatmul.mubr.f32.gmra.mxu0 %v1050
    %v1252 = vpop.f32.mrf.mxu0
    %v1253 = vadd.f32 %v1080, %v1252
    %v1254 = vpop.f32.mrf.mxu0
    %1255 = vmatprep.mubr.f32.mxu0 0.0
    %1256 = vmatmul.mubr.f32.gmra.mxu0 %v1051
    %v1257 = vpop.f32.mrf.mxu0
    %v1258 = vadd.f32 %v1080, %v1257
    %v1259 = vpop.f32.mrf.mxu0
    %1260 = vmatprep.mubr.f32.mxu0 0.0
    %1261 = vmatmul.mubr.f32.gmra.mxu0 %v1052
    %v1262 = vpop.f32.mrf.mxu0
    %v1263 = vadd.f32 %v1080, %v1262
    %v1264 = vpop.f32.mrf.mxu0
    %1265 = vmatprep.mubr.f32.mxu0 0.0
    %1266 = vmatmul.mubr.f32.gmra.mxu0 %v1053
    %v1267 = vpop.f32.mrf.mxu0
    %v1268 = vadd.f32 %v1080, %v1267
    %v1269 = vpop.f32.mrf.mxu0
    %1270 = vmatprep.mubr.f32.mxu0 0.0
    %1271 = vmatmul.mubr.f32.gmra.mxu0 %v1054
    %v1272 = vpop.f32.mrf.mxu0
    %v1273 = vadd.f32 %v1080, %v1272
    %v1274 = vpop.f32.mrf.mxu0
    %1275 = vmatprep.mubr.f32.mxu0 0.0
    %1276 = vmatmul.mubr.f32.gmra.mxu0 %v1055
    %v1277 = vpop.f32.mrf.mxu0
    %v1278 = vadd.f32 %v1080, %v1277
    %v1279 = vpop.f32.mrf.mxu0
    %1280 = vmatprep.mubr.f32.mxu0 0.0
    %1281 = vmatmul.mubr.f32.gmra.mxu0 %v1056
    %v1282 = vpop.f32.mrf.mxu0
    %v1283 = vadd.f32 %v1080, %v1282
    %v1284 = vpop.f32.mrf.mxu0
    %1285 = vmatprep.mubr.f32.mxu0 0.0
    %1286 = vmatmul.mubr.f32.gmra.mxu0 %v1057
    %v1287 = vpop.f32.mrf.mxu0
    %v1288 = vadd.f32 %v1080, %v1287
    %v1289 = vpop.f32.mrf.mxu0
    %1290 = vmatprep.mubr.f32.mxu0 0.0
    %1291 = vmatmul.mubr.f32.gmra.mxu0 %v1058
    %v1292 = vpop.f32.mrf.mxu0
    %v1293 = vadd.f32 %v1080, %v1292
    %v1294 = vpop.f32.mrf.mxu0
    %1295 = vmatprep.mubr.f32.mxu0 0.0
    %1296 = vmatmul.mubr.f32.gmra.mxu0 %v1059
    %v1297 = vpop.f32.mrf.mxu0
    %v1298 = vadd.f32 %v1080, %v1297
    %v1299 = vpop.f32.mrf.mxu0
    %1300 = vmatprep.mubr.f32.mxu0 0.0
    %1301 = vmatmul.mubr.f32.gmra.mxu0 %v1060
    %v1302 = vpop.f32.mrf.mxu0
    %v1303 = vadd.f32 %v1080, %v1302
    %v1304 = vpop.f32.mrf.mxu0
    %1305 = vdwg.mxu0
    %1306 = vadd.xlane.f32.xlu0 %v1148
    %v1307 = vpop.xlane.xlu0 %1306
    %1308 = vadd.xlane.f32.xlu0 %v1153
    %v1309 = vpop.xlane.xlu0 %1308
    %1310 = vadd.xlane.f32.xlu0 %v1158
    %v1311 = vpop.xlane.xlu0 %1310
    %1312 = vadd.xlane.f32.xlu0 %v1163
    %v1313 = vpop.xlane.xlu0 %1312
    %1314 = vadd.xlane.f32.xlu0 %v1168
    %v1315 = vpop.xlane.xlu0 %1314
    %1316 = vadd.xlane.f32.xlu0 %v1173
    %v1317 = vpop.xlane.xlu0 %1316
    %1318 = vadd.xlane.f32.xlu0 %v1178
    %v1319 = vpop.xlane.xlu0 %1318
    %1320 = vadd.xlane.f32.xlu0 %v1183
    %v1321 = vpop.xlane.xlu0 %1320
    %1322 = vadd.xlane.f32.xlu0 %v1188
    %v1323 = vpop.xlane.xlu0 %1322
    %1324 = vadd.xlane.f32.xlu0 %v1193
    %v1325 = vpop.xlane.xlu0 %1324
    %1326 = vadd.xlane.f32.xlu0 %v1198
    %v1327 = vpop.xlane.xlu0 %1326
    %1328 = vadd.xlane.f32.xlu0 %v1203
    %v1329 = vpop.xlane.xlu0 %1328
    %1330 = vadd.xlane.f32.xlu0 %v1208
    %v1331 = vpop.xlane.xlu0 %1330
    %1332 = vadd.xlane.f32.xlu0 %v1213
    %v1333 = vpop.xlane.xlu0 %1332
    %1334 = vadd.xlane.f32.xlu0 %v1218
    %v1335 = vpop.xlane.xlu0 %1334
    %1336 = vadd.xlane.f32.xlu0 %v1223
    %v1337 = vpop.xlane.xlu0 %1336
    %1338 = vadd.xlane.f32.xlu0 %v1228
    %v1339 = vpop.xlane.xlu0 %1338
    %1340 = vadd.xlane.f32.xlu0 %v1233
    %v1341 = vpop.xlane.xlu0 %1340
    %1342 = vadd.xlane.f32.xlu0 %v1238
    %v1343 = vpop.xlane.xlu0 %1342
    %1344 = vadd.xlane.f32.xlu0 %v1243
    %v1345 = vpop.xlane.xlu0 %1344
    %1346 = vadd.xlane.f32.xlu0 %v1248
    %v1347 = vpop.xlane.xlu0 %1346
    %1348 = vadd.xlane.f32.xlu0 %v1253
    %v1349 = vpop.xlane.xlu0 %1348
    %1350 = vadd.xlane.f32.xlu0 %v1258
    %v1351 = vpop.xlane.xlu0 %1350
    %1352 = vadd.xlane.f32.xlu0 %v1263
    %v1353 = vpop.xlane.xlu0 %1352
    %1354 = vadd.xlane.f32.xlu0 %v1268
    %v1355 = vpop.xlane.xlu0 %1354
    %1356 = vadd.xlane.f32.xlu0 %v1273
    %v1357 = vpop.xlane.xlu0 %1356
    %1358 = vadd.xlane.f32.xlu0 %v1278
    %v1359 = vpop.xlane.xlu0 %1358
    %1360 = vadd.xlane.f32.xlu0 %v1283
    %v1361 = vpop.xlane.xlu0 %1360
    %1362 = vadd.xlane.f32.xlu0 %v1288
    %v1363 = vpop.xlane.xlu0 %1362
    %1364 = vadd.xlane.f32.xlu0 %v1293
    %v1365 = vpop.xlane.xlu0 %1364
    %1366 = vadd.xlane.f32.xlu0 %v1298
    %v1367 = vpop.xlane.xlu0 %1366
    %1368 = vadd.xlane.f32.xlu0 %v1303
    %v1369 = vpop.xlane.xlu0 %1368
    %v1370 = vmul.f32 %v1307, 0.03125
    %v1371 = vmul.f32 %v1309, 0.03125
    %v1372 = vmul.f32 %v1311, 0.03125
    %v1373 = vmul.f32 %v1313, 0.03125
    %v1374 = vmul.f32 %v1315, 0.03125
    %v1375 = vmul.f32 %v1317, 0.03125
    %v1376 = vmul.f32 %v1319, 0.03125
    %v1377 = vmul.f32 %v1321, 0.03125
    %v1378 = vmul.f32 %v1323, 0.03125
    %v1379 = vmul.f32 %v1325, 0.03125
    %v1380 = vmul.f32 %v1327, 0.03125
    %v1381 = vmul.f32 %v1329, 0.03125
    %v1382 = vmul.f32 %v1331, 0.03125
    %v1383 = vmul.f32 %v1333, 0.03125
    %v1384 = vmul.f32 %v1335, 0.03125
    %v1385 = vmul.f32 %v1337, 0.03125
    %v1386 = vmul.f32 %v1339, 0.03125
    %v1387 = vmul.f32 %v1341, 0.03125
    %v1388 = vmul.f32 %v1343, 0.03125
    %v1389 = vmul.f32 %v1345, 0.03125
    %v1390 = vmul.f32 %v1347, 0.03125
    %v1391 = vmul.f32 %v1349, 0.03125
    %v1392 = vmul.f32 %v1351, 0.03125
    %v1393 = vmul.f32 %v1353, 0.03125
    %v1394 = vmul.f32 %v1355, 0.03125
    %v1395 = vmul.f32 %v1357, 0.03125
    %v1396 = vmul.f32 %v1359, 0.03125
    %v1397 = vmul.f32 %v1361, 0.03125
    %v1398 = vmul.f32 %v1363, 0.03125
    %v1399 = vmul.f32 %v1365, 0.03125
    %v1400 = vmul.f32 %v1367, 0.03125
    %v1401 = vmul.f32 %v1369, 0.03125
    %v1402 = vmul.f32 %v1148, %v1148
    %v1403 = vmul.f32 %v1153, %v1153
    %v1404 = vmul.f32 %v1158, %v1158
    %v1405 = vmul.f32 %v1163, %v1163
    %v1406 = vmul.f32 %v1168, %v1168
    %v1407 = vmul.f32 %v1173, %v1173
    %v1408 = vmul.f32 %v1178, %v1178
    %v1409 = vmul.f32 %v1183, %v1183
    %v1410 = vmul.f32 %v1188, %v1188
    %v1411 = vmul.f32 %v1193, %v1193
    %v1412 = vmul.f32 %v1198, %v1198
    %v1413 = vmul.f32 %v1203, %v1203
    %v1414 = vmul.f32 %v1208, %v1208
    %v1415 = vmul.f32 %v1213, %v1213
    %v1416 = vmul.f32 %v1218, %v1218
    %v1417 = vmul.f32 %v1223, %v1223
    %v1418 = vmul.f32 %v1228, %v1228
    %v1419 = vmul.f32 %v1233, %v1233
    %v1420 = vmul.f32 %v1238, %v1238
    %v1421 = vmul.f32 %v1243, %v1243
    %v1422 = vmul.f32 %v1248, %v1248
    %v1423 = vmul.f32 %v1253, %v1253
    %v1424 = vmul.f32 %v1258, %v1258
    %v1425 = vmul.f32 %v1263, %v1263
    %v1426 = vmul.f32 %v1268, %v1268
    %v1427 = vmul.f32 %v1273, %v1273
    %v1428 = vmul.f32 %v1278, %v1278
    %v1429 = vmul.f32 %v1283, %v1283
    %v1430 = vmul.f32 %v1288, %v1288
    %v1431 = vmul.f32 %v1293, %v1293
    %v1432 = vmul.f32 %v1298, %v1298
    %v1433 = vmul.f32 %v1303, %v1303
    %1434 = vadd.xlane.f32.xlu0 %v1402
    %v1435 = vpop.xlane.xlu0 %1434
    %1436 = vadd.xlane.f32.xlu0 %v1403
    %v1437 = vpop.xlane.xlu0 %1436
    %1438 = vadd.xlane.f32.xlu0 %v1404
    %v1439 = vpop.xlane.xlu0 %1438
    %1440 = vadd.xlane.f32.xlu0 %v1405
    %v1441 = vpop.xlane.xlu0 %1440
    %1442 = vadd.xlane.f32.xlu0 %v1406
    %v1443 = vpop.xlane.xlu0 %1442
    %1444 = vadd.xlane.f32.xlu0 %v1407
    %v1445 = vpop.xlane.xlu0 %1444
    %1446 = vadd.xlane.f32.xlu0 %v1408
    %v1447 = vpop.xlane.xlu0 %1446
    %1448 = vadd.xlane.f32.xlu0 %v1409
    %v1449 = vpop.xlane.xlu0 %1448
    %1450 = vadd.xlane.f32.xlu0 %v1410
    %v1451 = vpop.xlane.xlu0 %1450
    %1452 = vadd.xlane.f32.xlu0 %v1411
    %v1453 = vpop.xlane.xlu0 %1452
    %1454 = vadd.xlane.f32.xlu0 %v1412
    %v1455 = vpop.xlane.xlu0 %1454
    %1456 = vadd.xlane.f32.xlu0 %v1413
    %v1457 = vpop.xlane.xlu0 %1456
    %1458 = vadd.xlane.f32.xlu0 %v1414
    %v1459 = vpop.xlane.xlu0 %1458
    %1460 = vadd.xlane.f32.xlu0 %v1415
    %v1461 = vpop.xlane.xlu0 %1460
    %1462 = vadd.xlane.f32.xlu0 %v1416
    %v1463 = vpop.xlane.xlu0 %1462
    %1464 = vadd.xlane.f32.xlu0 %v1417
    %v1465 = vpop.xlane.xlu0 %1464
    %1466 = vadd.xlane.f32.xlu0 %v1418
    %v1467 = vpop.xlane.xlu0 %1466
    %1468 = vadd.xlane.f32.xlu0 %v1419
    %v1469 = vpop.xlane.xlu0 %1468
    %1470 = vadd.xlane.f32.xlu0 %v1420
    %v1471 = vpop.xlane.xlu0 %1470
    %1472 = vadd.xlane.f32.xlu0 %v1421
    %v1473 = vpop.xlane.xlu0 %1472
    %1474 = vadd.xlane.f32.xlu0 %v1422
    %v1475 = vpop.xlane.xlu0 %1474
    %1476 = vadd.xlane.f32.xlu0 %v1423
    %v1477 = vpop.xlane.xlu0 %1476
    %1478 = vadd.xlane.f32.xlu0 %v1424
    %v1479 = vpop.xlane.xlu0 %1478
    %1480 = vadd.xlane.f32.xlu0 %v1425
    %v1481 = vpop.xlane.xlu0 %1480
    %1482 = vadd.xlane.f32.xlu0 %v1426
    %v1483 = vpop.xlane.xlu0 %1482
    %1484 = vadd.xlane.f32.xlu0 %v1427
    %v1485 = vpop.xlane.xlu0 %1484
    %1486 = vadd.xlane.f32.xlu0 %v1428
    %v1487 = vpop.xlane.xlu0 %1486
    %1488 = vadd.xlane.f32.xlu0 %v1429
    %v1489 = vpop.xlane.xlu0 %1488
    %1490 = vadd.xlane.f32.xlu0 %v1430
    %v1491 = vpop.xlane.xlu0 %1490
    %1492 = vadd.xlane.f32.xlu0 %v1431
    %v1493 = vpop.xlane.xlu0 %1492
    %1494 = vadd.xlane.f32.xlu0 %v1432
    %v1495 = vpop.xlane.xlu0 %1494
    %1496 = vadd.xlane.f32.xlu0 %v1433
    %v1497 = vpop.xlane.xlu0 %1496
    %v1498 = vmul.f32 %v1435, 0.03125
    %v1499 = vmul.f32 %v1437, 0.03125
    %v1500 = vmul.f32 %v1439, 0.03125
    %v1501 = vmul.f32 %v1441, 0.03125
    %v1502 = vmul.f32 %v1443, 0.03125
    %v1503 = vmul.f32 %v1445, 0.03125
    %v1504 = vmul.f32 %v1447, 0.03125
    %v1505 = vmul.f32 %v1449, 0.03125
    %v1506 = vmul.f32 %v1451, 0.03125
    %v1507 = vmul.f32 %v1453, 0.03125
    %v1508 = vmul.f32 %v1455, 0.03125
    %v1509 = vmul.f32 %v1457, 0.03125
    %v1510 = vmul.f32 %v1459, 0.03125
    %v1511 = vmul.f32 %v1461, 0.03125
    %v1512 = vmul.f32 %v1463, 0.03125
    %v1513 = vmul.f32 %v1465, 0.03125
    %v1514 = vmul.f32 %v1467, 0.03125
    %v1515 = vmul.f32 %v1469, 0.03125
    %v1516 = vmul.f32 %v1471, 0.03125
    %v1517 = vmul.f32 %v1473, 0.03125
    %v1518 = vmul.f32 %v1475, 0.03125
    %v1519 = vmul.f32 %v1477, 0.03125
    %v1520 = vmul.f32 %v1479, 0.03125
    %v1521 = vmul.f32 %v1481, 0.03125
    %v1522 = vmul.f32 %v1483, 0.03125
    %v1523 = vmul.f32 %v1485, 0.03125
    %v1524 = vmul.f32 %v1487, 0.03125
    %v1525 = vmul.f32 %v1489, 0.03125
    %v1526 = vmul.f32 %v1491, 0.03125
    %v1527 = vmul.f32 %v1493, 0.03125
    %v1528 = vmul.f32 %v1495, 0.03125
    %v1529 = vmul.f32 %v1497, 0.03125
    %v1530 = vmul.f32 %v1370, %v1370
    %v1531 = vmul.f32 %v1371, %v1371
    %v1532 = vmul.f32 %v1372, %v1372
    %v1533 = vmul.f32 %v1373, %v1373
    %v1534 = vmul.f32 %v1374, %v1374
    %v1535 = vmul.f32 %v1375, %v1375
    %v1536 = vmul.f32 %v1376, %v1376
    %v1537 = vmul.f32 %v1377, %v1377
    %v1538 = vmul.f32 %v1378, %v1378
    %v1539 = vmul.f32 %v1379, %v1379
    %v1540 = vmul.f32 %v1380, %v1380
    %v1541 = vmul.f32 %v1381, %v1381
    %v1542 = vmul.f32 %v1382, %v1382
    %v1543 = vmul.f32 %v1383, %v1383
    %v1544 = vmul.f32 %v1384, %v1384
    %v1545 = vmul.f32 %v1385, %v1385
    %v1546 = vmul.f32 %v1386, %v1386
    %v1547 = vmul.f32 %v1387, %v1387
    %v1548 = vmul.f32 %v1388, %v1388
    %v1549 = vmul.f32 %v1389, %v1389
    %v1550 = vmul.f32 %v1390, %v1390
    %v1551 = vmul.f32 %v1391, %v1391
    %v1552 = vmul.f32 %v1392, %v1392
    %v1553 = vmul.f32 %v1393, %v1393
    %v1554 = vmul.f32 %v1394, %v1394
    %v1555 = vmul.f32 %v1395, %v1395
    %v1556 = vmul.f32 %v1396, %v1396
    %v1557 = vmul.f32 %v1397, %v1397
    %v1558 = vmul.f32 %v1398, %v1398
    %v1559 = vmul.f32 %v1399, %v1399
    %v1560 = vmul.f32 %v1400, %v1400
    %v1561 = vmul.f32 %v1401, %v1401
    %v1562 = vsub.f32 %v1498, %v1530
    %v1563 = vsub.f32 %v1499, %v1531
    %v1564 = vsub.f32 %v1500, %v1532
    %v1565 = vsub.f32 %v1501, %v1533
    %v1566 = vsub.f32 %v1502, %v1534
    %v1567 = vsub.f32 %v1503, %v1535
    %v1568 = vsub.f32 %v1504, %v1536
    %v1569 = vsub.f32 %v1505, %v1537
    %v1570 = vsub.f32 %v1506, %v1538
    %v1571 = vsub.f32 %v1507, %v1539
    %v1572 = vsub.f32 %v1508, %v1540
    %v1573 = vsub.f32 %v1509, %v1541
    %v1574 = vsub.f32 %v1510, %v1542
    %v1575 = vsub.f32 %v1511, %v1543
    %v1576 = vsub.f32 %v1512, %v1544
    %v1577 = vsub.f32 %v1513, %v1545
    %v1578 = vsub.f32 %v1514, %v1546
    %v1579 = vsub.f32 %v1515, %v1547
    %v1580 = vsub.f32 %v1516, %v1548
    %v1581 = vsub.f32 %v1517, %v1549
    %v1582 = vsub.f32 %v1518, %v1550
    %v1583 = vsub.f32 %v1519, %v1551
    %v1584 = vsub.f32 %v1520, %v1552
    %v1585 = vsub.f32 %v1521, %v1553
    %v1586 = vsub.f32 %v1522, %v1554
    %v1587 = vsub.f32 %v1523, %v1555
    %v1588 = vsub.f32 %v1524, %v1556
    %v1589 = vsub.f32 %v1525, %v1557
    %v1590 = vsub.f32 %v1526, %v1558
    %v1591 = vsub.f32 %v1527, %v1559
    %v1592 = vsub.f32 %v1528, %v1560
    %v1593 = vsub.f32 %v1529, %v1561
    %v1594 = vmax.f32 %v1562, 0.0
    %v1595 = vmax.f32 %v1563, 0.0
    %v1596 = vmax.f32 %v1564, 0.0
    %v1597 = vmax.f32 %v1565, 0.0
    %v1598 = vmax.f32 %v1566, 0.0
    %v1599 = vmax.f32 %v1567, 0.0
    %v1600 = vmax.f32 %v1568, 0.0
    %v1601 = vmax.f32 %v1569, 0.0
    %v1602 = vmax.f32 %v1570, 0.0
    %v1603 = vmax.f32 %v1571, 0.0
    %v1604 = vmax.f32 %v1572, 0.0
    %v1605 = vmax.f32 %v1573, 0.0
    %v1606 = vmax.f32 %v1574, 0.0
    %v1607 = vmax.f32 %v1575, 0.0
    %v1608 = vmax.f32 %v1576, 0.0
    %v1609 = vmax.f32 %v1577, 0.0
    %v1610 = vmax.f32 %v1578, 0.0
    %v1611 = vmax.f32 %v1579, 0.0
    %v1612 = vmax.f32 %v1580, 0.0
    %v1613 = vmax.f32 %v1581, 0.0
    %v1614 = vmax.f32 %v1582, 0.0
    %v1615 = vmax.f32 %v1583, 0.0
    %v1616 = vmax.f32 %v1584, 0.0
    %v1617 = vmax.f32 %v1585, 0.0
    %v1618 = vmax.f32 %v1586, 0.0
    %v1619 = vmax.f32 %v1587, 0.0
    %v1620 = vmax.f32 %v1588, 0.0
    %v1621 = vmax.f32 %v1589, 0.0
    %v1622 = vmax.f32 %v1590, 0.0
    %v1623 = vmax.f32 %v1591, 0.0
    %v1624 = vmax.f32 %v1592, 0.0
    %v1625 = vmax.f32 %v1593, 0.0
    %v1626 = vsub.f32 %v1148, %v1370
    %v1627 = vsub.f32 %v1153, %v1371
    %v1628 = vsub.f32 %v1158, %v1372
    %v1629 = vsub.f32 %v1163, %v1373
    %v1630 = vsub.f32 %v1168, %v1374
    %v1631 = vsub.f32 %v1173, %v1375
    %v1632 = vsub.f32 %v1178, %v1376
    %v1633 = vsub.f32 %v1183, %v1377
    %v1634 = vsub.f32 %v1188, %v1378
    %v1635 = vsub.f32 %v1193, %v1379
    %v1636 = vsub.f32 %v1198, %v1380
    %v1637 = vsub.f32 %v1203, %v1381
    %v1638 = vsub.f32 %v1208, %v1382
    %v1639 = vsub.f32 %v1213, %v1383
    %v1640 = vsub.f32 %v1218, %v1384
    %v1641 = vsub.f32 %v1223, %v1385
    %v1642 = vsub.f32 %v1228, %v1386
    %v1643 = vsub.f32 %v1233, %v1387
    %v1644 = vsub.f32 %v1238, %v1388
    %v1645 = vsub.f32 %v1243, %v1389
    %v1646 = vsub.f32 %v1248, %v1390
    %v1647 = vsub.f32 %v1253, %v1391
    %v1648 = vsub.f32 %v1258, %v1392
    %v1649 = vsub.f32 %v1263, %v1393
    %v1650 = vsub.f32 %v1268, %v1394
    %v1651 = vsub.f32 %v1273, %v1395
    %v1652 = vsub.f32 %v1278, %v1396
    %v1653 = vsub.f32 %v1283, %v1397
    %v1654 = vsub.f32 %v1288, %v1398
    %v1655 = vsub.f32 %v1293, %v1399
    %v1656 = vsub.f32 %v1298, %v1400
    %v1657 = vsub.f32 %v1303, %v1401
    %v1658 = vadd.f32 %v1594, 1e-05
    %v1659 = vadd.f32 %v1595, 1e-05
    %v1660 = vadd.f32 %v1596, 1e-05
    %v1661 = vadd.f32 %v1597, 1e-05
    %v1662 = vadd.f32 %v1598, 1e-05
    %v1663 = vadd.f32 %v1599, 1e-05
    %v1664 = vadd.f32 %v1600, 1e-05
    %v1665 = vadd.f32 %v1601, 1e-05
    %v1666 = vadd.f32 %v1602, 1e-05
    %v1667 = vadd.f32 %v1603, 1e-05
    %v1668 = vadd.f32 %v1604, 1e-05
    %v1669 = vadd.f32 %v1605, 1e-05
    %v1670 = vadd.f32 %v1606, 1e-05
    %v1671 = vadd.f32 %v1607, 1e-05
    %v1672 = vadd.f32 %v1608, 1e-05
    %v1673 = vadd.f32 %v1609, 1e-05
    %v1674 = vadd.f32 %v1610, 1e-05
    %v1675 = vadd.f32 %v1611, 1e-05
    %v1676 = vadd.f32 %v1612, 1e-05
    %v1677 = vadd.f32 %v1613, 1e-05
    %v1678 = vadd.f32 %v1614, 1e-05
    %v1679 = vadd.f32 %v1615, 1e-05
    %v1680 = vadd.f32 %v1616, 1e-05
    %v1681 = vadd.f32 %v1617, 1e-05
    %v1682 = vadd.f32 %v1618, 1e-05
    %v1683 = vadd.f32 %v1619, 1e-05
    %v1684 = vadd.f32 %v1620, 1e-05
    %v1685 = vadd.f32 %v1621, 1e-05
    %v1686 = vadd.f32 %v1622, 1e-05
    %v1687 = vadd.f32 %v1623, 1e-05
    %v1688 = vadd.f32 %v1624, 1e-05
    %v1689 = vadd.f32 %v1625, 1e-05
    %v1690 = vrsqrt.pop %v1658
    %v1691 = vrsqrt.pop %v1659
    %v1692 = vrsqrt.pop %v1660
    %v1693 = vrsqrt.pop %v1661
    %v1694 = vrsqrt.pop %v1662
    %v1695 = vrsqrt.pop %v1663
    %v1696 = vrsqrt.pop %v1664
    %v1697 = vrsqrt.pop %v1665
    %v1698 = vrsqrt.pop %v1666
    %v1699 = vrsqrt.pop %v1667
    %v1700 = vrsqrt.pop %v1668
    %v1701 = vrsqrt.pop %v1669
    %v1702 = vrsqrt.pop %v1670
    %v1703 = vrsqrt.pop %v1671
    %v1704 = vrsqrt.pop %v1672
    %v1705 = vrsqrt.pop %v1673
    %v1706 = vrsqrt.pop %v1674
    %v1707 = vrsqrt.pop %v1675
    %v1708 = vrsqrt.pop %v1676
    %v1709 = vrsqrt.pop %v1677
    %v1710 = vrsqrt.pop %v1678
    %v1711 = vrsqrt.pop %v1679
    %v1712 = vrsqrt.pop %v1680
    %v1713 = vrsqrt.pop %v1681
    %v1714 = vrsqrt.pop %v1682
    %v1715 = vrsqrt.pop %v1683
    %v1716 = vrsqrt.pop %v1684
    %v1717 = vrsqrt.pop %v1685
    %v1718 = vrsqrt.pop %v1686
    %v1719 = vrsqrt.pop %v1687
    %v1720 = vrsqrt.pop %v1688
    %v1721 = vrsqrt.pop %v1689
    %v1722 = vmul.f32 %v1626, %v1690
    %v1723 = vmul.f32 %v1627, %v1691
    %v1724 = vmul.f32 %v1628, %v1692
    %v1725 = vmul.f32 %v1629, %v1693
    %v1726 = vmul.f32 %v1630, %v1694
    %v1727 = vmul.f32 %v1631, %v1695
    %v1728 = vmul.f32 %v1632, %v1696
    %v1729 = vmul.f32 %v1633, %v1697
    %v1730 = vmul.f32 %v1634, %v1698
    %v1731 = vmul.f32 %v1635, %v1699
    %v1732 = vmul.f32 %v1636, %v1700
    %v1733 = vmul.f32 %v1637, %v1701
    %v1734 = vmul.f32 %v1638, %v1702
    %v1735 = vmul.f32 %v1639, %v1703
    %v1736 = vmul.f32 %v1640, %v1704
    %v1737 = vmul.f32 %v1641, %v1705
    %v1738 = vmul.f32 %v1642, %v1706
    %v1739 = vmul.f32 %v1643, %v1707
    %v1740 = vmul.f32 %v1644, %v1708
    %v1741 = vmul.f32 %v1645, %v1709
    %v1742 = vmul.f32 %v1646, %v1710
    %v1743 = vmul.f32 %v1647, %v1711
    %v1744 = vmul.f32 %v1648, %v1712
    %v1745 = vmul.f32 %v1649, %v1713
    %v1746 = vmul.f32 %v1650, %v1714
    %v1747 = vmul.f32 %v1651, %v1715
    %v1748 = vmul.f32 %v1652, %v1716
    %v1749 = vmul.f32 %v1653, %v1717
    %v1750 = vmul.f32 %v1654, %v1718
    %v1751 = vmul.f32 %v1655, %v1719
    %v1752 = vmul.f32 %v1656, %v1720
    %v1753 = vmul.f32 %v1657, %v1721
    %v1754 = vlaneseq
    %v1755 = vshrl.u32 %v1754, 7
    %v1756 = vsub.s32 0, %v1755
    %v1757 = vrot.slane %v79, %v1756
    %v1758 = vmul.f32 %v1722, %v1757
    %v1759 = vmul.f32 %v1723, %v1757
    %v1760 = vmul.f32 %v1724, %v1757
    %v1761 = vmul.f32 %v1725, %v1757
    %v1762 = vmul.f32 %v1726, %v1757
    %v1763 = vmul.f32 %v1727, %v1757
    %v1764 = vmul.f32 %v1728, %v1757
    %v1765 = vmul.f32 %v1729, %v1757
    %v1766 = vmul.f32 %v1730, %v1757
    %v1767 = vmul.f32 %v1731, %v1757
    %v1768 = vmul.f32 %v1732, %v1757
    %v1769 = vmul.f32 %v1733, %v1757
    %v1770 = vmul.f32 %v1734, %v1757
    %v1771 = vmul.f32 %v1735, %v1757
    %v1772 = vmul.f32 %v1736, %v1757
    %v1773 = vmul.f32 %v1737, %v1757
    %v1774 = vmul.f32 %v1738, %v1757
    %v1775 = vmul.f32 %v1739, %v1757
    %v1776 = vmul.f32 %v1740, %v1757
    %v1777 = vmul.f32 %v1741, %v1757
    %v1778 = vmul.f32 %v1742, %v1757
    %v1779 = vmul.f32 %v1743, %v1757
    %v1780 = vmul.f32 %v1744, %v1757
    %v1781 = vmul.f32 %v1745, %v1757
    %v1782 = vmul.f32 %v1746, %v1757
    %v1783 = vmul.f32 %v1747, %v1757
    %v1784 = vmul.f32 %v1748, %v1757
    %v1785 = vmul.f32 %v1749, %v1757
    %v1786 = vmul.f32 %v1750, %v1757
    %v1787 = vmul.f32 %v1751, %v1757
    %v1788 = vmul.f32 %v1752, %v1757
    %v1789 = vmul.f32 %v1753, %v1757
    %v1790 = vlaneseq
    %v1791 = vshrl.u32 %v1790, 7
    %v1792 = vsub.s32 0, %v1791
    %v1793 = vrot.slane %v80, %v1792
    %v1794 = vadd.f32 %v1758, %v1793
    %v1795 = vadd.f32 %v1759, %v1793
    %v1796 = vadd.f32 %v1760, %v1793
    %v1797 = vadd.f32 %v1761, %v1793
    %v1798 = vadd.f32 %v1762, %v1793
    %v1799 = vadd.f32 %v1763, %v1793
    %v1800 = vadd.f32 %v1764, %v1793
    %v1801 = vadd.f32 %v1765, %v1793
    %v1802 = vadd.f32 %v1766, %v1793
    %v1803 = vadd.f32 %v1767, %v1793
    %v1804 = vadd.f32 %v1768, %v1793
    %v1805 = vadd.f32 %v1769, %v1793
    %v1806 = vadd.f32 %v1770, %v1793
    %v1807 = vadd.f32 %v1771, %v1793
    %v1808 = vadd.f32 %v1772, %v1793
    %v1809 = vadd.f32 %v1773, %v1793
    %v1810 = vadd.f32 %v1774, %v1793
    %v1811 = vadd.f32 %v1775, %v1793
    %v1812 = vadd.f32 %v1776, %v1793
    %v1813 = vadd.f32 %v1777, %v1793
    %v1814 = vadd.f32 %v1778, %v1793
    %v1815 = vadd.f32 %v1779, %v1793
    %v1816 = vadd.f32 %v1780, %v1793
    %v1817 = vadd.f32 %v1781, %v1793
    %v1818 = vadd.f32 %v1782, %v1793
    %v1819 = vadd.f32 %v1783, %v1793
    %v1820 = vadd.f32 %v1784, %v1793
    %v1821 = vadd.f32 %v1785, %v1793
    %v1822 = vadd.f32 %v1786, %v1793
    %v1823 = vadd.f32 %v1787, %v1793
    %v1824 = vadd.f32 %v1788, %v1793
    %v1825 = vadd.f32 %v1789, %v1793
    %v1826 = vadd.f32 %v1794, %v477
    %v1827 = vadd.f32 %v1795, %v478
    %v1828 = vadd.f32 %v1796, %v479
    %v1829 = vadd.f32 %v1797, %v480
    %v1830 = vadd.f32 %v1798, %v481
    %v1831 = vadd.f32 %v1799, %v482
    %v1832 = vadd.f32 %v1800, %v483
    %v1833 = vadd.f32 %v1801, %v484
    %v1834 = vadd.f32 %v1802, %v485
    %v1835 = vadd.f32 %v1803, %v486
    %v1836 = vadd.f32 %v1804, %v487
    %v1837 = vadd.f32 %v1805, %v488
    %v1838 = vadd.f32 %v1806, %v489
    %v1839 = vadd.f32 %v1807, %v490
    %v1840 = vadd.f32 %v1808, %v491
    %v1841 = vadd.f32 %v1809, %v492
    %v1842 = vadd.f32 %v1810, %v493
    %v1843 = vadd.f32 %v1811, %v494
    %v1844 = vadd.f32 %v1812, %v495
    %v1845 = vadd.f32 %v1813, %v496
    %v1846 = vadd.f32 %v1814, %v497
    %v1847 = vadd.f32 %v1815, %v498
    %v1848 = vadd.f32 %v1816, %v499
    %v1849 = vadd.f32 %v1817, %v500
    %v1850 = vadd.f32 %v1818, %v501
    %v1851 = vadd.f32 %v1819, %v502
    %v1852 = vadd.f32 %v1820, %v503
    %v1853 = vadd.f32 %v1821, %v504
    %v1854 = vadd.f32 %v1822, %v505
    %v1855 = vadd.f32 %v1823, %v506
    %v1856 = vadd.f32 %v1824, %v507
    %v1857 = vadd.f32 %v1825, %v508
    %v1858 = vmax.f32 %v1826, 0.0
    %v1859 = vmax.f32 %v1827, 0.0
    %v1860 = vmax.f32 %v1828, 0.0
    %v1861 = vmax.f32 %v1829, 0.0
    %v1862 = vmax.f32 %v1830, 0.0
    %v1863 = vmax.f32 %v1831, 0.0
    %v1864 = vmax.f32 %v1832, 0.0
    %v1865 = vmax.f32 %v1833, 0.0
    %v1866 = vmax.f32 %v1834, 0.0
    %v1867 = vmax.f32 %v1835, 0.0
    %v1868 = vmax.f32 %v1836, 0.0
    %v1869 = vmax.f32 %v1837, 0.0
    %v1870 = vmax.f32 %v1838, 0.0
    %v1871 = vmax.f32 %v1839, 0.0
    %v1872 = vmax.f32 %v1840, 0.0
    %v1873 = vmax.f32 %v1841, 0.0
    %v1874 = vmax.f32 %v1842, 0.0
    %v1875 = vmax.f32 %v1843, 0.0
    %v1876 = vmax.f32 %v1844, 0.0
    %v1877 = vmax.f32 %v1845, 0.0
    %v1878 = vmax.f32 %v1846, 0.0
    %v1879 = vmax.f32 %v1847, 0.0
    %v1880 = vmax.f32 %v1848, 0.0
    %v1881 = vmax.f32 %v1849, 0.0
    %v1882 = vmax.f32 %v1850, 0.0
    %v1883 = vmax.f32 %v1851, 0.0
    %v1884 = vmax.f32 %v1852, 0.0
    %v1885 = vmax.f32 %v1853, 0.0
    %v1886 = vmax.f32 %v1854, 0.0
    %v1887 = vmax.f32 %v1855, 0.0
    %v1888 = vmax.f32 %v1856, 0.0
    %v1889 = vmax.f32 %v1857, 0.0
    %v1890 = vlaneseq
    %v1891 = vshrl.u32 %v1890, 7
    %v1892 = vsub.s32 0, %v1891
    %v1893 = vrot.slane %v82, %v1892
    %v1894 = vmul.f32 %v1858, %v1893
    %v1895 = vmul.f32 %v1859, %v1893
    %v1896 = vmul.f32 %v1860, %v1893
    %v1897 = vmul.f32 %v1861, %v1893
    %v1898 = vmul.f32 %v1862, %v1893
    %v1899 = vmul.f32 %v1863, %v1893
    %v1900 = vmul.f32 %v1864, %v1893
    %v1901 = vmul.f32 %v1865, %v1893
    %v1902 = vmul.f32 %v1866, %v1893
    %v1903 = vmul.f32 %v1867, %v1893
    %v1904 = vmul.f32 %v1868, %v1893
    %v1905 = vmul.f32 %v1869, %v1893
    %v1906 = vmul.f32 %v1870, %v1893
    %v1907 = vmul.f32 %v1871, %v1893
    %v1908 = vmul.f32 %v1872, %v1893
    %v1909 = vmul.f32 %v1873, %v1893
    %v1910 = vmul.f32 %v1874, %v1893
    %v1911 = vmul.f32 %v1875, %v1893
    %v1912 = vmul.f32 %v1876, %v1893
    %v1913 = vmul.f32 %v1877, %v1893
    %v1914 = vmul.f32 %v1878, %v1893
    %v1915 = vmul.f32 %v1879, %v1893
    %v1916 = vmul.f32 %v1880, %v1893
    %v1917 = vmul.f32 %v1881, %v1893
    %v1918 = vmul.f32 %v1882, %v1893
    %v1919 = vmul.f32 %v1883, %v1893
    %v1920 = vmul.f32 %v1884, %v1893
    %v1921 = vmul.f32 %v1885, %v1893
    %v1922 = vmul.f32 %v1886, %v1893
    %v1923 = vmul.f32 %v1887, %v1893
    %v1924 = vmul.f32 %v1888, %v1893
    %v1925 = vmul.f32 %v1889, %v1893
    %1926 = vadd.xlane.f32.xlu0 %v1894
    %v1927 = vpop.xlane.xlu0 %1926
    %1928 = vadd.xlane.f32.xlu0 %v1895
    %v1929 = vpop.xlane.xlu0 %1928
    %1930 = vadd.xlane.f32.xlu0 %v1896
    %v1931 = vpop.xlane.xlu0 %1930
    %1932 = vadd.xlane.f32.xlu0 %v1897
    %v1933 = vpop.xlane.xlu0 %1932
    %1934 = vadd.xlane.f32.xlu0 %v1898
    %v1935 = vpop.xlane.xlu0 %1934
    %1936 = vadd.xlane.f32.xlu0 %v1899
    %v1937 = vpop.xlane.xlu0 %1936
    %1938 = vadd.xlane.f32.xlu0 %v1900
    %v1939 = vpop.xlane.xlu0 %1938
    %1940 = vadd.xlane.f32.xlu0 %v1901
    %v1941 = vpop.xlane.xlu0 %1940
    %1942 = vadd.xlane.f32.xlu0 %v1902
    %v1943 = vpop.xlane.xlu0 %1942
    %1944 = vadd.xlane.f32.xlu0 %v1903
    %v1945 = vpop.xlane.xlu0 %1944
    %1946 = vadd.xlane.f32.xlu0 %v1904
    %v1947 = vpop.xlane.xlu0 %1946
    %1948 = vadd.xlane.f32.xlu0 %v1905
    %v1949 = vpop.xlane.xlu0 %1948
    %1950 = vadd.xlane.f32.xlu0 %v1906
    %v1951 = vpop.xlane.xlu0 %1950
    %1952 = vadd.xlane.f32.xlu0 %v1907
    %v1953 = vpop.xlane.xlu0 %1952
    %1954 = vadd.xlane.f32.xlu0 %v1908
    %v1955 = vpop.xlane.xlu0 %1954
    %1956 = vadd.xlane.f32.xlu0 %v1909
    %v1957 = vpop.xlane.xlu0 %1956
    %1958 = vadd.xlane.f32.xlu0 %v1910
    %v1959 = vpop.xlane.xlu0 %1958
    %1960 = vadd.xlane.f32.xlu0 %v1911
    %v1961 = vpop.xlane.xlu0 %1960
    %1962 = vadd.xlane.f32.xlu0 %v1912
    %v1963 = vpop.xlane.xlu0 %1962
    %1964 = vadd.xlane.f32.xlu0 %v1913
    %v1965 = vpop.xlane.xlu0 %1964
    %1966 = vadd.xlane.f32.xlu0 %v1914
    %v1967 = vpop.xlane.xlu0 %1966
    %1968 = vadd.xlane.f32.xlu0 %v1915
    %v1969 = vpop.xlane.xlu0 %1968
    %1970 = vadd.xlane.f32.xlu0 %v1916
    %v1971 = vpop.xlane.xlu0 %1970
    %1972 = vadd.xlane.f32.xlu0 %v1917
    %v1973 = vpop.xlane.xlu0 %1972
    %1974 = vadd.xlane.f32.xlu0 %v1918
    %v1975 = vpop.xlane.xlu0 %1974
    %1976 = vadd.xlane.f32.xlu0 %v1919
    %v1977 = vpop.xlane.xlu0 %1976
    %1978 = vadd.xlane.f32.xlu0 %v1920
    %v1979 = vpop.xlane.xlu0 %1978
    %1980 = vadd.xlane.f32.xlu0 %v1921
    %v1981 = vpop.xlane.xlu0 %1980
    %1982 = vadd.xlane.f32.xlu0 %v1922
    %v1983 = vpop.xlane.xlu0 %1982
    %1984 = vadd.xlane.f32.xlu0 %v1923
    %v1985 = vpop.xlane.xlu0 %1984
    %1986 = vadd.xlane.f32.xlu0 %v1924
    %v1987 = vpop.xlane.xlu0 %1986
    %1988 = vadd.xlane.f32.xlu0 %v1925
    %v1989 = vpop.xlane.xlu0 %1988
    %v1990 = vstv %s83
    %v1991 = vadd.f32 %v1927, %v1990
    %v1992 = vadd.f32 %v1929, %v1990
    %v1993 = vadd.f32 %v1931, %v1990
    %v1994 = vadd.f32 %v1933, %v1990
    %v1995 = vadd.f32 %v1935, %v1990
    %v1996 = vadd.f32 %v1937, %v1990
    %v1997 = vadd.f32 %v1939, %v1990
    %v1998 = vadd.f32 %v1941, %v1990
    %v1999 = vadd.f32 %v1943, %v1990
    %v2000 = vadd.f32 %v1945, %v1990
    %v2001 = vadd.f32 %v1947, %v1990
    %v2002 = vadd.f32 %v1949, %v1990
    %v2003 = vadd.f32 %v1951, %v1990
    %v2004 = vadd.f32 %v1953, %v1990
    %v2005 = vadd.f32 %v1955, %v1990
    %v2006 = vadd.f32 %v1957, %v1990
    %v2007 = vadd.f32 %v1959, %v1990
    %v2008 = vadd.f32 %v1961, %v1990
    %v2009 = vadd.f32 %v1963, %v1990
    %v2010 = vadd.f32 %v1965, %v1990
    %v2011 = vadd.f32 %v1967, %v1990
    %v2012 = vadd.f32 %v1969, %v1990
    %v2013 = vadd.f32 %v1971, %v1990
    %v2014 = vadd.f32 %v1973, %v1990
    %v2015 = vadd.f32 %v1975, %v1990
    %v2016 = vadd.f32 %v1977, %v1990
    %v2017 = vadd.f32 %v1979, %v1990
    %v2018 = vadd.f32 %v1981, %v1990
    %v2019 = vadd.f32 %v1983, %v1990
    %v2020 = vadd.f32 %v1985, %v1990
    %v2021 = vadd.f32 %v1987, %v1990
    %v2022 = vadd.f32 %v1989, %v1990
    %v2055 = vlaneseq
    %v2056 = vshrl.u32 %v2055, 7
    %v2057 = vsub.s32 0, %v2056
    %v2058 = vrot.slane %v1991, %v2057
    %v2059 = vlaneseq
    %v2060 = vshrl.u32 %v2059, 7
    %v2061 = vsub.s32 1, %v2060
    %v2062 = vrot.slane %v1991, %v2061
    %v2063 = vlaneseq
    %v2064 = vshrl.u32 %v2063, 7
    %v2065 = vsub.s32 2, %v2064
    %v2066 = vrot.slane %v1991, %v2065
    %v2067 = vlaneseq
    %v2068 = vshrl.u32 %v2067, 7
    %v2069 = vsub.s32 3, %v2068
    %v2070 = vrot.slane %v1991, %v2069
    %v2071 = vlaneseq
    %v2072 = vshrl.u32 %v2071, 7
    %v2073 = vsub.s32 4, %v2072
    %v2074 = vrot.slane %v1991, %v2073
    %v2075 = vlaneseq
    %v2076 = vshrl.u32 %v2075, 7
    %v2077 = vsub.s32 5, %v2076
    %v2078 = vrot.slane %v1991, %v2077
    %v2079 = vlaneseq
    %v2080 = vshrl.u32 %v2079, 7
    %v2081 = vsub.s32 6, %v2080
    %v2082 = vrot.slane %v1991, %v2081
    %v2083 = vlaneseq
    %v2084 = vshrl.u32 %v2083, 7
    %v2085 = vsub.s32 7, %v2084
    %v2086 = vrot.slane %v1991, %v2085
    %v2087 = vlaneseq
    %v2088 = vshrl.u32 %v2087, 7
    %v2089 = vsub.s32 0, %v2088
    %v2090 = vrot.slane %v1992, %v2089
    %v2091 = vlaneseq
    %v2092 = vshrl.u32 %v2091, 7
    %v2093 = vsub.s32 1, %v2092
    %v2094 = vrot.slane %v1992, %v2093
    %v2095 = vlaneseq
    %v2096 = vshrl.u32 %v2095, 7
    %v2097 = vsub.s32 2, %v2096
    %v2098 = vrot.slane %v1992, %v2097
    %v2099 = vlaneseq
    %v2100 = vshrl.u32 %v2099, 7
    %v2101 = vsub.s32 3, %v2100
    %v2102 = vrot.slane %v1992, %v2101
    %v2103 = vlaneseq
    %v2104 = vshrl.u32 %v2103, 7
    %v2105 = vsub.s32 4, %v2104
    %v2106 = vrot.slane %v1992, %v2105
    %v2107 = vlaneseq
    %v2108 = vshrl.u32 %v2107, 7
    %v2109 = vsub.s32 5, %v2108
    %v2110 = vrot.slane %v1992, %v2109
    %v2111 = vlaneseq
    %v2112 = vshrl.u32 %v2111, 7
    %v2113 = vsub.s32 6, %v2112
    %v2114 = vrot.slane %v1992, %v2113
    %v2115 = vlaneseq
    %v2116 = vshrl.u32 %v2115, 7
    %v2117 = vsub.s32 7, %v2116
    %v2118 = vrot.slane %v1992, %v2117
    %v2119 = vlaneseq
    %v2120 = vshrl.u32 %v2119, 7
    %v2121 = vsub.s32 0, %v2120
    %v2122 = vrot.slane %v1993, %v2121
    %v2123 = vlaneseq
    %v2124 = vshrl.u32 %v2123, 7
    %v2125 = vsub.s32 1, %v2124
    %v2126 = vrot.slane %v1993, %v2125
    %v2127 = vlaneseq
    %v2128 = vshrl.u32 %v2127, 7
    %v2129 = vsub.s32 2, %v2128
    %v2130 = vrot.slane %v1993, %v2129
    %v2131 = vlaneseq
    %v2132 = vshrl.u32 %v2131, 7
    %v2133 = vsub.s32 3, %v2132
    %v2134 = vrot.slane %v1993, %v2133
    %v2135 = vlaneseq
    %v2136 = vshrl.u32 %v2135, 7
    %v2137 = vsub.s32 4, %v2136
    %v2138 = vrot.slane %v1993, %v2137
    %v2139 = vlaneseq
    %v2140 = vshrl.u32 %v2139, 7
    %v2141 = vsub.s32 5, %v2140
    %v2142 = vrot.slane %v1993, %v2141
    %v2143 = vlaneseq
    %v2144 = vshrl.u32 %v2143, 7
    %v2145 = vsub.s32 6, %v2144
    %v2146 = vrot.slane %v1993, %v2145
    %v2147 = vlaneseq
    %v2148 = vshrl.u32 %v2147, 7
    %v2149 = vsub.s32 7, %v2148
    %v2150 = vrot.slane %v1993, %v2149
    %v2151 = vlaneseq
    %v2152 = vshrl.u32 %v2151, 7
    %v2153 = vsub.s32 0, %v2152
    %v2154 = vrot.slane %v1994, %v2153
    %v2155 = vlaneseq
    %v2156 = vshrl.u32 %v2155, 7
    %v2157 = vsub.s32 1, %v2156
    %v2158 = vrot.slane %v1994, %v2157
    %v2159 = vlaneseq
    %v2160 = vshrl.u32 %v2159, 7
    %v2161 = vsub.s32 2, %v2160
    %v2162 = vrot.slane %v1994, %v2161
    %v2163 = vlaneseq
    %v2164 = vshrl.u32 %v2163, 7
    %v2165 = vsub.s32 3, %v2164
    %v2166 = vrot.slane %v1994, %v2165
    %v2167 = vlaneseq
    %v2168 = vshrl.u32 %v2167, 7
    %v2169 = vsub.s32 4, %v2168
    %v2170 = vrot.slane %v1994, %v2169
    %v2171 = vlaneseq
    %v2172 = vshrl.u32 %v2171, 7
    %v2173 = vsub.s32 5, %v2172
    %v2174 = vrot.slane %v1994, %v2173
    %v2175 = vlaneseq
    %v2176 = vshrl.u32 %v2175, 7
    %v2177 = vsub.s32 6, %v2176
    %v2178 = vrot.slane %v1994, %v2177
    %v2179 = vlaneseq
    %v2180 = vshrl.u32 %v2179, 7
    %v2181 = vsub.s32 7, %v2180
    %v2182 = vrot.slane %v1994, %v2181
    %v2183 = vlaneseq
    %v2184 = vshrl.u32 %v2183, 7
    %v2185 = vsub.s32 0, %v2184
    %v2186 = vrot.slane %v1995, %v2185
    %v2187 = vlaneseq
    %v2188 = vshrl.u32 %v2187, 7
    %v2189 = vsub.s32 1, %v2188
    %v2190 = vrot.slane %v1995, %v2189
    %v2191 = vlaneseq
    %v2192 = vshrl.u32 %v2191, 7
    %v2193 = vsub.s32 2, %v2192
    %v2194 = vrot.slane %v1995, %v2193
    %v2195 = vlaneseq
    %v2196 = vshrl.u32 %v2195, 7
    %v2197 = vsub.s32 3, %v2196
    %v2198 = vrot.slane %v1995, %v2197
    %v2199 = vlaneseq
    %v2200 = vshrl.u32 %v2199, 7
    %v2201 = vsub.s32 4, %v2200
    %v2202 = vrot.slane %v1995, %v2201
    %v2203 = vlaneseq
    %v2204 = vshrl.u32 %v2203, 7
    %v2205 = vsub.s32 5, %v2204
    %v2206 = vrot.slane %v1995, %v2205
    %v2207 = vlaneseq
    %v2208 = vshrl.u32 %v2207, 7
    %v2209 = vsub.s32 6, %v2208
    %v2210 = vrot.slane %v1995, %v2209
    %v2211 = vlaneseq
    %v2212 = vshrl.u32 %v2211, 7
    %v2213 = vsub.s32 7, %v2212
    %v2214 = vrot.slane %v1995, %v2213
    %v2215 = vlaneseq
    %v2216 = vshrl.u32 %v2215, 7
    %v2217 = vsub.s32 0, %v2216
    %v2218 = vrot.slane %v1996, %v2217
    %v2219 = vlaneseq
    %v2220 = vshrl.u32 %v2219, 7
    %v2221 = vsub.s32 1, %v2220
    %v2222 = vrot.slane %v1996, %v2221
    %v2223 = vlaneseq
    %v2224 = vshrl.u32 %v2223, 7
    %v2225 = vsub.s32 2, %v2224
    %v2226 = vrot.slane %v1996, %v2225
    %v2227 = vlaneseq
    %v2228 = vshrl.u32 %v2227, 7
    %v2229 = vsub.s32 3, %v2228
    %v2230 = vrot.slane %v1996, %v2229
    %v2231 = vlaneseq
    %v2232 = vshrl.u32 %v2231, 7
    %v2233 = vsub.s32 4, %v2232
    %v2234 = vrot.slane %v1996, %v2233
    %v2235 = vlaneseq
    %v2236 = vshrl.u32 %v2235, 7
    %v2237 = vsub.s32 5, %v2236
    %v2238 = vrot.slane %v1996, %v2237
    %v2239 = vlaneseq
    %v2240 = vshrl.u32 %v2239, 7
    %v2241 = vsub.s32 6, %v2240
    %v2242 = vrot.slane %v1996, %v2241
    %v2243 = vlaneseq
    %v2244 = vshrl.u32 %v2243, 7
    %v2245 = vsub.s32 7, %v2244
    %v2246 = vrot.slane %v1996, %v2245
    %v2247 = vlaneseq
    %v2248 = vshrl.u32 %v2247, 7
    %v2249 = vsub.s32 0, %v2248
    %v2250 = vrot.slane %v1997, %v2249
    %v2251 = vlaneseq
    %v2252 = vshrl.u32 %v2251, 7
    %v2253 = vsub.s32 1, %v2252
    %v2254 = vrot.slane %v1997, %v2253
    %v2255 = vlaneseq
    %v2256 = vshrl.u32 %v2255, 7
    %v2257 = vsub.s32 2, %v2256
    %v2258 = vrot.slane %v1997, %v2257
    %v2259 = vlaneseq
    %v2260 = vshrl.u32 %v2259, 7
    %v2261 = vsub.s32 3, %v2260
    %v2262 = vrot.slane %v1997, %v2261
    %v2263 = vlaneseq
    %v2264 = vshrl.u32 %v2263, 7
    %v2265 = vsub.s32 4, %v2264
    %v2266 = vrot.slane %v1997, %v2265
    %v2267 = vlaneseq
    %v2268 = vshrl.u32 %v2267, 7
    %v2269 = vsub.s32 5, %v2268
    %v2270 = vrot.slane %v1997, %v2269
    %v2271 = vlaneseq
    %v2272 = vshrl.u32 %v2271, 7
    %v2273 = vsub.s32 6, %v2272
    %v2274 = vrot.slane %v1997, %v2273
    %v2275 = vlaneseq
    %v2276 = vshrl.u32 %v2275, 7
    %v2277 = vsub.s32 7, %v2276
    %v2278 = vrot.slane %v1997, %v2277
    %v2279 = vlaneseq
    %v2280 = vshrl.u32 %v2279, 7
    %v2281 = vsub.s32 0, %v2280
    %v2282 = vrot.slane %v1998, %v2281
    %v2283 = vlaneseq
    %v2284 = vshrl.u32 %v2283, 7
    %v2285 = vsub.s32 1, %v2284
    %v2286 = vrot.slane %v1998, %v2285
    %v2287 = vlaneseq
    %v2288 = vshrl.u32 %v2287, 7
    %v2289 = vsub.s32 2, %v2288
    %v2290 = vrot.slane %v1998, %v2289
    %v2291 = vlaneseq
    %v2292 = vshrl.u32 %v2291, 7
    %v2293 = vsub.s32 3, %v2292
    %v2294 = vrot.slane %v1998, %v2293
    %v2295 = vlaneseq
    %v2296 = vshrl.u32 %v2295, 7
    %v2297 = vsub.s32 4, %v2296
    %v2298 = vrot.slane %v1998, %v2297
    %v2299 = vlaneseq
    %v2300 = vshrl.u32 %v2299, 7
    %v2301 = vsub.s32 5, %v2300
    %v2302 = vrot.slane %v1998, %v2301
    %v2303 = vlaneseq
    %v2304 = vshrl.u32 %v2303, 7
    %v2305 = vsub.s32 6, %v2304
    %v2306 = vrot.slane %v1998, %v2305
    %v2307 = vlaneseq
    %v2308 = vshrl.u32 %v2307, 7
    %v2309 = vsub.s32 7, %v2308
    %v2310 = vrot.slane %v1998, %v2309
    %v2311 = vlaneseq
    %v2312 = vshrl.u32 %v2311, 7
    %v2313 = vsub.s32 0, %v2312
    %v2314 = vrot.slane %v1999, %v2313
    %v2315 = vlaneseq
    %v2316 = vshrl.u32 %v2315, 7
    %v2317 = vsub.s32 1, %v2316
    %v2318 = vrot.slane %v1999, %v2317
    %v2319 = vlaneseq
    %v2320 = vshrl.u32 %v2319, 7
    %v2321 = vsub.s32 2, %v2320
    %v2322 = vrot.slane %v1999, %v2321
    %v2323 = vlaneseq
    %v2324 = vshrl.u32 %v2323, 7
    %v2325 = vsub.s32 3, %v2324
    %v2326 = vrot.slane %v1999, %v2325
    %v2327 = vlaneseq
    %v2328 = vshrl.u32 %v2327, 7
    %v2329 = vsub.s32 4, %v2328
    %v2330 = vrot.slane %v1999, %v2329
    %v2331 = vlaneseq
    %v2332 = vshrl.u32 %v2331, 7
    %v2333 = vsub.s32 5, %v2332
    %v2334 = vrot.slane %v1999, %v2333
    %v2335 = vlaneseq
    %v2336 = vshrl.u32 %v2335, 7
    %v2337 = vsub.s32 6, %v2336
    %v2338 = vrot.slane %v1999, %v2337
    %v2339 = vlaneseq
    %v2340 = vshrl.u32 %v2339, 7
    %v2341 = vsub.s32 7, %v2340
    %v2342 = vrot.slane %v1999, %v2341
    %v2343 = vlaneseq
    %v2344 = vshrl.u32 %v2343, 7
    %v2345 = vsub.s32 0, %v2344
    %v2346 = vrot.slane %v2000, %v2345
    %v2347 = vlaneseq
    %v2348 = vshrl.u32 %v2347, 7
    %v2349 = vsub.s32 1, %v2348
    %v2350 = vrot.slane %v2000, %v2349
    %v2351 = vlaneseq
    %v2352 = vshrl.u32 %v2351, 7
    %v2353 = vsub.s32 2, %v2352
    %v2354 = vrot.slane %v2000, %v2353
    %v2355 = vlaneseq
    %v2356 = vshrl.u32 %v2355, 7
    %v2357 = vsub.s32 3, %v2356
    %v2358 = vrot.slane %v2000, %v2357
    %v2359 = vlaneseq
    %v2360 = vshrl.u32 %v2359, 7
    %v2361 = vsub.s32 4, %v2360
    %v2362 = vrot.slane %v2000, %v2361
    %v2363 = vlaneseq
    %v2364 = vshrl.u32 %v2363, 7
    %v2365 = vsub.s32 5, %v2364
    %v2366 = vrot.slane %v2000, %v2365
    %v2367 = vlaneseq
    %v2368 = vshrl.u32 %v2367, 7
    %v2369 = vsub.s32 6, %v2368
    %v2370 = vrot.slane %v2000, %v2369
    %v2371 = vlaneseq
    %v2372 = vshrl.u32 %v2371, 7
    %v2373 = vsub.s32 7, %v2372
    %v2374 = vrot.slane %v2000, %v2373
    %v2375 = vlaneseq
    %v2376 = vshrl.u32 %v2375, 7
    %v2377 = vsub.s32 0, %v2376
    %v2378 = vrot.slane %v2001, %v2377
    %v2379 = vlaneseq
    %v2380 = vshrl.u32 %v2379, 7
    %v2381 = vsub.s32 1, %v2380
    %v2382 = vrot.slane %v2001, %v2381
    %v2383 = vlaneseq
    %v2384 = vshrl.u32 %v2383, 7
    %v2385 = vsub.s32 2, %v2384
    %v2386 = vrot.slane %v2001, %v2385
    %v2387 = vlaneseq
    %v2388 = vshrl.u32 %v2387, 7
    %v2389 = vsub.s32 3, %v2388
    %v2390 = vrot.slane %v2001, %v2389
    %v2391 = vlaneseq
    %v2392 = vshrl.u32 %v2391, 7
    %v2393 = vsub.s32 4, %v2392
    %v2394 = vrot.slane %v2001, %v2393
    %v2395 = vlaneseq
    %v2396 = vshrl.u32 %v2395, 7
    %v2397 = vsub.s32 5, %v2396
    %v2398 = vrot.slane %v2001, %v2397
    %v2399 = vlaneseq
    %v2400 = vshrl.u32 %v2399, 7
    %v2401 = vsub.s32 6, %v2400
    %v2402 = vrot.slane %v2001, %v2401
    %v2403 = vlaneseq
    %v2404 = vshrl.u32 %v2403, 7
    %v2405 = vsub.s32 7, %v2404
    %v2406 = vrot.slane %v2001, %v2405
    %v2407 = vlaneseq
    %v2408 = vshrl.u32 %v2407, 7
    %v2409 = vsub.s32 0, %v2408
    %v2410 = vrot.slane %v2002, %v2409
    %v2411 = vlaneseq
    %v2412 = vshrl.u32 %v2411, 7
    %v2413 = vsub.s32 1, %v2412
    %v2414 = vrot.slane %v2002, %v2413
    %v2415 = vlaneseq
    %v2416 = vshrl.u32 %v2415, 7
    %v2417 = vsub.s32 2, %v2416
    %v2418 = vrot.slane %v2002, %v2417
    %v2419 = vlaneseq
    %v2420 = vshrl.u32 %v2419, 7
    %v2421 = vsub.s32 3, %v2420
    %v2422 = vrot.slane %v2002, %v2421
    %v2423 = vlaneseq
    %v2424 = vshrl.u32 %v2423, 7
    %v2425 = vsub.s32 4, %v2424
    %v2426 = vrot.slane %v2002, %v2425
    %v2427 = vlaneseq
    %v2428 = vshrl.u32 %v2427, 7
    %v2429 = vsub.s32 5, %v2428
    %v2430 = vrot.slane %v2002, %v2429
    %v2431 = vlaneseq
    %v2432 = vshrl.u32 %v2431, 7
    %v2433 = vsub.s32 6, %v2432
    %v2434 = vrot.slane %v2002, %v2433
    %v2435 = vlaneseq
    %v2436 = vshrl.u32 %v2435, 7
    %v2437 = vsub.s32 7, %v2436
    %v2438 = vrot.slane %v2002, %v2437
    %v2439 = vlaneseq
    %v2440 = vshrl.u32 %v2439, 7
    %v2441 = vsub.s32 0, %v2440
    %v2442 = vrot.slane %v2003, %v2441
    %v2443 = vlaneseq
    %v2444 = vshrl.u32 %v2443, 7
    %v2445 = vsub.s32 1, %v2444
    %v2446 = vrot.slane %v2003, %v2445
    %v2447 = vlaneseq
    %v2448 = vshrl.u32 %v2447, 7
    %v2449 = vsub.s32 2, %v2448
    %v2450 = vrot.slane %v2003, %v2449
    %v2451 = vlaneseq
    %v2452 = vshrl.u32 %v2451, 7
    %v2453 = vsub.s32 3, %v2452
    %v2454 = vrot.slane %v2003, %v2453
    %v2455 = vlaneseq
    %v2456 = vshrl.u32 %v2455, 7
    %v2457 = vsub.s32 4, %v2456
    %v2458 = vrot.slane %v2003, %v2457
    %v2459 = vlaneseq
    %v2460 = vshrl.u32 %v2459, 7
    %v2461 = vsub.s32 5, %v2460
    %v2462 = vrot.slane %v2003, %v2461
    %v2463 = vlaneseq
    %v2464 = vshrl.u32 %v2463, 7
    %v2465 = vsub.s32 6, %v2464
    %v2466 = vrot.slane %v2003, %v2465
    %v2467 = vlaneseq
    %v2468 = vshrl.u32 %v2467, 7
    %v2469 = vsub.s32 7, %v2468
    %v2470 = vrot.slane %v2003, %v2469
    %v2471 = vlaneseq
    %v2472 = vshrl.u32 %v2471, 7
    %v2473 = vsub.s32 0, %v2472
    %v2474 = vrot.slane %v2004, %v2473
    %v2475 = vlaneseq
    %v2476 = vshrl.u32 %v2475, 7
    %v2477 = vsub.s32 1, %v2476
    %v2478 = vrot.slane %v2004, %v2477
    %v2479 = vlaneseq
    %v2480 = vshrl.u32 %v2479, 7
    %v2481 = vsub.s32 2, %v2480
    %v2482 = vrot.slane %v2004, %v2481
    %v2483 = vlaneseq
    %v2484 = vshrl.u32 %v2483, 7
    %v2485 = vsub.s32 3, %v2484
    %v2486 = vrot.slane %v2004, %v2485
    %v2487 = vlaneseq
    %v2488 = vshrl.u32 %v2487, 7
    %v2489 = vsub.s32 4, %v2488
    %v2490 = vrot.slane %v2004, %v2489
    %v2491 = vlaneseq
    %v2492 = vshrl.u32 %v2491, 7
    %v2493 = vsub.s32 5, %v2492
    %v2494 = vrot.slane %v2004, %v2493
    %v2495 = vlaneseq
    %v2496 = vshrl.u32 %v2495, 7
    %v2497 = vsub.s32 6, %v2496
    %v2498 = vrot.slane %v2004, %v2497
    %v2499 = vlaneseq
    %v2500 = vshrl.u32 %v2499, 7
    %v2501 = vsub.s32 7, %v2500
    %v2502 = vrot.slane %v2004, %v2501
    %v2503 = vlaneseq
    %v2504 = vshrl.u32 %v2503, 7
    %v2505 = vsub.s32 0, %v2504
    %v2506 = vrot.slane %v2005, %v2505
    %v2507 = vlaneseq
    %v2508 = vshrl.u32 %v2507, 7
    %v2509 = vsub.s32 1, %v2508
    %v2510 = vrot.slane %v2005, %v2509
    %v2511 = vlaneseq
    %v2512 = vshrl.u32 %v2511, 7
    %v2513 = vsub.s32 2, %v2512
    %v2514 = vrot.slane %v2005, %v2513
    %v2515 = vlaneseq
    %v2516 = vshrl.u32 %v2515, 7
    %v2517 = vsub.s32 3, %v2516
    %v2518 = vrot.slane %v2005, %v2517
    %v2519 = vlaneseq
    %v2520 = vshrl.u32 %v2519, 7
    %v2521 = vsub.s32 4, %v2520
    %v2522 = vrot.slane %v2005, %v2521
    %v2523 = vlaneseq
    %v2524 = vshrl.u32 %v2523, 7
    %v2525 = vsub.s32 5, %v2524
    %v2526 = vrot.slane %v2005, %v2525
    %v2527 = vlaneseq
    %v2528 = vshrl.u32 %v2527, 7
    %v2529 = vsub.s32 6, %v2528
    %v2530 = vrot.slane %v2005, %v2529
    %v2531 = vlaneseq
    %v2532 = vshrl.u32 %v2531, 7
    %v2533 = vsub.s32 7, %v2532
    %v2534 = vrot.slane %v2005, %v2533
    %v2535 = vlaneseq
    %v2536 = vshrl.u32 %v2535, 7
    %v2537 = vsub.s32 0, %v2536
    %v2538 = vrot.slane %v2006, %v2537
    %v2539 = vlaneseq
    %v2540 = vshrl.u32 %v2539, 7
    %v2541 = vsub.s32 1, %v2540
    %v2542 = vrot.slane %v2006, %v2541
    %v2543 = vlaneseq
    %v2544 = vshrl.u32 %v2543, 7
    %v2545 = vsub.s32 2, %v2544
    %v2546 = vrot.slane %v2006, %v2545
    %v2547 = vlaneseq
    %v2548 = vshrl.u32 %v2547, 7
    %v2549 = vsub.s32 3, %v2548
    %v2550 = vrot.slane %v2006, %v2549
    %v2551 = vlaneseq
    %v2552 = vshrl.u32 %v2551, 7
    %v2553 = vsub.s32 4, %v2552
    %v2554 = vrot.slane %v2006, %v2553
    %v2555 = vlaneseq
    %v2556 = vshrl.u32 %v2555, 7
    %v2557 = vsub.s32 5, %v2556
    %v2558 = vrot.slane %v2006, %v2557
    %v2559 = vlaneseq
    %v2560 = vshrl.u32 %v2559, 7
    %v2561 = vsub.s32 6, %v2560
    %v2562 = vrot.slane %v2006, %v2561
    %v2563 = vlaneseq
    %v2564 = vshrl.u32 %v2563, 7
    %v2565 = vsub.s32 7, %v2564
    %v2566 = vrot.slane %v2006, %v2565
    %v2567 = vlaneseq
    %v2568 = vshrl.u32 %v2567, 7
    %v2569 = vsub.s32 0, %v2568
    %v2570 = vrot.slane %v2007, %v2569
    %v2571 = vlaneseq
    %v2572 = vshrl.u32 %v2571, 7
    %v2573 = vsub.s32 1, %v2572
    %v2574 = vrot.slane %v2007, %v2573
    %v2575 = vlaneseq
    %v2576 = vshrl.u32 %v2575, 7
    %v2577 = vsub.s32 2, %v2576
    %v2578 = vrot.slane %v2007, %v2577
    %v2579 = vlaneseq
    %v2580 = vshrl.u32 %v2579, 7
    %v2581 = vsub.s32 3, %v2580
    %v2582 = vrot.slane %v2007, %v2581
    %v2583 = vlaneseq
    %v2584 = vshrl.u32 %v2583, 7
    %v2585 = vsub.s32 4, %v2584
    %v2586 = vrot.slane %v2007, %v2585
    %v2587 = vlaneseq
    %v2588 = vshrl.u32 %v2587, 7
    %v2589 = vsub.s32 5, %v2588
    %v2590 = vrot.slane %v2007, %v2589
    %v2591 = vlaneseq
    %v2592 = vshrl.u32 %v2591, 7
    %v2593 = vsub.s32 6, %v2592
    %v2594 = vrot.slane %v2007, %v2593
    %v2595 = vlaneseq
    %v2596 = vshrl.u32 %v2595, 7
    %v2597 = vsub.s32 7, %v2596
    %v2598 = vrot.slane %v2007, %v2597
    %v2599 = vlaneseq
    %v2600 = vshrl.u32 %v2599, 7
    %v2601 = vsub.s32 0, %v2600
    %v2602 = vrot.slane %v2008, %v2601
    %v2603 = vlaneseq
    %v2604 = vshrl.u32 %v2603, 7
    %v2605 = vsub.s32 1, %v2604
    %v2606 = vrot.slane %v2008, %v2605
    %v2607 = vlaneseq
    %v2608 = vshrl.u32 %v2607, 7
    %v2609 = vsub.s32 2, %v2608
    %v2610 = vrot.slane %v2008, %v2609
    %v2611 = vlaneseq
    %v2612 = vshrl.u32 %v2611, 7
    %v2613 = vsub.s32 3, %v2612
    %v2614 = vrot.slane %v2008, %v2613
    %v2615 = vlaneseq
    %v2616 = vshrl.u32 %v2615, 7
    %v2617 = vsub.s32 4, %v2616
    %v2618 = vrot.slane %v2008, %v2617
    %v2619 = vlaneseq
    %v2620 = vshrl.u32 %v2619, 7
    %v2621 = vsub.s32 5, %v2620
    %v2622 = vrot.slane %v2008, %v2621
    %v2623 = vlaneseq
    %v2624 = vshrl.u32 %v2623, 7
    %v2625 = vsub.s32 6, %v2624
    %v2626 = vrot.slane %v2008, %v2625
    %v2627 = vlaneseq
    %v2628 = vshrl.u32 %v2627, 7
    %v2629 = vsub.s32 7, %v2628
    %v2630 = vrot.slane %v2008, %v2629
    %v2631 = vlaneseq
    %v2632 = vshrl.u32 %v2631, 7
    %v2633 = vsub.s32 0, %v2632
    %v2634 = vrot.slane %v2009, %v2633
    %v2635 = vlaneseq
    %v2636 = vshrl.u32 %v2635, 7
    %v2637 = vsub.s32 1, %v2636
    %v2638 = vrot.slane %v2009, %v2637
    %v2639 = vlaneseq
    %v2640 = vshrl.u32 %v2639, 7
    %v2641 = vsub.s32 2, %v2640
    %v2642 = vrot.slane %v2009, %v2641
    %v2643 = vlaneseq
    %v2644 = vshrl.u32 %v2643, 7
    %v2645 = vsub.s32 3, %v2644
    %v2646 = vrot.slane %v2009, %v2645
    %v2647 = vlaneseq
    %v2648 = vshrl.u32 %v2647, 7
    %v2649 = vsub.s32 4, %v2648
    %v2650 = vrot.slane %v2009, %v2649
    %v2651 = vlaneseq
    %v2652 = vshrl.u32 %v2651, 7
    %v2653 = vsub.s32 5, %v2652
    %v2654 = vrot.slane %v2009, %v2653
    %v2655 = vlaneseq
    %v2656 = vshrl.u32 %v2655, 7
    %v2657 = vsub.s32 6, %v2656
    %v2658 = vrot.slane %v2009, %v2657
    %v2659 = vlaneseq
    %v2660 = vshrl.u32 %v2659, 7
    %v2661 = vsub.s32 7, %v2660
    %v2662 = vrot.slane %v2009, %v2661
    %v2663 = vlaneseq
    %v2664 = vshrl.u32 %v2663, 7
    %v2665 = vsub.s32 0, %v2664
    %v2666 = vrot.slane %v2010, %v2665
    %v2667 = vlaneseq
    %v2668 = vshrl.u32 %v2667, 7
    %v2669 = vsub.s32 1, %v2668
    %v2670 = vrot.slane %v2010, %v2669
    %v2671 = vlaneseq
    %v2672 = vshrl.u32 %v2671, 7
    %v2673 = vsub.s32 2, %v2672
    %v2674 = vrot.slane %v2010, %v2673
    %v2675 = vlaneseq
    %v2676 = vshrl.u32 %v2675, 7
    %v2677 = vsub.s32 3, %v2676
    %v2678 = vrot.slane %v2010, %v2677
    %v2679 = vlaneseq
    %v2680 = vshrl.u32 %v2679, 7
    %v2681 = vsub.s32 4, %v2680
    %v2682 = vrot.slane %v2010, %v2681
    %v2683 = vlaneseq
    %v2684 = vshrl.u32 %v2683, 7
    %v2685 = vsub.s32 5, %v2684
    %v2686 = vrot.slane %v2010, %v2685
    %v2687 = vlaneseq
    %v2688 = vshrl.u32 %v2687, 7
    %v2689 = vsub.s32 6, %v2688
    %v2690 = vrot.slane %v2010, %v2689
    %v2691 = vlaneseq
    %v2692 = vshrl.u32 %v2691, 7
    %v2693 = vsub.s32 7, %v2692
    %v2694 = vrot.slane %v2010, %v2693
    %v2695 = vlaneseq
    %v2696 = vshrl.u32 %v2695, 7
    %v2697 = vsub.s32 0, %v2696
    %v2698 = vrot.slane %v2011, %v2697
    %v2699 = vlaneseq
    %v2700 = vshrl.u32 %v2699, 7
    %v2701 = vsub.s32 1, %v2700
    %v2702 = vrot.slane %v2011, %v2701
    %v2703 = vlaneseq
    %v2704 = vshrl.u32 %v2703, 7
    %v2705 = vsub.s32 2, %v2704
    %v2706 = vrot.slane %v2011, %v2705
    %v2707 = vlaneseq
    %v2708 = vshrl.u32 %v2707, 7
    %v2709 = vsub.s32 3, %v2708
    %v2710 = vrot.slane %v2011, %v2709
    %v2711 = vlaneseq
    %v2712 = vshrl.u32 %v2711, 7
    %v2713 = vsub.s32 4, %v2712
    %v2714 = vrot.slane %v2011, %v2713
    %v2715 = vlaneseq
    %v2716 = vshrl.u32 %v2715, 7
    %v2717 = vsub.s32 5, %v2716
    %v2718 = vrot.slane %v2011, %v2717
    %v2719 = vlaneseq
    %v2720 = vshrl.u32 %v2719, 7
    %v2721 = vsub.s32 6, %v2720
    %v2722 = vrot.slane %v2011, %v2721
    %v2723 = vlaneseq
    %v2724 = vshrl.u32 %v2723, 7
    %v2725 = vsub.s32 7, %v2724
    %v2726 = vrot.slane %v2011, %v2725
    %v2727 = vlaneseq
    %v2728 = vshrl.u32 %v2727, 7
    %v2729 = vsub.s32 0, %v2728
    %v2730 = vrot.slane %v2012, %v2729
    %v2731 = vlaneseq
    %v2732 = vshrl.u32 %v2731, 7
    %v2733 = vsub.s32 1, %v2732
    %v2734 = vrot.slane %v2012, %v2733
    %v2735 = vlaneseq
    %v2736 = vshrl.u32 %v2735, 7
    %v2737 = vsub.s32 2, %v2736
    %v2738 = vrot.slane %v2012, %v2737
    %v2739 = vlaneseq
    %v2740 = vshrl.u32 %v2739, 7
    %v2741 = vsub.s32 3, %v2740
    %v2742 = vrot.slane %v2012, %v2741
    %v2743 = vlaneseq
    %v2744 = vshrl.u32 %v2743, 7
    %v2745 = vsub.s32 4, %v2744
    %v2746 = vrot.slane %v2012, %v2745
    %v2747 = vlaneseq
    %v2748 = vshrl.u32 %v2747, 7
    %v2749 = vsub.s32 5, %v2748
    %v2750 = vrot.slane %v2012, %v2749
    %v2751 = vlaneseq
    %v2752 = vshrl.u32 %v2751, 7
    %v2753 = vsub.s32 6, %v2752
    %v2754 = vrot.slane %v2012, %v2753
    %v2755 = vlaneseq
    %v2756 = vshrl.u32 %v2755, 7
    %v2757 = vsub.s32 7, %v2756
    %v2758 = vrot.slane %v2012, %v2757
    %v2759 = vlaneseq
    %v2760 = vshrl.u32 %v2759, 7
    %v2761 = vsub.s32 0, %v2760
    %v2762 = vrot.slane %v2013, %v2761
    %v2763 = vlaneseq
    %v2764 = vshrl.u32 %v2763, 7
    %v2765 = vsub.s32 1, %v2764
    %v2766 = vrot.slane %v2013, %v2765
    %v2767 = vlaneseq
    %v2768 = vshrl.u32 %v2767, 7
    %v2769 = vsub.s32 2, %v2768
    %v2770 = vrot.slane %v2013, %v2769
    %v2771 = vlaneseq
    %v2772 = vshrl.u32 %v2771, 7
    %v2773 = vsub.s32 3, %v2772
    %v2774 = vrot.slane %v2013, %v2773
    %v2775 = vlaneseq
    %v2776 = vshrl.u32 %v2775, 7
    %v2777 = vsub.s32 4, %v2776
    %v2778 = vrot.slane %v2013, %v2777
    %v2779 = vlaneseq
    %v2780 = vshrl.u32 %v2779, 7
    %v2781 = vsub.s32 5, %v2780
    %v2782 = vrot.slane %v2013, %v2781
    %v2783 = vlaneseq
    %v2784 = vshrl.u32 %v2783, 7
    %v2785 = vsub.s32 6, %v2784
    %v2786 = vrot.slane %v2013, %v2785
    %v2787 = vlaneseq
    %v2788 = vshrl.u32 %v2787, 7
    %v2789 = vsub.s32 7, %v2788
    %v2790 = vrot.slane %v2013, %v2789
    %v2791 = vlaneseq
    %v2792 = vshrl.u32 %v2791, 7
    %v2793 = vsub.s32 0, %v2792
    %v2794 = vrot.slane %v2014, %v2793
    %v2795 = vlaneseq
    %v2796 = vshrl.u32 %v2795, 7
    %v2797 = vsub.s32 1, %v2796
    %v2798 = vrot.slane %v2014, %v2797
    %v2799 = vlaneseq
    %v2800 = vshrl.u32 %v2799, 7
    %v2801 = vsub.s32 2, %v2800
    %v2802 = vrot.slane %v2014, %v2801
    %v2803 = vlaneseq
    %v2804 = vshrl.u32 %v2803, 7
    %v2805 = vsub.s32 3, %v2804
    %v2806 = vrot.slane %v2014, %v2805
    %v2807 = vlaneseq
    %v2808 = vshrl.u32 %v2807, 7
    %v2809 = vsub.s32 4, %v2808
    %v2810 = vrot.slane %v2014, %v2809
    %v2811 = vlaneseq
    %v2812 = vshrl.u32 %v2811, 7
    %v2813 = vsub.s32 5, %v2812
    %v2814 = vrot.slane %v2014, %v2813
    %v2815 = vlaneseq
    %v2816 = vshrl.u32 %v2815, 7
    %v2817 = vsub.s32 6, %v2816
    %v2818 = vrot.slane %v2014, %v2817
    %v2819 = vlaneseq
    %v2820 = vshrl.u32 %v2819, 7
    %v2821 = vsub.s32 7, %v2820
    %v2822 = vrot.slane %v2014, %v2821
    %v2823 = vlaneseq
    %v2824 = vshrl.u32 %v2823, 7
    %v2825 = vsub.s32 0, %v2824
    %v2826 = vrot.slane %v2015, %v2825
    %v2827 = vlaneseq
    %v2828 = vshrl.u32 %v2827, 7
    %v2829 = vsub.s32 1, %v2828
    %v2830 = vrot.slane %v2015, %v2829
    %v2831 = vlaneseq
    %v2832 = vshrl.u32 %v2831, 7
    %v2833 = vsub.s32 2, %v2832
    %v2834 = vrot.slane %v2015, %v2833
    %v2835 = vlaneseq
    %v2836 = vshrl.u32 %v2835, 7
    %v2837 = vsub.s32 3, %v2836
    %v2838 = vrot.slane %v2015, %v2837
    %v2839 = vlaneseq
    %v2840 = vshrl.u32 %v2839, 7
    %v2841 = vsub.s32 4, %v2840
    %v2842 = vrot.slane %v2015, %v2841
    %v2843 = vlaneseq
    %v2844 = vshrl.u32 %v2843, 7
    %v2845 = vsub.s32 5, %v2844
    %v2846 = vrot.slane %v2015, %v2845
    %v2847 = vlaneseq
    %v2848 = vshrl.u32 %v2847, 7
    %v2849 = vsub.s32 6, %v2848
    %v2850 = vrot.slane %v2015, %v2849
    %v2851 = vlaneseq
    %v2852 = vshrl.u32 %v2851, 7
    %v2853 = vsub.s32 7, %v2852
    %v2854 = vrot.slane %v2015, %v2853
    %v2855 = vlaneseq
    %v2856 = vshrl.u32 %v2855, 7
    %v2857 = vsub.s32 0, %v2856
    %v2858 = vrot.slane %v2016, %v2857
    %v2859 = vlaneseq
    %v2860 = vshrl.u32 %v2859, 7
    %v2861 = vsub.s32 1, %v2860
    %v2862 = vrot.slane %v2016, %v2861
    %v2863 = vlaneseq
    %v2864 = vshrl.u32 %v2863, 7
    %v2865 = vsub.s32 2, %v2864
    %v2866 = vrot.slane %v2016, %v2865
    %v2867 = vlaneseq
    %v2868 = vshrl.u32 %v2867, 7
    %v2869 = vsub.s32 3, %v2868
    %v2870 = vrot.slane %v2016, %v2869
    %v2871 = vlaneseq
    %v2872 = vshrl.u32 %v2871, 7
    %v2873 = vsub.s32 4, %v2872
    %v2874 = vrot.slane %v2016, %v2873
    %v2875 = vlaneseq
    %v2876 = vshrl.u32 %v2875, 7
    %v2877 = vsub.s32 5, %v2876
    %v2878 = vrot.slane %v2016, %v2877
    %v2879 = vlaneseq
    %v2880 = vshrl.u32 %v2879, 7
    %v2881 = vsub.s32 6, %v2880
    %v2882 = vrot.slane %v2016, %v2881
    %v2883 = vlaneseq
    %v2884 = vshrl.u32 %v2883, 7
    %v2885 = vsub.s32 7, %v2884
    %v2886 = vrot.slane %v2016, %v2885
    %v2887 = vlaneseq
    %v2888 = vshrl.u32 %v2887, 7
    %v2889 = vsub.s32 0, %v2888
    %v2890 = vrot.slane %v2017, %v2889
    %v2891 = vlaneseq
    %v2892 = vshrl.u32 %v2891, 7
    %v2893 = vsub.s32 1, %v2892
    %v2894 = vrot.slane %v2017, %v2893
    %v2895 = vlaneseq
    %v2896 = vshrl.u32 %v2895, 7
    %v2897 = vsub.s32 2, %v2896
    %v2898 = vrot.slane %v2017, %v2897
    %v2899 = vlaneseq
    %v2900 = vshrl.u32 %v2899, 7
    %v2901 = vsub.s32 3, %v2900
    %v2902 = vrot.slane %v2017, %v2901
    %v2903 = vlaneseq
    %v2904 = vshrl.u32 %v2903, 7
    %v2905 = vsub.s32 4, %v2904
    %v2906 = vrot.slane %v2017, %v2905
    %v2907 = vlaneseq
    %v2908 = vshrl.u32 %v2907, 7
    %v2909 = vsub.s32 5, %v2908
    %v2910 = vrot.slane %v2017, %v2909
    %v2911 = vlaneseq
    %v2912 = vshrl.u32 %v2911, 7
    %v2913 = vsub.s32 6, %v2912
    %v2914 = vrot.slane %v2017, %v2913
    %v2915 = vlaneseq
    %v2916 = vshrl.u32 %v2915, 7
    %v2917 = vsub.s32 7, %v2916
    %v2918 = vrot.slane %v2017, %v2917
    %v2919 = vlaneseq
    %v2920 = vshrl.u32 %v2919, 7
    %v2921 = vsub.s32 0, %v2920
    %v2922 = vrot.slane %v2018, %v2921
    %v2923 = vlaneseq
    %v2924 = vshrl.u32 %v2923, 7
    %v2925 = vsub.s32 1, %v2924
    %v2926 = vrot.slane %v2018, %v2925
    %v2927 = vlaneseq
    %v2928 = vshrl.u32 %v2927, 7
    %v2929 = vsub.s32 2, %v2928
    %v2930 = vrot.slane %v2018, %v2929
    %v2931 = vlaneseq
    %v2932 = vshrl.u32 %v2931, 7
    %v2933 = vsub.s32 3, %v2932
    %v2934 = vrot.slane %v2018, %v2933
    %v2935 = vlaneseq
    %v2936 = vshrl.u32 %v2935, 7
    %v2937 = vsub.s32 4, %v2936
    %v2938 = vrot.slane %v2018, %v2937
    %v2939 = vlaneseq
    %v2940 = vshrl.u32 %v2939, 7
    %v2941 = vsub.s32 5, %v2940
    %v2942 = vrot.slane %v2018, %v2941
    %v2943 = vlaneseq
    %v2944 = vshrl.u32 %v2943, 7
    %v2945 = vsub.s32 6, %v2944
    %v2946 = vrot.slane %v2018, %v2945
    %v2947 = vlaneseq
    %v2948 = vshrl.u32 %v2947, 7
    %v2949 = vsub.s32 7, %v2948
    %v2950 = vrot.slane %v2018, %v2949
    %v2951 = vlaneseq
    %v2952 = vshrl.u32 %v2951, 7
    %v2953 = vsub.s32 0, %v2952
    %v2954 = vrot.slane %v2019, %v2953
    %v2955 = vlaneseq
    %v2956 = vshrl.u32 %v2955, 7
    %v2957 = vsub.s32 1, %v2956
    %v2958 = vrot.slane %v2019, %v2957
    %v2959 = vlaneseq
    %v2960 = vshrl.u32 %v2959, 7
    %v2961 = vsub.s32 2, %v2960
    %v2962 = vrot.slane %v2019, %v2961
    %v2963 = vlaneseq
    %v2964 = vshrl.u32 %v2963, 7
    %v2965 = vsub.s32 3, %v2964
    %v2966 = vrot.slane %v2019, %v2965
    %v2967 = vlaneseq
    %v2968 = vshrl.u32 %v2967, 7
    %v2969 = vsub.s32 4, %v2968
    %v2970 = vrot.slane %v2019, %v2969
    %v2971 = vlaneseq
    %v2972 = vshrl.u32 %v2971, 7
    %v2973 = vsub.s32 5, %v2972
    %v2974 = vrot.slane %v2019, %v2973
    %v2975 = vlaneseq
    %v2976 = vshrl.u32 %v2975, 7
    %v2977 = vsub.s32 6, %v2976
    %v2978 = vrot.slane %v2019, %v2977
    %v2979 = vlaneseq
    %v2980 = vshrl.u32 %v2979, 7
    %v2981 = vsub.s32 7, %v2980
    %v2982 = vrot.slane %v2019, %v2981
    %v2983 = vlaneseq
    %v2984 = vshrl.u32 %v2983, 7
    %v2985 = vsub.s32 0, %v2984
    %v2986 = vrot.slane %v2020, %v2985
    %v2987 = vlaneseq
    %v2988 = vshrl.u32 %v2987, 7
    %v2989 = vsub.s32 1, %v2988
    %v2990 = vrot.slane %v2020, %v2989
    %v2991 = vlaneseq
    %v2992 = vshrl.u32 %v2991, 7
    %v2993 = vsub.s32 2, %v2992
    %v2994 = vrot.slane %v2020, %v2993
    %v2995 = vlaneseq
    %v2996 = vshrl.u32 %v2995, 7
    %v2997 = vsub.s32 3, %v2996
    %v2998 = vrot.slane %v2020, %v2997
    %v2999 = vlaneseq
    %v3000 = vshrl.u32 %v2999, 7
    %v3001 = vsub.s32 4, %v3000
    %v3002 = vrot.slane %v2020, %v3001
    %v3003 = vlaneseq
    %v3004 = vshrl.u32 %v3003, 7
    %v3005 = vsub.s32 5, %v3004
    %v3006 = vrot.slane %v2020, %v3005
    %v3007 = vlaneseq
    %v3008 = vshrl.u32 %v3007, 7
    %v3009 = vsub.s32 6, %v3008
    %v3010 = vrot.slane %v2020, %v3009
    %v3011 = vlaneseq
    %v3012 = vshrl.u32 %v3011, 7
    %v3013 = vsub.s32 7, %v3012
    %v3014 = vrot.slane %v2020, %v3013
    %v3015 = vlaneseq
    %v3016 = vshrl.u32 %v3015, 7
    %v3017 = vsub.s32 0, %v3016
    %v3018 = vrot.slane %v2021, %v3017
    %v3019 = vlaneseq
    %v3020 = vshrl.u32 %v3019, 7
    %v3021 = vsub.s32 1, %v3020
    %v3022 = vrot.slane %v2021, %v3021
    %v3023 = vlaneseq
    %v3024 = vshrl.u32 %v3023, 7
    %v3025 = vsub.s32 2, %v3024
    %v3026 = vrot.slane %v2021, %v3025
    %v3027 = vlaneseq
    %v3028 = vshrl.u32 %v3027, 7
    %v3029 = vsub.s32 3, %v3028
    %v3030 = vrot.slane %v2021, %v3029
    %v3031 = vlaneseq
    %v3032 = vshrl.u32 %v3031, 7
    %v3033 = vsub.s32 4, %v3032
    %v3034 = vrot.slane %v2021, %v3033
    %v3035 = vlaneseq
    %v3036 = vshrl.u32 %v3035, 7
    %v3037 = vsub.s32 5, %v3036
    %v3038 = vrot.slane %v2021, %v3037
    %v3039 = vlaneseq
    %v3040 = vshrl.u32 %v3039, 7
    %v3041 = vsub.s32 6, %v3040
    %v3042 = vrot.slane %v2021, %v3041
    %v3043 = vlaneseq
    %v3044 = vshrl.u32 %v3043, 7
    %v3045 = vsub.s32 7, %v3044
    %v3046 = vrot.slane %v2021, %v3045
    %v3047 = vlaneseq
    %v3048 = vshrl.u32 %v3047, 7
    %v3049 = vsub.s32 0, %v3048
    %v3050 = vrot.slane %v2022, %v3049
    %v3051 = vlaneseq
    %v3052 = vshrl.u32 %v3051, 7
    %v3053 = vsub.s32 1, %v3052
    %v3054 = vrot.slane %v2022, %v3053
    %v3055 = vlaneseq
    %v3056 = vshrl.u32 %v3055, 7
    %v3057 = vsub.s32 2, %v3056
    %v3058 = vrot.slane %v2022, %v3057
    %v3059 = vlaneseq
    %v3060 = vshrl.u32 %v3059, 7
    %v3061 = vsub.s32 3, %v3060
    %v3062 = vrot.slane %v2022, %v3061
    %v3063 = vlaneseq
    %v3064 = vshrl.u32 %v3063, 7
    %v3065 = vsub.s32 4, %v3064
    %v3066 = vrot.slane %v2022, %v3065
    %v3067 = vlaneseq
    %v3068 = vshrl.u32 %v3067, 7
    %v3069 = vsub.s32 5, %v3068
    %v3070 = vrot.slane %v2022, %v3069
    %v3071 = vlaneseq
    %v3072 = vshrl.u32 %v3071, 7
    %v3073 = vsub.s32 6, %v3072
    %v3074 = vrot.slane %v2022, %v3073
    %v3075 = vlaneseq
    %v3076 = vshrl.u32 %v3075, 7
    %v3077 = vsub.s32 7, %v3076
    %v3078 = vrot.slane %v2022, %v3077
    %v3079 = vcombine.low %v2058, %v2062
    %v3080 = vcombine.low %v2066, %v2070
    %v3081 = vcombine.low %v2074, %v2078
    %v3082 = vcombine.low %v2082, %v2086
    %v3084 = vunpack.c.l.s4 1966171168
    %v3085 = vunpack.c.0.s8 %v3084
    %v3086 = vlaneseq
    %v3087 = vshrl.u32 %v3086, 7
    %v3088 = vsub.s32 %v3085, %v3087
    %v3089 = vrot.slane %v3079, %v3088
    %v3091 = vunpack.c.l.s4 1966171168
    %v3092 = vunpack.c.0.s8 %v3091
    %v3093 = vlaneseq
    %v3094 = vshrl.u32 %v3093, 7
    %v3095 = vsub.s32 %v3092, %v3094
    %v3096 = vrot.slane %v3080, %v3095
    %v3098 = vunpack.c.l.s4 1966171168
    %v3099 = vunpack.c.0.s8 %v3098
    %v3100 = vlaneseq
    %v3101 = vshrl.u32 %v3100, 7
    %v3102 = vsub.s32 %v3099, %v3101
    %v3103 = vrot.slane %v3081, %v3102
    %v3105 = vunpack.c.l.s4 1966171168
    %v3106 = vunpack.c.0.s8 %v3105
    %v3107 = vlaneseq
    %v3108 = vshrl.u32 %v3107, 7
    %v3109 = vsub.s32 %v3106, %v3108
    %v3110 = vrot.slane %v3082, %v3109
    %v3111 = vcombine.low %v3089, %v3096
    %v3112 = vcombine.low %v3103, %v3110
    %v3114 = vunpack.c.l.s4 1966171168
    %v3115 = vunpack.c.0.s8 %v3114
    %v3116 = vlaneseq
    %v3117 = vshrl.u32 %v3116, 7
    %v3118 = vsub.s32 %v3115, %v3117
    %v3119 = vrot.slane %v3111, %v3118
    %v3121 = vunpack.c.l.s4 1966171168
    %v3122 = vunpack.c.0.s8 %v3121
    %v3123 = vlaneseq
    %v3124 = vshrl.u32 %v3123, 7
    %v3125 = vsub.s32 %v3122, %v3124
    %v3126 = vrot.slane %v3112, %v3125
    %v3127 = vcombine.low %v3119, %v3126
    %v3128 = vcombine.low %v2090, %v2094
    %v3129 = vcombine.low %v2098, %v2102
    %v3130 = vcombine.low %v2106, %v2110
    %v3131 = vcombine.low %v2114, %v2118
    %v3133 = vunpack.c.l.s4 1966171168
    %v3134 = vunpack.c.0.s8 %v3133
    %v3135 = vlaneseq
    %v3136 = vshrl.u32 %v3135, 7
    %v3137 = vsub.s32 %v3134, %v3136
    %v3138 = vrot.slane %v3128, %v3137
    %v3140 = vunpack.c.l.s4 1966171168
    %v3141 = vunpack.c.0.s8 %v3140
    %v3142 = vlaneseq
    %v3143 = vshrl.u32 %v3142, 7
    %v3144 = vsub.s32 %v3141, %v3143
    %v3145 = vrot.slane %v3129, %v3144
    %v3147 = vunpack.c.l.s4 1966171168
    %v3148 = vunpack.c.0.s8 %v3147
    %v3149 = vlaneseq
    %v3150 = vshrl.u32 %v3149, 7
    %v3151 = vsub.s32 %v3148, %v3150
    %v3152 = vrot.slane %v3130, %v3151
    %v3154 = vunpack.c.l.s4 1966171168
    %v3155 = vunpack.c.0.s8 %v3154
    %v3156 = vlaneseq
    %v3157 = vshrl.u32 %v3156, 7
    %v3158 = vsub.s32 %v3155, %v3157
    %v3159 = vrot.slane %v3131, %v3158
    %v3160 = vcombine.low %v3138, %v3145
    %v3161 = vcombine.low %v3152, %v3159
    %v3163 = vunpack.c.l.s4 1966171168
    %v3164 = vunpack.c.0.s8 %v3163
    %v3165 = vlaneseq
    %v3166 = vshrl.u32 %v3165, 7
    %v3167 = vsub.s32 %v3164, %v3166
    %v3168 = vrot.slane %v3160, %v3167
    %v3170 = vunpack.c.l.s4 1966171168
    %v3171 = vunpack.c.0.s8 %v3170
    %v3172 = vlaneseq
    %v3173 = vshrl.u32 %v3172, 7
    %v3174 = vsub.s32 %v3171, %v3173
    %v3175 = vrot.slane %v3161, %v3174
    %v3176 = vcombine.low %v3168, %v3175
    %v3177 = vcombine.low %v2122, %v2126
    %v3178 = vcombine.low %v2130, %v2134
    %v3179 = vcombine.low %v2138, %v2142
    %v3180 = vcombine.low %v2146, %v2150
    %v3182 = vunpack.c.l.s4 1966171168
    %v3183 = vunpack.c.0.s8 %v3182
    %v3184 = vlaneseq
    %v3185 = vshrl.u32 %v3184, 7
    %v3186 = vsub.s32 %v3183, %v3185
    %v3187 = vrot.slane %v3177, %v3186
    %v3189 = vunpack.c.l.s4 1966171168
    %v3190 = vunpack.c.0.s8 %v3189
    %v3191 = vlaneseq
    %v3192 = vshrl.u32 %v3191, 7
    %v3193 = vsub.s32 %v3190, %v3192
    %v3194 = vrot.slane %v3178, %v3193
    %v3196 = vunpack.c.l.s4 1966171168
    %v3197 = vunpack.c.0.s8 %v3196
    %v3198 = vlaneseq
    %v3199 = vshrl.u32 %v3198, 7
    %v3200 = vsub.s32 %v3197, %v3199
    %v3201 = vrot.slane %v3179, %v3200
    %v3203 = vunpack.c.l.s4 1966171168
    %v3204 = vunpack.c.0.s8 %v3203
    %v3205 = vlaneseq
    %v3206 = vshrl.u32 %v3205, 7
    %v3207 = vsub.s32 %v3204, %v3206
    %v3208 = vrot.slane %v3180, %v3207
    %v3209 = vcombine.low %v3187, %v3194
    %v3210 = vcombine.low %v3201, %v3208
    %v3212 = vunpack.c.l.s4 1966171168
    %v3213 = vunpack.c.0.s8 %v3212
    %v3214 = vlaneseq
    %v3215 = vshrl.u32 %v3214, 7
    %v3216 = vsub.s32 %v3213, %v3215
    %v3217 = vrot.slane %v3209, %v3216
    %v3219 = vunpack.c.l.s4 1966171168
    %v3220 = vunpack.c.0.s8 %v3219
    %v3221 = vlaneseq
    %v3222 = vshrl.u32 %v3221, 7
    %v3223 = vsub.s32 %v3220, %v3222
    %v3224 = vrot.slane %v3210, %v3223
    %v3225 = vcombine.low %v3217, %v3224
    %v3226 = vcombine.low %v2154, %v2158
    %v3227 = vcombine.low %v2162, %v2166
    %v3228 = vcombine.low %v2170, %v2174
    %v3229 = vcombine.low %v2178, %v2182
    %v3231 = vunpack.c.l.s4 1966171168
    %v3232 = vunpack.c.0.s8 %v3231
    %v3233 = vlaneseq
    %v3234 = vshrl.u32 %v3233, 7
    %v3235 = vsub.s32 %v3232, %v3234
    %v3236 = vrot.slane %v3226, %v3235
    %v3238 = vunpack.c.l.s4 1966171168
    %v3239 = vunpack.c.0.s8 %v3238
    %v3240 = vlaneseq
    %v3241 = vshrl.u32 %v3240, 7
    %v3242 = vsub.s32 %v3239, %v3241
    %v3243 = vrot.slane %v3227, %v3242
    %v3245 = vunpack.c.l.s4 1966171168
    %v3246 = vunpack.c.0.s8 %v3245
    %v3247 = vlaneseq
    %v3248 = vshrl.u32 %v3247, 7
    %v3249 = vsub.s32 %v3246, %v3248
    %v3250 = vrot.slane %v3228, %v3249
    %v3252 = vunpack.c.l.s4 1966171168
    %v3253 = vunpack.c.0.s8 %v3252
    %v3254 = vlaneseq
    %v3255 = vshrl.u32 %v3254, 7
    %v3256 = vsub.s32 %v3253, %v3255
    %v3257 = vrot.slane %v3229, %v3256
    %v3258 = vcombine.low %v3236, %v3243
    %v3259 = vcombine.low %v3250, %v3257
    %v3261 = vunpack.c.l.s4 1966171168
    %v3262 = vunpack.c.0.s8 %v3261
    %v3263 = vlaneseq
    %v3264 = vshrl.u32 %v3263, 7
    %v3265 = vsub.s32 %v3262, %v3264
    %v3266 = vrot.slane %v3258, %v3265
    %v3268 = vunpack.c.l.s4 1966171168
    %v3269 = vunpack.c.0.s8 %v3268
    %v3270 = vlaneseq
    %v3271 = vshrl.u32 %v3270, 7
    %v3272 = vsub.s32 %v3269, %v3271
    %v3273 = vrot.slane %v3259, %v3272
    %v3274 = vcombine.low %v3266, %v3273
    %v3275 = vcombine.low %v2186, %v2190
    %v3276 = vcombine.low %v2194, %v2198
    %v3277 = vcombine.low %v2202, %v2206
    %v3278 = vcombine.low %v2210, %v2214
    %v3280 = vunpack.c.l.s4 1966171168
    %v3281 = vunpack.c.0.s8 %v3280
    %v3282 = vlaneseq
    %v3283 = vshrl.u32 %v3282, 7
    %v3284 = vsub.s32 %v3281, %v3283
    %v3285 = vrot.slane %v3275, %v3284
    %v3287 = vunpack.c.l.s4 1966171168
    %v3288 = vunpack.c.0.s8 %v3287
    %v3289 = vlaneseq
    %v3290 = vshrl.u32 %v3289, 7
    %v3291 = vsub.s32 %v3288, %v3290
    %v3292 = vrot.slane %v3276, %v3291
    %v3294 = vunpack.c.l.s4 1966171168
    %v3295 = vunpack.c.0.s8 %v3294
    %v3296 = vlaneseq
    %v3297 = vshrl.u32 %v3296, 7
    %v3298 = vsub.s32 %v3295, %v3297
    %v3299 = vrot.slane %v3277, %v3298
    %v3301 = vunpack.c.l.s4 1966171168
    %v3302 = vunpack.c.0.s8 %v3301
    %v3303 = vlaneseq
    %v3304 = vshrl.u32 %v3303, 7
    %v3305 = vsub.s32 %v3302, %v3304
    %v3306 = vrot.slane %v3278, %v3305
    %v3307 = vcombine.low %v3285, %v3292
    %v3308 = vcombine.low %v3299, %v3306
    %v3310 = vunpack.c.l.s4 1966171168
    %v3311 = vunpack.c.0.s8 %v3310
    %v3312 = vlaneseq
    %v3313 = vshrl.u32 %v3312, 7
    %v3314 = vsub.s32 %v3311, %v3313
    %v3315 = vrot.slane %v3307, %v3314
    %v3317 = vunpack.c.l.s4 1966171168
    %v3318 = vunpack.c.0.s8 %v3317
    %v3319 = vlaneseq
    %v3320 = vshrl.u32 %v3319, 7
    %v3321 = vsub.s32 %v3318, %v3320
    %v3322 = vrot.slane %v3308, %v3321
    %v3323 = vcombine.low %v3315, %v3322
    %v3324 = vcombine.low %v2218, %v2222
    %v3325 = vcombine.low %v2226, %v2230
    %v3326 = vcombine.low %v2234, %v2238
    %v3327 = vcombine.low %v2242, %v2246
    %v3329 = vunpack.c.l.s4 1966171168
    %v3330 = vunpack.c.0.s8 %v3329
    %v3331 = vlaneseq
    %v3332 = vshrl.u32 %v3331, 7
    %v3333 = vsub.s32 %v3330, %v3332
    %v3334 = vrot.slane %v3324, %v3333
    %v3336 = vunpack.c.l.s4 1966171168
    %v3337 = vunpack.c.0.s8 %v3336
    %v3338 = vlaneseq
    %v3339 = vshrl.u32 %v3338, 7
    %v3340 = vsub.s32 %v3337, %v3339
    %v3341 = vrot.slane %v3325, %v3340
    %v3343 = vunpack.c.l.s4 1966171168
    %v3344 = vunpack.c.0.s8 %v3343
    %v3345 = vlaneseq
    %v3346 = vshrl.u32 %v3345, 7
    %v3347 = vsub.s32 %v3344, %v3346
    %v3348 = vrot.slane %v3326, %v3347
    %v3350 = vunpack.c.l.s4 1966171168
    %v3351 = vunpack.c.0.s8 %v3350
    %v3352 = vlaneseq
    %v3353 = vshrl.u32 %v3352, 7
    %v3354 = vsub.s32 %v3351, %v3353
    %v3355 = vrot.slane %v3327, %v3354
    %v3356 = vcombine.low %v3334, %v3341
    %v3357 = vcombine.low %v3348, %v3355
    %v3359 = vunpack.c.l.s4 1966171168
    %v3360 = vunpack.c.0.s8 %v3359
    %v3361 = vlaneseq
    %v3362 = vshrl.u32 %v3361, 7
    %v3363 = vsub.s32 %v3360, %v3362
    %v3364 = vrot.slane %v3356, %v3363
    %v3366 = vunpack.c.l.s4 1966171168
    %v3367 = vunpack.c.0.s8 %v3366
    %v3368 = vlaneseq
    %v3369 = vshrl.u32 %v3368, 7
    %v3370 = vsub.s32 %v3367, %v3369
    %v3371 = vrot.slane %v3357, %v3370
    %v3372 = vcombine.low %v3364, %v3371
    %v3373 = vcombine.low %v2250, %v2254
    %v3374 = vcombine.low %v2258, %v2262
    %v3375 = vcombine.low %v2266, %v2270
    %v3376 = vcombine.low %v2274, %v2278
    %v3378 = vunpack.c.l.s4 1966171168
    %v3379 = vunpack.c.0.s8 %v3378
    %v3380 = vlaneseq
    %v3381 = vshrl.u32 %v3380, 7
    %v3382 = vsub.s32 %v3379, %v3381
    %v3383 = vrot.slane %v3373, %v3382
    %v3385 = vunpack.c.l.s4 1966171168
    %v3386 = vunpack.c.0.s8 %v3385
    %v3387 = vlaneseq
    %v3388 = vshrl.u32 %v3387, 7
    %v3389 = vsub.s32 %v3386, %v3388
    %v3390 = vrot.slane %v3374, %v3389
    %v3392 = vunpack.c.l.s4 1966171168
    %v3393 = vunpack.c.0.s8 %v3392
    %v3394 = vlaneseq
    %v3395 = vshrl.u32 %v3394, 7
    %v3396 = vsub.s32 %v3393, %v3395
    %v3397 = vrot.slane %v3375, %v3396
    %v3399 = vunpack.c.l.s4 1966171168
    %v3400 = vunpack.c.0.s8 %v3399
    %v3401 = vlaneseq
    %v3402 = vshrl.u32 %v3401, 7
    %v3403 = vsub.s32 %v3400, %v3402
    %v3404 = vrot.slane %v3376, %v3403
    %v3405 = vcombine.low %v3383, %v3390
    %v3406 = vcombine.low %v3397, %v3404
    %v3408 = vunpack.c.l.s4 1966171168
    %v3409 = vunpack.c.0.s8 %v3408
    %v3410 = vlaneseq
    %v3411 = vshrl.u32 %v3410, 7
    %v3412 = vsub.s32 %v3409, %v3411
    %v3413 = vrot.slane %v3405, %v3412
    %v3415 = vunpack.c.l.s4 1966171168
    %v3416 = vunpack.c.0.s8 %v3415
    %v3417 = vlaneseq
    %v3418 = vshrl.u32 %v3417, 7
    %v3419 = vsub.s32 %v3416, %v3418
    %v3420 = vrot.slane %v3406, %v3419
    %v3421 = vcombine.low %v3413, %v3420
    %v3422 = vcombine.low %v2282, %v2286
    %v3423 = vcombine.low %v2290, %v2294
    %v3424 = vcombine.low %v2298, %v2302
    %v3425 = vcombine.low %v2306, %v2310
    %v3427 = vunpack.c.l.s4 1966171168
    %v3428 = vunpack.c.0.s8 %v3427
    %v3429 = vlaneseq
    %v3430 = vshrl.u32 %v3429, 7
    %v3431 = vsub.s32 %v3428, %v3430
    %v3432 = vrot.slane %v3422, %v3431
    %v3434 = vunpack.c.l.s4 1966171168
    %v3435 = vunpack.c.0.s8 %v3434
    %v3436 = vlaneseq
    %v3437 = vshrl.u32 %v3436, 7
    %v3438 = vsub.s32 %v3435, %v3437
    %v3439 = vrot.slane %v3423, %v3438
    %v3441 = vunpack.c.l.s4 1966171168
    %v3442 = vunpack.c.0.s8 %v3441
    %v3443 = vlaneseq
    %v3444 = vshrl.u32 %v3443, 7
    %v3445 = vsub.s32 %v3442, %v3444
    %v3446 = vrot.slane %v3424, %v3445
    %v3448 = vunpack.c.l.s4 1966171168
    %v3449 = vunpack.c.0.s8 %v3448
    %v3450 = vlaneseq
    %v3451 = vshrl.u32 %v3450, 7
    %v3452 = vsub.s32 %v3449, %v3451
    %v3453 = vrot.slane %v3425, %v3452
    %v3454 = vcombine.low %v3432, %v3439
    %v3455 = vcombine.low %v3446, %v3453
    %v3457 = vunpack.c.l.s4 1966171168
    %v3458 = vunpack.c.0.s8 %v3457
    %v3459 = vlaneseq
    %v3460 = vshrl.u32 %v3459, 7
    %v3461 = vsub.s32 %v3458, %v3460
    %v3462 = vrot.slane %v3454, %v3461
    %v3464 = vunpack.c.l.s4 1966171168
    %v3465 = vunpack.c.0.s8 %v3464
    %v3466 = vlaneseq
    %v3467 = vshrl.u32 %v3466, 7
    %v3468 = vsub.s32 %v3465, %v3467
    %v3469 = vrot.slane %v3455, %v3468
    %v3470 = vcombine.low %v3462, %v3469
    %v3471 = vcombine.low %v2314, %v2318
    %v3472 = vcombine.low %v2322, %v2326
    %v3473 = vcombine.low %v2330, %v2334
    %v3474 = vcombine.low %v2338, %v2342
    %v3476 = vunpack.c.l.s4 1966171168
    %v3477 = vunpack.c.0.s8 %v3476
    %v3478 = vlaneseq
    %v3479 = vshrl.u32 %v3478, 7
    %v3480 = vsub.s32 %v3477, %v3479
    %v3481 = vrot.slane %v3471, %v3480
    %v3483 = vunpack.c.l.s4 1966171168
    %v3484 = vunpack.c.0.s8 %v3483
    %v3485 = vlaneseq
    %v3486 = vshrl.u32 %v3485, 7
    %v3487 = vsub.s32 %v3484, %v3486
    %v3488 = vrot.slane %v3472, %v3487
    %v3490 = vunpack.c.l.s4 1966171168
    %v3491 = vunpack.c.0.s8 %v3490
    %v3492 = vlaneseq
    %v3493 = vshrl.u32 %v3492, 7
    %v3494 = vsub.s32 %v3491, %v3493
    %v3495 = vrot.slane %v3473, %v3494
    %v3497 = vunpack.c.l.s4 1966171168
    %v3498 = vunpack.c.0.s8 %v3497
    %v3499 = vlaneseq
    %v3500 = vshrl.u32 %v3499, 7
    %v3501 = vsub.s32 %v3498, %v3500
    %v3502 = vrot.slane %v3474, %v3501
    %v3503 = vcombine.low %v3481, %v3488
    %v3504 = vcombine.low %v3495, %v3502
    %v3506 = vunpack.c.l.s4 1966171168
    %v3507 = vunpack.c.0.s8 %v3506
    %v3508 = vlaneseq
    %v3509 = vshrl.u32 %v3508, 7
    %v3510 = vsub.s32 %v3507, %v3509
    %v3511 = vrot.slane %v3503, %v3510
    %v3513 = vunpack.c.l.s4 1966171168
    %v3514 = vunpack.c.0.s8 %v3513
    %v3515 = vlaneseq
    %v3516 = vshrl.u32 %v3515, 7
    %v3517 = vsub.s32 %v3514, %v3516
    %v3518 = vrot.slane %v3504, %v3517
    %v3519 = vcombine.low %v3511, %v3518
    %v3520 = vcombine.low %v2346, %v2350
    %v3521 = vcombine.low %v2354, %v2358
    %v3522 = vcombine.low %v2362, %v2366
    %v3523 = vcombine.low %v2370, %v2374
    %v3525 = vunpack.c.l.s4 1966171168
    %v3526 = vunpack.c.0.s8 %v3525
    %v3527 = vlaneseq
    %v3528 = vshrl.u32 %v3527, 7
    %v3529 = vsub.s32 %v3526, %v3528
    %v3530 = vrot.slane %v3520, %v3529
    %v3532 = vunpack.c.l.s4 1966171168
    %v3533 = vunpack.c.0.s8 %v3532
    %v3534 = vlaneseq
    %v3535 = vshrl.u32 %v3534, 7
    %v3536 = vsub.s32 %v3533, %v3535
    %v3537 = vrot.slane %v3521, %v3536
    %v3539 = vunpack.c.l.s4 1966171168
    %v3540 = vunpack.c.0.s8 %v3539
    %v3541 = vlaneseq
    %v3542 = vshrl.u32 %v3541, 7
    %v3543 = vsub.s32 %v3540, %v3542
    %v3544 = vrot.slane %v3522, %v3543
    %v3546 = vunpack.c.l.s4 1966171168
    %v3547 = vunpack.c.0.s8 %v3546
    %v3548 = vlaneseq
    %v3549 = vshrl.u32 %v3548, 7
    %v3550 = vsub.s32 %v3547, %v3549
    %v3551 = vrot.slane %v3523, %v3550
    %v3552 = vcombine.low %v3530, %v3537
    %v3553 = vcombine.low %v3544, %v3551
    %v3555 = vunpack.c.l.s4 1966171168
    %v3556 = vunpack.c.0.s8 %v3555
    %v3557 = vlaneseq
    %v3558 = vshrl.u32 %v3557, 7
    %v3559 = vsub.s32 %v3556, %v3558
    %v3560 = vrot.slane %v3552, %v3559
    %v3562 = vunpack.c.l.s4 1966171168
    %v3563 = vunpack.c.0.s8 %v3562
    %v3564 = vlaneseq
    %v3565 = vshrl.u32 %v3564, 7
    %v3566 = vsub.s32 %v3563, %v3565
    %v3567 = vrot.slane %v3553, %v3566
    %v3568 = vcombine.low %v3560, %v3567
    %v3569 = vcombine.low %v2378, %v2382
    %v3570 = vcombine.low %v2386, %v2390
    %v3571 = vcombine.low %v2394, %v2398
    %v3572 = vcombine.low %v2402, %v2406
    %v3574 = vunpack.c.l.s4 1966171168
    %v3575 = vunpack.c.0.s8 %v3574
    %v3576 = vlaneseq
    %v3577 = vshrl.u32 %v3576, 7
    %v3578 = vsub.s32 %v3575, %v3577
    %v3579 = vrot.slane %v3569, %v3578
    %v3581 = vunpack.c.l.s4 1966171168
    %v3582 = vunpack.c.0.s8 %v3581
    %v3583 = vlaneseq
    %v3584 = vshrl.u32 %v3583, 7
    %v3585 = vsub.s32 %v3582, %v3584
    %v3586 = vrot.slane %v3570, %v3585
    %v3588 = vunpack.c.l.s4 1966171168
    %v3589 = vunpack.c.0.s8 %v3588
    %v3590 = vlaneseq
    %v3591 = vshrl.u32 %v3590, 7
    %v3592 = vsub.s32 %v3589, %v3591
    %v3593 = vrot.slane %v3571, %v3592
    %v3595 = vunpack.c.l.s4 1966171168
    %v3596 = vunpack.c.0.s8 %v3595
    %v3597 = vlaneseq
    %v3598 = vshrl.u32 %v3597, 7
    %v3599 = vsub.s32 %v3596, %v3598
    %v3600 = vrot.slane %v3572, %v3599
    %v3601 = vcombine.low %v3579, %v3586
    %v3602 = vcombine.low %v3593, %v3600
    %v3604 = vunpack.c.l.s4 1966171168
    %v3605 = vunpack.c.0.s8 %v3604
    %v3606 = vlaneseq
    %v3607 = vshrl.u32 %v3606, 7
    %v3608 = vsub.s32 %v3605, %v3607
    %v3609 = vrot.slane %v3601, %v3608
    %v3611 = vunpack.c.l.s4 1966171168
    %v3612 = vunpack.c.0.s8 %v3611
    %v3613 = vlaneseq
    %v3614 = vshrl.u32 %v3613, 7
    %v3615 = vsub.s32 %v3612, %v3614
    %v3616 = vrot.slane %v3602, %v3615
    %v3617 = vcombine.low %v3609, %v3616
    %v3618 = vcombine.low %v2410, %v2414
    %v3619 = vcombine.low %v2418, %v2422
    %v3620 = vcombine.low %v2426, %v2430
    %v3621 = vcombine.low %v2434, %v2438
    %v3623 = vunpack.c.l.s4 1966171168
    %v3624 = vunpack.c.0.s8 %v3623
    %v3625 = vlaneseq
    %v3626 = vshrl.u32 %v3625, 7
    %v3627 = vsub.s32 %v3624, %v3626
    %v3628 = vrot.slane %v3618, %v3627
    %v3630 = vunpack.c.l.s4 1966171168
    %v3631 = vunpack.c.0.s8 %v3630
    %v3632 = vlaneseq
    %v3633 = vshrl.u32 %v3632, 7
    %v3634 = vsub.s32 %v3631, %v3633
    %v3635 = vrot.slane %v3619, %v3634
    %v3637 = vunpack.c.l.s4 1966171168
    %v3638 = vunpack.c.0.s8 %v3637
    %v3639 = vlaneseq
    %v3640 = vshrl.u32 %v3639, 7
    %v3641 = vsub.s32 %v3638, %v3640
    %v3642 = vrot.slane %v3620, %v3641
    %v3644 = vunpack.c.l.s4 1966171168
    %v3645 = vunpack.c.0.s8 %v3644
    %v3646 = vlaneseq
    %v3647 = vshrl.u32 %v3646, 7
    %v3648 = vsub.s32 %v3645, %v3647
    %v3649 = vrot.slane %v3621, %v3648
    %v3650 = vcombine.low %v3628, %v3635
    %v3651 = vcombine.low %v3642, %v3649
    %v3653 = vunpack.c.l.s4 1966171168
    %v3654 = vunpack.c.0.s8 %v3653
    %v3655 = vlaneseq
    %v3656 = vshrl.u32 %v3655, 7
    %v3657 = vsub.s32 %v3654, %v3656
    %v3658 = vrot.slane %v3650, %v3657
    %v3660 = vunpack.c.l.s4 1966171168
    %v3661 = vunpack.c.0.s8 %v3660
    %v3662 = vlaneseq
    %v3663 = vshrl.u32 %v3662, 7
    %v3664 = vsub.s32 %v3661, %v3663
    %v3665 = vrot.slane %v3651, %v3664
    %v3666 = vcombine.low %v3658, %v3665
    %v3667 = vcombine.low %v2442, %v2446
    %v3668 = vcombine.low %v2450, %v2454
    %v3669 = vcombine.low %v2458, %v2462
    %v3670 = vcombine.low %v2466, %v2470
    %v3672 = vunpack.c.l.s4 1966171168
    %v3673 = vunpack.c.0.s8 %v3672
    %v3674 = vlaneseq
    %v3675 = vshrl.u32 %v3674, 7
    %v3676 = vsub.s32 %v3673, %v3675
    %v3677 = vrot.slane %v3667, %v3676
    %v3679 = vunpack.c.l.s4 1966171168
    %v3680 = vunpack.c.0.s8 %v3679
    %v3681 = vlaneseq
    %v3682 = vshrl.u32 %v3681, 7
    %v3683 = vsub.s32 %v3680, %v3682
    %v3684 = vrot.slane %v3668, %v3683
    %v3686 = vunpack.c.l.s4 1966171168
    %v3687 = vunpack.c.0.s8 %v3686
    %v3688 = vlaneseq
    %v3689 = vshrl.u32 %v3688, 7
    %v3690 = vsub.s32 %v3687, %v3689
    %v3691 = vrot.slane %v3669, %v3690
    %v3693 = vunpack.c.l.s4 1966171168
    %v3694 = vunpack.c.0.s8 %v3693
    %v3695 = vlaneseq
    %v3696 = vshrl.u32 %v3695, 7
    %v3697 = vsub.s32 %v3694, %v3696
    %v3698 = vrot.slane %v3670, %v3697
    %v3699 = vcombine.low %v3677, %v3684
    %v3700 = vcombine.low %v3691, %v3698
    %v3702 = vunpack.c.l.s4 1966171168
    %v3703 = vunpack.c.0.s8 %v3702
    %v3704 = vlaneseq
    %v3705 = vshrl.u32 %v3704, 7
    %v3706 = vsub.s32 %v3703, %v3705
    %v3707 = vrot.slane %v3699, %v3706
    %v3709 = vunpack.c.l.s4 1966171168
    %v3710 = vunpack.c.0.s8 %v3709
    %v3711 = vlaneseq
    %v3712 = vshrl.u32 %v3711, 7
    %v3713 = vsub.s32 %v3710, %v3712
    %v3714 = vrot.slane %v3700, %v3713
    %v3715 = vcombine.low %v3707, %v3714
    %v3716 = vcombine.low %v2474, %v2478
    %v3717 = vcombine.low %v2482, %v2486
    %v3718 = vcombine.low %v2490, %v2494
    %v3719 = vcombine.low %v2498, %v2502
    %v3721 = vunpack.c.l.s4 1966171168
    %v3722 = vunpack.c.0.s8 %v3721
    %v3723 = vlaneseq
    %v3724 = vshrl.u32 %v3723, 7
    %v3725 = vsub.s32 %v3722, %v3724
    %v3726 = vrot.slane %v3716, %v3725
    %v3728 = vunpack.c.l.s4 1966171168
    %v3729 = vunpack.c.0.s8 %v3728
    %v3730 = vlaneseq
    %v3731 = vshrl.u32 %v3730, 7
    %v3732 = vsub.s32 %v3729, %v3731
    %v3733 = vrot.slane %v3717, %v3732
    %v3735 = vunpack.c.l.s4 1966171168
    %v3736 = vunpack.c.0.s8 %v3735
    %v3737 = vlaneseq
    %v3738 = vshrl.u32 %v3737, 7
    %v3739 = vsub.s32 %v3736, %v3738
    %v3740 = vrot.slane %v3718, %v3739
    %v3742 = vunpack.c.l.s4 1966171168
    %v3743 = vunpack.c.0.s8 %v3742
    %v3744 = vlaneseq
    %v3745 = vshrl.u32 %v3744, 7
    %v3746 = vsub.s32 %v3743, %v3745
    %v3747 = vrot.slane %v3719, %v3746
    %v3748 = vcombine.low %v3726, %v3733
    %v3749 = vcombine.low %v3740, %v3747
    %v3751 = vunpack.c.l.s4 1966171168
    %v3752 = vunpack.c.0.s8 %v3751
    %v3753 = vlaneseq
    %v3754 = vshrl.u32 %v3753, 7
    %v3755 = vsub.s32 %v3752, %v3754
    %v3756 = vrot.slane %v3748, %v3755
    %v3758 = vunpack.c.l.s4 1966171168
    %v3759 = vunpack.c.0.s8 %v3758
    %v3760 = vlaneseq
    %v3761 = vshrl.u32 %v3760, 7
    %v3762 = vsub.s32 %v3759, %v3761
    %v3763 = vrot.slane %v3749, %v3762
    %v3764 = vcombine.low %v3756, %v3763
    %v3765 = vcombine.low %v2506, %v2510
    %v3766 = vcombine.low %v2514, %v2518
    %v3767 = vcombine.low %v2522, %v2526
    %v3768 = vcombine.low %v2530, %v2534
    %v3770 = vunpack.c.l.s4 1966171168
    %v3771 = vunpack.c.0.s8 %v3770
    %v3772 = vlaneseq
    %v3773 = vshrl.u32 %v3772, 7
    %v3774 = vsub.s32 %v3771, %v3773
    %v3775 = vrot.slane %v3765, %v3774
    %v3777 = vunpack.c.l.s4 1966171168
    %v3778 = vunpack.c.0.s8 %v3777
    %v3779 = vlaneseq
    %v3780 = vshrl.u32 %v3779, 7
    %v3781 = vsub.s32 %v3778, %v3780
    %v3782 = vrot.slane %v3766, %v3781
    %v3784 = vunpack.c.l.s4 1966171168
    %v3785 = vunpack.c.0.s8 %v3784
    %v3786 = vlaneseq
    %v3787 = vshrl.u32 %v3786, 7
    %v3788 = vsub.s32 %v3785, %v3787
    %v3789 = vrot.slane %v3767, %v3788
    %v3791 = vunpack.c.l.s4 1966171168
    %v3792 = vunpack.c.0.s8 %v3791
    %v3793 = vlaneseq
    %v3794 = vshrl.u32 %v3793, 7
    %v3795 = vsub.s32 %v3792, %v3794
    %v3796 = vrot.slane %v3768, %v3795
    %v3797 = vcombine.low %v3775, %v3782
    %v3798 = vcombine.low %v3789, %v3796
    %v3800 = vunpack.c.l.s4 1966171168
    %v3801 = vunpack.c.0.s8 %v3800
    %v3802 = vlaneseq
    %v3803 = vshrl.u32 %v3802, 7
    %v3804 = vsub.s32 %v3801, %v3803
    %v3805 = vrot.slane %v3797, %v3804
    %v3807 = vunpack.c.l.s4 1966171168
    %v3808 = vunpack.c.0.s8 %v3807
    %v3809 = vlaneseq
    %v3810 = vshrl.u32 %v3809, 7
    %v3811 = vsub.s32 %v3808, %v3810
    %v3812 = vrot.slane %v3798, %v3811
    %v3813 = vcombine.low %v3805, %v3812
    %v3814 = vcombine.low %v2538, %v2542
    %v3815 = vcombine.low %v2546, %v2550
    %v3816 = vcombine.low %v2554, %v2558
    %v3817 = vcombine.low %v2562, %v2566
    %v3819 = vunpack.c.l.s4 1966171168
    %v3820 = vunpack.c.0.s8 %v3819
    %v3821 = vlaneseq
    %v3822 = vshrl.u32 %v3821, 7
    %v3823 = vsub.s32 %v3820, %v3822
    %v3824 = vrot.slane %v3814, %v3823
    %v3826 = vunpack.c.l.s4 1966171168
    %v3827 = vunpack.c.0.s8 %v3826
    %v3828 = vlaneseq
    %v3829 = vshrl.u32 %v3828, 7
    %v3830 = vsub.s32 %v3827, %v3829
    %v3831 = vrot.slane %v3815, %v3830
    %v3833 = vunpack.c.l.s4 1966171168
    %v3834 = vunpack.c.0.s8 %v3833
    %v3835 = vlaneseq
    %v3836 = vshrl.u32 %v3835, 7
    %v3837 = vsub.s32 %v3834, %v3836
    %v3838 = vrot.slane %v3816, %v3837
    %v3840 = vunpack.c.l.s4 1966171168
    %v3841 = vunpack.c.0.s8 %v3840
    %v3842 = vlaneseq
    %v3843 = vshrl.u32 %v3842, 7
    %v3844 = vsub.s32 %v3841, %v3843
    %v3845 = vrot.slane %v3817, %v3844
    %v3846 = vcombine.low %v3824, %v3831
    %v3847 = vcombine.low %v3838, %v3845
    %v3849 = vunpack.c.l.s4 1966171168
    %v3850 = vunpack.c.0.s8 %v3849
    %v3851 = vlaneseq
    %v3852 = vshrl.u32 %v3851, 7
    %v3853 = vsub.s32 %v3850, %v3852
    %v3854 = vrot.slane %v3846, %v3853
    %v3856 = vunpack.c.l.s4 1966171168
    %v3857 = vunpack.c.0.s8 %v3856
    %v3858 = vlaneseq
    %v3859 = vshrl.u32 %v3858, 7
    %v3860 = vsub.s32 %v3857, %v3859
    %v3861 = vrot.slane %v3847, %v3860
    %v3862 = vcombine.low %v3854, %v3861
    %v3863 = vcombine.low %v2570, %v2574
    %v3864 = vcombine.low %v2578, %v2582
    %v3865 = vcombine.low %v2586, %v2590
    %v3866 = vcombine.low %v2594, %v2598
    %v3868 = vunpack.c.l.s4 1966171168
    %v3869 = vunpack.c.0.s8 %v3868
    %v3870 = vlaneseq
    %v3871 = vshrl.u32 %v3870, 7
    %v3872 = vsub.s32 %v3869, %v3871
    %v3873 = vrot.slane %v3863, %v3872
    %v3875 = vunpack.c.l.s4 1966171168
    %v3876 = vunpack.c.0.s8 %v3875
    %v3877 = vlaneseq
    %v3878 = vshrl.u32 %v3877, 7
    %v3879 = vsub.s32 %v3876, %v3878
    %v3880 = vrot.slane %v3864, %v3879
    %v3882 = vunpack.c.l.s4 1966171168
    %v3883 = vunpack.c.0.s8 %v3882
    %v3884 = vlaneseq
    %v3885 = vshrl.u32 %v3884, 7
    %v3886 = vsub.s32 %v3883, %v3885
    %v3887 = vrot.slane %v3865, %v3886
    %v3889 = vunpack.c.l.s4 1966171168
    %v3890 = vunpack.c.0.s8 %v3889
    %v3891 = vlaneseq
    %v3892 = vshrl.u32 %v3891, 7
    %v3893 = vsub.s32 %v3890, %v3892
    %v3894 = vrot.slane %v3866, %v3893
    %v3895 = vcombine.low %v3873, %v3880
    %v3896 = vcombine.low %v3887, %v3894
    %v3898 = vunpack.c.l.s4 1966171168
    %v3899 = vunpack.c.0.s8 %v3898
    %v3900 = vlaneseq
    %v3901 = vshrl.u32 %v3900, 7
    %v3902 = vsub.s32 %v3899, %v3901
    %v3903 = vrot.slane %v3895, %v3902
    %v3905 = vunpack.c.l.s4 1966171168
    %v3906 = vunpack.c.0.s8 %v3905
    %v3907 = vlaneseq
    %v3908 = vshrl.u32 %v3907, 7
    %v3909 = vsub.s32 %v3906, %v3908
    %v3910 = vrot.slane %v3896, %v3909
    %v3911 = vcombine.low %v3903, %v3910
    %v3912 = vcombine.low %v2602, %v2606
    %v3913 = vcombine.low %v2610, %v2614
    %v3914 = vcombine.low %v2618, %v2622
    %v3915 = vcombine.low %v2626, %v2630
    %v3917 = vunpack.c.l.s4 1966171168
    %v3918 = vunpack.c.0.s8 %v3917
    %v3919 = vlaneseq
    %v3920 = vshrl.u32 %v3919, 7
    %v3921 = vsub.s32 %v3918, %v3920
    %v3922 = vrot.slane %v3912, %v3921
    %v3924 = vunpack.c.l.s4 1966171168
    %v3925 = vunpack.c.0.s8 %v3924
    %v3926 = vlaneseq
    %v3927 = vshrl.u32 %v3926, 7
    %v3928 = vsub.s32 %v3925, %v3927
    %v3929 = vrot.slane %v3913, %v3928
    %v3931 = vunpack.c.l.s4 1966171168
    %v3932 = vunpack.c.0.s8 %v3931
    %v3933 = vlaneseq
    %v3934 = vshrl.u32 %v3933, 7
    %v3935 = vsub.s32 %v3932, %v3934
    %v3936 = vrot.slane %v3914, %v3935
    %v3938 = vunpack.c.l.s4 1966171168
    %v3939 = vunpack.c.0.s8 %v3938
    %v3940 = vlaneseq
    %v3941 = vshrl.u32 %v3940, 7
    %v3942 = vsub.s32 %v3939, %v3941
    %v3943 = vrot.slane %v3915, %v3942
    %v3944 = vcombine.low %v3922, %v3929
    %v3945 = vcombine.low %v3936, %v3943
    %v3947 = vunpack.c.l.s4 1966171168
    %v3948 = vunpack.c.0.s8 %v3947
    %v3949 = vlaneseq
    %v3950 = vshrl.u32 %v3949, 7
    %v3951 = vsub.s32 %v3948, %v3950
    %v3952 = vrot.slane %v3944, %v3951
    %v3954 = vunpack.c.l.s4 1966171168
    %v3955 = vunpack.c.0.s8 %v3954
    %v3956 = vlaneseq
    %v3957 = vshrl.u32 %v3956, 7
    %v3958 = vsub.s32 %v3955, %v3957
    %v3959 = vrot.slane %v3945, %v3958
    %v3960 = vcombine.low %v3952, %v3959
    %v3961 = vcombine.low %v2634, %v2638
    %v3962 = vcombine.low %v2642, %v2646
    %v3963 = vcombine.low %v2650, %v2654
    %v3964 = vcombine.low %v2658, %v2662
    %v3966 = vunpack.c.l.s4 1966171168
    %v3967 = vunpack.c.0.s8 %v3966
    %v3968 = vlaneseq
    %v3969 = vshrl.u32 %v3968, 7
    %v3970 = vsub.s32 %v3967, %v3969
    %v3971 = vrot.slane %v3961, %v3970
    %v3973 = vunpack.c.l.s4 1966171168
    %v3974 = vunpack.c.0.s8 %v3973
    %v3975 = vlaneseq
    %v3976 = vshrl.u32 %v3975, 7
    %v3977 = vsub.s32 %v3974, %v3976
    %v3978 = vrot.slane %v3962, %v3977
    %v3980 = vunpack.c.l.s4 1966171168
    %v3981 = vunpack.c.0.s8 %v3980
    %v3982 = vlaneseq
    %v3983 = vshrl.u32 %v3982, 7
    %v3984 = vsub.s32 %v3981, %v3983
    %v3985 = vrot.slane %v3963, %v3984
    %v3987 = vunpack.c.l.s4 1966171168
    %v3988 = vunpack.c.0.s8 %v3987
    %v3989 = vlaneseq
    %v3990 = vshrl.u32 %v3989, 7
    %v3991 = vsub.s32 %v3988, %v3990
    %v3992 = vrot.slane %v3964, %v3991
    %v3993 = vcombine.low %v3971, %v3978
    %v3994 = vcombine.low %v3985, %v3992
    %v3996 = vunpack.c.l.s4 1966171168
    %v3997 = vunpack.c.0.s8 %v3996
    %v3998 = vlaneseq
    %v3999 = vshrl.u32 %v3998, 7
    %v4000 = vsub.s32 %v3997, %v3999
    %v4001 = vrot.slane %v3993, %v4000
    %v4003 = vunpack.c.l.s4 1966171168
    %v4004 = vunpack.c.0.s8 %v4003
    %v4005 = vlaneseq
    %v4006 = vshrl.u32 %v4005, 7
    %v4007 = vsub.s32 %v4004, %v4006
    %v4008 = vrot.slane %v3994, %v4007
    %v4009 = vcombine.low %v4001, %v4008
    %v4010 = vcombine.low %v2666, %v2670
    %v4011 = vcombine.low %v2674, %v2678
    %v4012 = vcombine.low %v2682, %v2686
    %v4013 = vcombine.low %v2690, %v2694
    %v4015 = vunpack.c.l.s4 1966171168
    %v4016 = vunpack.c.0.s8 %v4015
    %v4017 = vlaneseq
    %v4018 = vshrl.u32 %v4017, 7
    %v4019 = vsub.s32 %v4016, %v4018
    %v4020 = vrot.slane %v4010, %v4019
    %v4022 = vunpack.c.l.s4 1966171168
    %v4023 = vunpack.c.0.s8 %v4022
    %v4024 = vlaneseq
    %v4025 = vshrl.u32 %v4024, 7
    %v4026 = vsub.s32 %v4023, %v4025
    %v4027 = vrot.slane %v4011, %v4026
    %v4029 = vunpack.c.l.s4 1966171168
    %v4030 = vunpack.c.0.s8 %v4029
    %v4031 = vlaneseq
    %v4032 = vshrl.u32 %v4031, 7
    %v4033 = vsub.s32 %v4030, %v4032
    %v4034 = vrot.slane %v4012, %v4033
    %v4036 = vunpack.c.l.s4 1966171168
    %v4037 = vunpack.c.0.s8 %v4036
    %v4038 = vlaneseq
    %v4039 = vshrl.u32 %v4038, 7
    %v4040 = vsub.s32 %v4037, %v4039
    %v4041 = vrot.slane %v4013, %v4040
    %v4042 = vcombine.low %v4020, %v4027
    %v4043 = vcombine.low %v4034, %v4041
    %v4045 = vunpack.c.l.s4 1966171168
    %v4046 = vunpack.c.0.s8 %v4045
    %v4047 = vlaneseq
    %v4048 = vshrl.u32 %v4047, 7
    %v4049 = vsub.s32 %v4046, %v4048
    %v4050 = vrot.slane %v4042, %v4049
    %v4052 = vunpack.c.l.s4 1966171168
    %v4053 = vunpack.c.0.s8 %v4052
    %v4054 = vlaneseq
    %v4055 = vshrl.u32 %v4054, 7
    %v4056 = vsub.s32 %v4053, %v4055
    %v4057 = vrot.slane %v4043, %v4056
    %v4058 = vcombine.low %v4050, %v4057
    %v4059 = vcombine.low %v2698, %v2702
    %v4060 = vcombine.low %v2706, %v2710
    %v4061 = vcombine.low %v2714, %v2718
    %v4062 = vcombine.low %v2722, %v2726
    %v4064 = vunpack.c.l.s4 1966171168
    %v4065 = vunpack.c.0.s8 %v4064
    %v4066 = vlaneseq
    %v4067 = vshrl.u32 %v4066, 7
    %v4068 = vsub.s32 %v4065, %v4067
    %v4069 = vrot.slane %v4059, %v4068
    %v4071 = vunpack.c.l.s4 1966171168
    %v4072 = vunpack.c.0.s8 %v4071
    %v4073 = vlaneseq
    %v4074 = vshrl.u32 %v4073, 7
    %v4075 = vsub.s32 %v4072, %v4074
    %v4076 = vrot.slane %v4060, %v4075
    %v4078 = vunpack.c.l.s4 1966171168
    %v4079 = vunpack.c.0.s8 %v4078
    %v4080 = vlaneseq
    %v4081 = vshrl.u32 %v4080, 7
    %v4082 = vsub.s32 %v4079, %v4081
    %v4083 = vrot.slane %v4061, %v4082
    %v4085 = vunpack.c.l.s4 1966171168
    %v4086 = vunpack.c.0.s8 %v4085
    %v4087 = vlaneseq
    %v4088 = vshrl.u32 %v4087, 7
    %v4089 = vsub.s32 %v4086, %v4088
    %v4090 = vrot.slane %v4062, %v4089
    %v4091 = vcombine.low %v4069, %v4076
    %v4092 = vcombine.low %v4083, %v4090
    %v4094 = vunpack.c.l.s4 1966171168
    %v4095 = vunpack.c.0.s8 %v4094
    %v4096 = vlaneseq
    %v4097 = vshrl.u32 %v4096, 7
    %v4098 = vsub.s32 %v4095, %v4097
    %v4099 = vrot.slane %v4091, %v4098
    %v4101 = vunpack.c.l.s4 1966171168
    %v4102 = vunpack.c.0.s8 %v4101
    %v4103 = vlaneseq
    %v4104 = vshrl.u32 %v4103, 7
    %v4105 = vsub.s32 %v4102, %v4104
    %v4106 = vrot.slane %v4092, %v4105
    %v4107 = vcombine.low %v4099, %v4106
    %v4108 = vcombine.low %v2730, %v2734
    %v4109 = vcombine.low %v2738, %v2742
    %v4110 = vcombine.low %v2746, %v2750
    %v4111 = vcombine.low %v2754, %v2758
    %v4113 = vunpack.c.l.s4 1966171168
    %v4114 = vunpack.c.0.s8 %v4113
    %v4115 = vlaneseq
    %v4116 = vshrl.u32 %v4115, 7
    %v4117 = vsub.s32 %v4114, %v4116
    %v4118 = vrot.slane %v4108, %v4117
    %v4120 = vunpack.c.l.s4 1966171168
    %v4121 = vunpack.c.0.s8 %v4120
    %v4122 = vlaneseq
    %v4123 = vshrl.u32 %v4122, 7
    %v4124 = vsub.s32 %v4121, %v4123
    %v4125 = vrot.slane %v4109, %v4124
    %v4127 = vunpack.c.l.s4 1966171168
    %v4128 = vunpack.c.0.s8 %v4127
    %v4129 = vlaneseq
    %v4130 = vshrl.u32 %v4129, 7
    %v4131 = vsub.s32 %v4128, %v4130
    %v4132 = vrot.slane %v4110, %v4131
    %v4134 = vunpack.c.l.s4 1966171168
    %v4135 = vunpack.c.0.s8 %v4134
    %v4136 = vlaneseq
    %v4137 = vshrl.u32 %v4136, 7
    %v4138 = vsub.s32 %v4135, %v4137
    %v4139 = vrot.slane %v4111, %v4138
    %v4140 = vcombine.low %v4118, %v4125
    %v4141 = vcombine.low %v4132, %v4139
    %v4143 = vunpack.c.l.s4 1966171168
    %v4144 = vunpack.c.0.s8 %v4143
    %v4145 = vlaneseq
    %v4146 = vshrl.u32 %v4145, 7
    %v4147 = vsub.s32 %v4144, %v4146
    %v4148 = vrot.slane %v4140, %v4147
    %v4150 = vunpack.c.l.s4 1966171168
    %v4151 = vunpack.c.0.s8 %v4150
    %v4152 = vlaneseq
    %v4153 = vshrl.u32 %v4152, 7
    %v4154 = vsub.s32 %v4151, %v4153
    %v4155 = vrot.slane %v4141, %v4154
    %v4156 = vcombine.low %v4148, %v4155
    %v4157 = vcombine.low %v2762, %v2766
    %v4158 = vcombine.low %v2770, %v2774
    %v4159 = vcombine.low %v2778, %v2782
    %v4160 = vcombine.low %v2786, %v2790
    %v4162 = vunpack.c.l.s4 1966171168
    %v4163 = vunpack.c.0.s8 %v4162
    %v4164 = vlaneseq
    %v4165 = vshrl.u32 %v4164, 7
    %v4166 = vsub.s32 %v4163, %v4165
    %v4167 = vrot.slane %v4157, %v4166
    %v4169 = vunpack.c.l.s4 1966171168
    %v4170 = vunpack.c.0.s8 %v4169
    %v4171 = vlaneseq
    %v4172 = vshrl.u32 %v4171, 7
    %v4173 = vsub.s32 %v4170, %v4172
    %v4174 = vrot.slane %v4158, %v4173
    %v4176 = vunpack.c.l.s4 1966171168
    %v4177 = vunpack.c.0.s8 %v4176
    %v4178 = vlaneseq
    %v4179 = vshrl.u32 %v4178, 7
    %v4180 = vsub.s32 %v4177, %v4179
    %v4181 = vrot.slane %v4159, %v4180
    %v4183 = vunpack.c.l.s4 1966171168
    %v4184 = vunpack.c.0.s8 %v4183
    %v4185 = vlaneseq
    %v4186 = vshrl.u32 %v4185, 7
    %v4187 = vsub.s32 %v4184, %v4186
    %v4188 = vrot.slane %v4160, %v4187
    %v4189 = vcombine.low %v4167, %v4174
    %v4190 = vcombine.low %v4181, %v4188
    %v4192 = vunpack.c.l.s4 1966171168
    %v4193 = vunpack.c.0.s8 %v4192
    %v4194 = vlaneseq
    %v4195 = vshrl.u32 %v4194, 7
    %v4196 = vsub.s32 %v4193, %v4195
    %v4197 = vrot.slane %v4189, %v4196
    %v4199 = vunpack.c.l.s4 1966171168
    %v4200 = vunpack.c.0.s8 %v4199
    %v4201 = vlaneseq
    %v4202 = vshrl.u32 %v4201, 7
    %v4203 = vsub.s32 %v4200, %v4202
    %v4204 = vrot.slane %v4190, %v4203
    %v4205 = vcombine.low %v4197, %v4204
    %v4206 = vcombine.low %v2794, %v2798
    %v4207 = vcombine.low %v2802, %v2806
    %v4208 = vcombine.low %v2810, %v2814
    %v4209 = vcombine.low %v2818, %v2822
    %v4211 = vunpack.c.l.s4 1966171168
    %v4212 = vunpack.c.0.s8 %v4211
    %v4213 = vlaneseq
    %v4214 = vshrl.u32 %v4213, 7
    %v4215 = vsub.s32 %v4212, %v4214
    %v4216 = vrot.slane %v4206, %v4215
    %v4218 = vunpack.c.l.s4 1966171168
    %v4219 = vunpack.c.0.s8 %v4218
    %v4220 = vlaneseq
    %v4221 = vshrl.u32 %v4220, 7
    %v4222 = vsub.s32 %v4219, %v4221
    %v4223 = vrot.slane %v4207, %v4222
    %v4225 = vunpack.c.l.s4 1966171168
    %v4226 = vunpack.c.0.s8 %v4225
    %v4227 = vlaneseq
    %v4228 = vshrl.u32 %v4227, 7
    %v4229 = vsub.s32 %v4226, %v4228
    %v4230 = vrot.slane %v4208, %v4229
    %v4232 = vunpack.c.l.s4 1966171168
    %v4233 = vunpack.c.0.s8 %v4232
    %v4234 = vlaneseq
    %v4235 = vshrl.u32 %v4234, 7
    %v4236 = vsub.s32 %v4233, %v4235
    %v4237 = vrot.slane %v4209, %v4236
    %v4238 = vcombine.low %v4216, %v4223
    %v4239 = vcombine.low %v4230, %v4237
    %v4241 = vunpack.c.l.s4 1966171168
    %v4242 = vunpack.c.0.s8 %v4241
    %v4243 = vlaneseq
    %v4244 = vshrl.u32 %v4243, 7
    %v4245 = vsub.s32 %v4242, %v4244
    %v4246 = vrot.slane %v4238, %v4245
    %v4248 = vunpack.c.l.s4 1966171168
    %v4249 = vunpack.c.0.s8 %v4248
    %v4250 = vlaneseq
    %v4251 = vshrl.u32 %v4250, 7
    %v4252 = vsub.s32 %v4249, %v4251
    %v4253 = vrot.slane %v4239, %v4252
    %v4254 = vcombine.low %v4246, %v4253
    %v4255 = vcombine.low %v2826, %v2830
    %v4256 = vcombine.low %v2834, %v2838
    %v4257 = vcombine.low %v2842, %v2846
    %v4258 = vcombine.low %v2850, %v2854
    %v4260 = vunpack.c.l.s4 1966171168
    %v4261 = vunpack.c.0.s8 %v4260
    %v4262 = vlaneseq
    %v4263 = vshrl.u32 %v4262, 7
    %v4264 = vsub.s32 %v4261, %v4263
    %v4265 = vrot.slane %v4255, %v4264
    %v4267 = vunpack.c.l.s4 1966171168
    %v4268 = vunpack.c.0.s8 %v4267
    %v4269 = vlaneseq
    %v4270 = vshrl.u32 %v4269, 7
    %v4271 = vsub.s32 %v4268, %v4270
    %v4272 = vrot.slane %v4256, %v4271
    %v4274 = vunpack.c.l.s4 1966171168
    %v4275 = vunpack.c.0.s8 %v4274
    %v4276 = vlaneseq
    %v4277 = vshrl.u32 %v4276, 7
    %v4278 = vsub.s32 %v4275, %v4277
    %v4279 = vrot.slane %v4257, %v4278
    %v4281 = vunpack.c.l.s4 1966171168
    %v4282 = vunpack.c.0.s8 %v4281
    %v4283 = vlaneseq
    %v4284 = vshrl.u32 %v4283, 7
    %v4285 = vsub.s32 %v4282, %v4284
    %v4286 = vrot.slane %v4258, %v4285
    %v4287 = vcombine.low %v4265, %v4272
    %v4288 = vcombine.low %v4279, %v4286
    %v4290 = vunpack.c.l.s4 1966171168
    %v4291 = vunpack.c.0.s8 %v4290
    %v4292 = vlaneseq
    %v4293 = vshrl.u32 %v4292, 7
    %v4294 = vsub.s32 %v4291, %v4293
    %v4295 = vrot.slane %v4287, %v4294
    %v4297 = vunpack.c.l.s4 1966171168
    %v4298 = vunpack.c.0.s8 %v4297
    %v4299 = vlaneseq
    %v4300 = vshrl.u32 %v4299, 7
    %v4301 = vsub.s32 %v4298, %v4300
    %v4302 = vrot.slane %v4288, %v4301
    %v4303 = vcombine.low %v4295, %v4302
    %v4304 = vcombine.low %v2858, %v2862
    %v4305 = vcombine.low %v2866, %v2870
    %v4306 = vcombine.low %v2874, %v2878
    %v4307 = vcombine.low %v2882, %v2886
    %v4309 = vunpack.c.l.s4 1966171168
    %v4310 = vunpack.c.0.s8 %v4309
    %v4311 = vlaneseq
    %v4312 = vshrl.u32 %v4311, 7
    %v4313 = vsub.s32 %v4310, %v4312
    %v4314 = vrot.slane %v4304, %v4313
    %v4316 = vunpack.c.l.s4 1966171168
    %v4317 = vunpack.c.0.s8 %v4316
    %v4318 = vlaneseq
    %v4319 = vshrl.u32 %v4318, 7
    %v4320 = vsub.s32 %v4317, %v4319
    %v4321 = vrot.slane %v4305, %v4320
    %v4323 = vunpack.c.l.s4 1966171168
    %v4324 = vunpack.c.0.s8 %v4323
    %v4325 = vlaneseq
    %v4326 = vshrl.u32 %v4325, 7
    %v4327 = vsub.s32 %v4324, %v4326
    %v4328 = vrot.slane %v4306, %v4327
    %v4330 = vunpack.c.l.s4 1966171168
    %v4331 = vunpack.c.0.s8 %v4330
    %v4332 = vlaneseq
    %v4333 = vshrl.u32 %v4332, 7
    %v4334 = vsub.s32 %v4331, %v4333
    %v4335 = vrot.slane %v4307, %v4334
    %v4336 = vcombine.low %v4314, %v4321
    %v4337 = vcombine.low %v4328, %v4335
    %v4339 = vunpack.c.l.s4 1966171168
    %v4340 = vunpack.c.0.s8 %v4339
    %v4341 = vlaneseq
    %v4342 = vshrl.u32 %v4341, 7
    %v4343 = vsub.s32 %v4340, %v4342
    %v4344 = vrot.slane %v4336, %v4343
    %v4346 = vunpack.c.l.s4 1966171168
    %v4347 = vunpack.c.0.s8 %v4346
    %v4348 = vlaneseq
    %v4349 = vshrl.u32 %v4348, 7
    %v4350 = vsub.s32 %v4347, %v4349
    %v4351 = vrot.slane %v4337, %v4350
    %v4352 = vcombine.low %v4344, %v4351
    %v4353 = vcombine.low %v2890, %v2894
    %v4354 = vcombine.low %v2898, %v2902
    %v4355 = vcombine.low %v2906, %v2910
    %v4356 = vcombine.low %v2914, %v2918
    %v4358 = vunpack.c.l.s4 1966171168
    %v4359 = vunpack.c.0.s8 %v4358
    %v4360 = vlaneseq
    %v4361 = vshrl.u32 %v4360, 7
    %v4362 = vsub.s32 %v4359, %v4361
    %v4363 = vrot.slane %v4353, %v4362
    %v4365 = vunpack.c.l.s4 1966171168
    %v4366 = vunpack.c.0.s8 %v4365
    %v4367 = vlaneseq
    %v4368 = vshrl.u32 %v4367, 7
    %v4369 = vsub.s32 %v4366, %v4368
    %v4370 = vrot.slane %v4354, %v4369
    %v4372 = vunpack.c.l.s4 1966171168
    %v4373 = vunpack.c.0.s8 %v4372
    %v4374 = vlaneseq
    %v4375 = vshrl.u32 %v4374, 7
    %v4376 = vsub.s32 %v4373, %v4375
    %v4377 = vrot.slane %v4355, %v4376
    %v4379 = vunpack.c.l.s4 1966171168
    %v4380 = vunpack.c.0.s8 %v4379
    %v4381 = vlaneseq
    %v4382 = vshrl.u32 %v4381, 7
    %v4383 = vsub.s32 %v4380, %v4382
    %v4384 = vrot.slane %v4356, %v4383
    %v4385 = vcombine.low %v4363, %v4370
    %v4386 = vcombine.low %v4377, %v4384
    %v4388 = vunpack.c.l.s4 1966171168
    %v4389 = vunpack.c.0.s8 %v4388
    %v4390 = vlaneseq
    %v4391 = vshrl.u32 %v4390, 7
    %v4392 = vsub.s32 %v4389, %v4391
    %v4393 = vrot.slane %v4385, %v4392
    %v4395 = vunpack.c.l.s4 1966171168
    %v4396 = vunpack.c.0.s8 %v4395
    %v4397 = vlaneseq
    %v4398 = vshrl.u32 %v4397, 7
    %v4399 = vsub.s32 %v4396, %v4398
    %v4400 = vrot.slane %v4386, %v4399
    %v4401 = vcombine.low %v4393, %v4400
    %v4402 = vcombine.low %v2922, %v2926
    %v4403 = vcombine.low %v2930, %v2934
    %v4404 = vcombine.low %v2938, %v2942
    %v4405 = vcombine.low %v2946, %v2950
    %v4407 = vunpack.c.l.s4 1966171168
    %v4408 = vunpack.c.0.s8 %v4407
    %v4409 = vlaneseq
    %v4410 = vshrl.u32 %v4409, 7
    %v4411 = vsub.s32 %v4408, %v4410
    %v4412 = vrot.slane %v4402, %v4411
    %v4414 = vunpack.c.l.s4 1966171168
    %v4415 = vunpack.c.0.s8 %v4414
    %v4416 = vlaneseq
    %v4417 = vshrl.u32 %v4416, 7
    %v4418 = vsub.s32 %v4415, %v4417
    %v4419 = vrot.slane %v4403, %v4418
    %v4421 = vunpack.c.l.s4 1966171168
    %v4422 = vunpack.c.0.s8 %v4421
    %v4423 = vlaneseq
    %v4424 = vshrl.u32 %v4423, 7
    %v4425 = vsub.s32 %v4422, %v4424
    %v4426 = vrot.slane %v4404, %v4425
    %v4428 = vunpack.c.l.s4 1966171168
    %v4429 = vunpack.c.0.s8 %v4428
    %v4430 = vlaneseq
    %v4431 = vshrl.u32 %v4430, 7
    %v4432 = vsub.s32 %v4429, %v4431
    %v4433 = vrot.slane %v4405, %v4432
    %v4434 = vcombine.low %v4412, %v4419
    %v4435 = vcombine.low %v4426, %v4433
    %v4437 = vunpack.c.l.s4 1966171168
    %v4438 = vunpack.c.0.s8 %v4437
    %v4439 = vlaneseq
    %v4440 = vshrl.u32 %v4439, 7
    %v4441 = vsub.s32 %v4438, %v4440
    %v4442 = vrot.slane %v4434, %v4441
    %v4444 = vunpack.c.l.s4 1966171168
    %v4445 = vunpack.c.0.s8 %v4444
    %v4446 = vlaneseq
    %v4447 = vshrl.u32 %v4446, 7
    %v4448 = vsub.s32 %v4445, %v4447
    %v4449 = vrot.slane %v4435, %v4448
    %v4450 = vcombine.low %v4442, %v4449
    %v4451 = vcombine.low %v2954, %v2958
    %v4452 = vcombine.low %v2962, %v2966
    %v4453 = vcombine.low %v2970, %v2974
    %v4454 = vcombine.low %v2978, %v2982
    %v4456 = vunpack.c.l.s4 1966171168
    %v4457 = vunpack.c.0.s8 %v4456
    %v4458 = vlaneseq
    %v4459 = vshrl.u32 %v4458, 7
    %v4460 = vsub.s32 %v4457, %v4459
    %v4461 = vrot.slane %v4451, %v4460
    %v4463 = vunpack.c.l.s4 1966171168
    %v4464 = vunpack.c.0.s8 %v4463
    %v4465 = vlaneseq
    %v4466 = vshrl.u32 %v4465, 7
    %v4467 = vsub.s32 %v4464, %v4466
    %v4468 = vrot.slane %v4452, %v4467
    %v4470 = vunpack.c.l.s4 1966171168
    %v4471 = vunpack.c.0.s8 %v4470
    %v4472 = vlaneseq
    %v4473 = vshrl.u32 %v4472, 7
    %v4474 = vsub.s32 %v4471, %v4473
    %v4475 = vrot.slane %v4453, %v4474
    %v4477 = vunpack.c.l.s4 1966171168
    %v4478 = vunpack.c.0.s8 %v4477
    %v4479 = vlaneseq
    %v4480 = vshrl.u32 %v4479, 7
    %v4481 = vsub.s32 %v4478, %v4480
    %v4482 = vrot.slane %v4454, %v4481
    %v4483 = vcombine.low %v4461, %v4468
    %v4484 = vcombine.low %v4475, %v4482
    %v4486 = vunpack.c.l.s4 1966171168
    %v4487 = vunpack.c.0.s8 %v4486
    %v4488 = vlaneseq
    %v4489 = vshrl.u32 %v4488, 7
    %v4490 = vsub.s32 %v4487, %v4489
    %v4491 = vrot.slane %v4483, %v4490
    %v4493 = vunpack.c.l.s4 1966171168
    %v4494 = vunpack.c.0.s8 %v4493
    %v4495 = vlaneseq
    %v4496 = vshrl.u32 %v4495, 7
    %v4497 = vsub.s32 %v4494, %v4496
    %v4498 = vrot.slane %v4484, %v4497
    %v4499 = vcombine.low %v4491, %v4498
    %v4500 = vcombine.low %v2986, %v2990
    %v4501 = vcombine.low %v2994, %v2998
    %v4502 = vcombine.low %v3002, %v3006
    %v4503 = vcombine.low %v3010, %v3014
    %v4505 = vunpack.c.l.s4 1966171168
    %v4506 = vunpack.c.0.s8 %v4505
    %v4507 = vlaneseq
    %v4508 = vshrl.u32 %v4507, 7
    %v4509 = vsub.s32 %v4506, %v4508
    %v4510 = vrot.slane %v4500, %v4509
    %v4512 = vunpack.c.l.s4 1966171168
    %v4513 = vunpack.c.0.s8 %v4512
    %v4514 = vlaneseq
    %v4515 = vshrl.u32 %v4514, 7
    %v4516 = vsub.s32 %v4513, %v4515
    %v4517 = vrot.slane %v4501, %v4516
    %v4519 = vunpack.c.l.s4 1966171168
    %v4520 = vunpack.c.0.s8 %v4519
    %v4521 = vlaneseq
    %v4522 = vshrl.u32 %v4521, 7
    %v4523 = vsub.s32 %v4520, %v4522
    %v4524 = vrot.slane %v4502, %v4523
    %v4526 = vunpack.c.l.s4 1966171168
    %v4527 = vunpack.c.0.s8 %v4526
    %v4528 = vlaneseq
    %v4529 = vshrl.u32 %v4528, 7
    %v4530 = vsub.s32 %v4527, %v4529
    %v4531 = vrot.slane %v4503, %v4530
    %v4532 = vcombine.low %v4510, %v4517
    %v4533 = vcombine.low %v4524, %v4531
    %v4535 = vunpack.c.l.s4 1966171168
    %v4536 = vunpack.c.0.s8 %v4535
    %v4537 = vlaneseq
    %v4538 = vshrl.u32 %v4537, 7
    %v4539 = vsub.s32 %v4536, %v4538
    %v4540 = vrot.slane %v4532, %v4539
    %v4542 = vunpack.c.l.s4 1966171168
    %v4543 = vunpack.c.0.s8 %v4542
    %v4544 = vlaneseq
    %v4545 = vshrl.u32 %v4544, 7
    %v4546 = vsub.s32 %v4543, %v4545
    %v4547 = vrot.slane %v4533, %v4546
    %v4548 = vcombine.low %v4540, %v4547
    %v4549 = vcombine.low %v3018, %v3022
    %v4550 = vcombine.low %v3026, %v3030
    %v4551 = vcombine.low %v3034, %v3038
    %v4552 = vcombine.low %v3042, %v3046
    %v4554 = vunpack.c.l.s4 1966171168
    %v4555 = vunpack.c.0.s8 %v4554
    %v4556 = vlaneseq
    %v4557 = vshrl.u32 %v4556, 7
    %v4558 = vsub.s32 %v4555, %v4557
    %v4559 = vrot.slane %v4549, %v4558
    %v4561 = vunpack.c.l.s4 1966171168
    %v4562 = vunpack.c.0.s8 %v4561
    %v4563 = vlaneseq
    %v4564 = vshrl.u32 %v4563, 7
    %v4565 = vsub.s32 %v4562, %v4564
    %v4566 = vrot.slane %v4550, %v4565
    %v4568 = vunpack.c.l.s4 1966171168
    %v4569 = vunpack.c.0.s8 %v4568
    %v4570 = vlaneseq
    %v4571 = vshrl.u32 %v4570, 7
    %v4572 = vsub.s32 %v4569, %v4571
    %v4573 = vrot.slane %v4551, %v4572
    %v4575 = vunpack.c.l.s4 1966171168
    %v4576 = vunpack.c.0.s8 %v4575
    %v4577 = vlaneseq
    %v4578 = vshrl.u32 %v4577, 7
    %v4579 = vsub.s32 %v4576, %v4578
    %v4580 = vrot.slane %v4552, %v4579
    %v4581 = vcombine.low %v4559, %v4566
    %v4582 = vcombine.low %v4573, %v4580
    %v4584 = vunpack.c.l.s4 1966171168
    %v4585 = vunpack.c.0.s8 %v4584
    %v4586 = vlaneseq
    %v4587 = vshrl.u32 %v4586, 7
    %v4588 = vsub.s32 %v4585, %v4587
    %v4589 = vrot.slane %v4581, %v4588
    %v4591 = vunpack.c.l.s4 1966171168
    %v4592 = vunpack.c.0.s8 %v4591
    %v4593 = vlaneseq
    %v4594 = vshrl.u32 %v4593, 7
    %v4595 = vsub.s32 %v4592, %v4594
    %v4596 = vrot.slane %v4582, %v4595
    %v4597 = vcombine.low %v4589, %v4596
    %v4598 = vcombine.low %v3050, %v3054
    %v4599 = vcombine.low %v3058, %v3062
    %v4600 = vcombine.low %v3066, %v3070
    %v4601 = vcombine.low %v3074, %v3078
    %v4603 = vunpack.c.l.s4 1966171168
    %v4604 = vunpack.c.0.s8 %v4603
    %v4605 = vlaneseq
    %v4606 = vshrl.u32 %v4605, 7
    %v4607 = vsub.s32 %v4604, %v4606
    %v4608 = vrot.slane %v4598, %v4607
    %v4610 = vunpack.c.l.s4 1966171168
    %v4611 = vunpack.c.0.s8 %v4610
    %v4612 = vlaneseq
    %v4613 = vshrl.u32 %v4612, 7
    %v4614 = vsub.s32 %v4611, %v4613
    %v4615 = vrot.slane %v4599, %v4614
    %v4617 = vunpack.c.l.s4 1966171168
    %v4618 = vunpack.c.0.s8 %v4617
    %v4619 = vlaneseq
    %v4620 = vshrl.u32 %v4619, 7
    %v4621 = vsub.s32 %v4618, %v4620
    %v4622 = vrot.slane %v4600, %v4621
    %v4624 = vunpack.c.l.s4 1966171168
    %v4625 = vunpack.c.0.s8 %v4624
    %v4626 = vlaneseq
    %v4627 = vshrl.u32 %v4626, 7
    %v4628 = vsub.s32 %v4625, %v4627
    %v4629 = vrot.slane %v4601, %v4628
    %v4630 = vcombine.low %v4608, %v4615
    %v4631 = vcombine.low %v4622, %v4629
    %v4633 = vunpack.c.l.s4 1966171168
    %v4634 = vunpack.c.0.s8 %v4633
    %v4635 = vlaneseq
    %v4636 = vshrl.u32 %v4635, 7
    %v4637 = vsub.s32 %v4634, %v4636
    %v4638 = vrot.slane %v4630, %v4637
    %v4640 = vunpack.c.l.s4 1966171168
    %v4641 = vunpack.c.0.s8 %v4640
    %v4642 = vlaneseq
    %v4643 = vshrl.u32 %v4642, 7
    %v4644 = vsub.s32 %v4641, %v4643
    %v4645 = vrot.slane %v4631, %v4644
    %v4646 = vcombine.low %v4638, %v4645
    %4647 = vset.pattern.permute.xlu0 0
    %4648 = vperm.xlu0 %4647, %v3127
    %v4649 = vpop.permute.xlu0 %4648
    %4650 = vset.pattern.permute.xlu0 0
    %4651 = vperm.xlu0 %4650, %v3176
    %v4652 = vpop.permute.xlu0 %4651
    %4653 = vset.pattern.permute.xlu0 0
    %4654 = vperm.xlu0 %4653, %v3225
    %v4655 = vpop.permute.xlu0 %4654
    %4656 = vset.pattern.permute.xlu0 0
    %4657 = vperm.xlu0 %4656, %v3274
    %v4658 = vpop.permute.xlu0 %4657
    %4659 = vset.pattern.permute.xlu0 0
    %4660 = vperm.xlu0 %4659, %v3323
    %v4661 = vpop.permute.xlu0 %4660
    %4662 = vset.pattern.permute.xlu0 0
    %4663 = vperm.xlu0 %4662, %v3372
    %v4664 = vpop.permute.xlu0 %4663
    %4665 = vset.pattern.permute.xlu0 0
    %4666 = vperm.xlu0 %4665, %v3421
    %v4667 = vpop.permute.xlu0 %4666
    %4668 = vset.pattern.permute.xlu0 0
    %4669 = vperm.xlu0 %4668, %v3470
    %v4670 = vpop.permute.xlu0 %4669
    %4671 = vset.pattern.permute.xlu0 0
    %4672 = vperm.xlu0 %4671, %v3519
    %v4673 = vpop.permute.xlu0 %4672
    %4674 = vset.pattern.permute.xlu0 0
    %4675 = vperm.xlu0 %4674, %v3568
    %v4676 = vpop.permute.xlu0 %4675
    %4677 = vset.pattern.permute.xlu0 0
    %4678 = vperm.xlu0 %4677, %v3617
    %v4679 = vpop.permute.xlu0 %4678
    %4680 = vset.pattern.permute.xlu0 0
    %4681 = vperm.xlu0 %4680, %v3666
    %v4682 = vpop.permute.xlu0 %4681
    %4683 = vset.pattern.permute.xlu0 0
    %4684 = vperm.xlu0 %4683, %v3715
    %v4685 = vpop.permute.xlu0 %4684
    %4686 = vset.pattern.permute.xlu0 0
    %4687 = vperm.xlu0 %4686, %v3764
    %v4688 = vpop.permute.xlu0 %4687
    %4689 = vset.pattern.permute.xlu0 0
    %4690 = vperm.xlu0 %4689, %v3813
    %v4691 = vpop.permute.xlu0 %4690
    %4692 = vset.pattern.permute.xlu0 0
    %4693 = vperm.xlu0 %4692, %v3862
    %v4694 = vpop.permute.xlu0 %4693
    %4695 = vset.pattern.permute.xlu0 0
    %4696 = vperm.xlu0 %4695, %v3911
    %v4697 = vpop.permute.xlu0 %4696
    %4698 = vset.pattern.permute.xlu0 0
    %4699 = vperm.xlu0 %4698, %v3960
    %v4700 = vpop.permute.xlu0 %4699
    %4701 = vset.pattern.permute.xlu0 0
    %4702 = vperm.xlu0 %4701, %v4009
    %v4703 = vpop.permute.xlu0 %4702
    %4704 = vset.pattern.permute.xlu0 0
    %4705 = vperm.xlu0 %4704, %v4058
    %v4706 = vpop.permute.xlu0 %4705
    %4707 = vset.pattern.permute.xlu0 0
    %4708 = vperm.xlu0 %4707, %v4107
    %v4709 = vpop.permute.xlu0 %4708
    %4710 = vset.pattern.permute.xlu0 0
    %4711 = vperm.xlu0 %4710, %v4156
    %v4712 = vpop.permute.xlu0 %4711
    %4713 = vset.pattern.permute.xlu0 0
    %4714 = vperm.xlu0 %4713, %v4205
    %v4715 = vpop.permute.xlu0 %4714
    %4716 = vset.pattern.permute.xlu0 0
    %4717 = vperm.xlu0 %4716, %v4254
    %v4718 = vpop.permute.xlu0 %4717
    %4719 = vset.pattern.permute.xlu0 0
    %4720 = vperm.xlu0 %4719, %v4303
    %v4721 = vpop.permute.xlu0 %4720
    %4722 = vset.pattern.permute.xlu0 0
    %4723 = vperm.xlu0 %4722, %v4352
    %v4724 = vpop.permute.xlu0 %4723
    %4725 = vset.pattern.permute.xlu0 0
    %4726 = vperm.xlu0 %4725, %v4401
    %v4727 = vpop.permute.xlu0 %4726
    %4728 = vset.pattern.permute.xlu0 0
    %4729 = vperm.xlu0 %4728, %v4450
    %v4730 = vpop.permute.xlu0 %4729
    %4731 = vset.pattern.permute.xlu0 0
    %4732 = vperm.xlu0 %4731, %v4499
    %v4733 = vpop.permute.xlu0 %4732
    %4734 = vset.pattern.permute.xlu0 0
    %4735 = vperm.xlu0 %4734, %v4548
    %v4736 = vpop.permute.xlu0 %4735
    %4737 = vset.pattern.permute.xlu0 0
    %4738 = vperm.xlu0 %4737, %v4597
    %v4739 = vpop.permute.xlu0 %4738
    %4740 = vset.pattern.permute.xlu0 0
    %4741 = vperm.xlu0 %4740, %v4646
    %v4742 = vpop.permute.xlu0 %4741
    %v4743 = vlaneseq
    %v4744 = vand.u32 %v4743, 127
    %v4745 = vlaneseq
    %v4746 = vshrl.u32 %v4745, 7
    %v4747 = vsub.s32 %v4744, %v4746
    %v4748 = vrot.slane %v4649, %v4747
    %v4749 = vadd.s32 %v4744, 4294967288
    %v4750 = vlaneseq
    %v4751 = vshrl.u32 %v4750, 7
    %v4752 = vsub.s32 %v4749, %v4751
    %v4753 = vrot.slane %v4652, %v4752
    %vm4754 = vcmask 130112
    %v4755 = vsel %vm4754, %v4753, %v4748
    %v4756 = vadd.s32 %v4744, 4294967280
    %v4757 = vlaneseq
    %v4758 = vshrl.u32 %v4757, 7
    %v4759 = vsub.s32 %v4756, %v4758
    %v4760 = vrot.slane %v4655, %v4759
    %vm4761 = vcmask 195712
    %v4762 = vsel %vm4761, %v4760, %v4755
    %v4763 = vadd.s32 %v4744, 4294967272
    %v4764 = vlaneseq
    %v4765 = vshrl.u32 %v4764, 7
    %v4766 = vsub.s32 %v4763, %v4765
    %v4767 = vrot.slane %v4658, %v4766
    %vm4768 = vcmask 261312
    %v4769 = vsel %vm4768, %v4767, %v4762
    %v4770 = vadd.s32 %v4744, 4294967264
    %v4771 = vlaneseq
    %v4772 = vshrl.u32 %v4771, 7
    %v4773 = vsub.s32 %v4770, %v4772
    %v4774 = vrot.slane %v4661, %v4773
    %vm4775 = vcmask 326912
    %v4776 = vsel %vm4775, %v4774, %v4769
    %v4777 = vadd.s32 %v4744, 4294967256
    %v4778 = vlaneseq
    %v4779 = vshrl.u32 %v4778, 7
    %v4780 = vsub.s32 %v4777, %v4779
    %v4781 = vrot.slane %v4664, %v4780
    %vm4782 = vcmask 392512
    %v4783 = vsel %vm4782, %v4781, %v4776
    %v4784 = vadd.s32 %v4744, 4294967248
    %v4785 = vlaneseq
    %v4786 = vshrl.u32 %v4785, 7
    %v4787 = vsub.s32 %v4784, %v4786
    %v4788 = vrot.slane %v4667, %v4787
    %vm4789 = vcmask 458112
    %v4790 = vsel %vm4789, %v4788, %v4783
    %v4791 = vadd.s32 %v4744, 4294967240
    %v4792 = vlaneseq
    %v4793 = vshrl.u32 %v4792, 7
    %v4794 = vsub.s32 %v4791, %v4793
    %v4795 = vrot.slane %v4670, %v4794
    %vm4796 = vcmask 523712
    %v4797 = vsel %vm4796, %v4795, %v4790
    %v4798 = vadd.s32 %v4744, 4294967232
    %v4799 = vlaneseq
    %v4800 = vshrl.u32 %v4799, 7
    %v4801 = vsub.s32 %v4798, %v4800
    %v4802 = vrot.slane %v4673, %v4801
    %vm4803 = vcmask 589312
    %v4804 = vsel %vm4803, %v4802, %v4797
    %v4805 = vadd.s32 %v4744, 4294967224
    %v4806 = vlaneseq
    %v4807 = vshrl.u32 %v4806, 7
    %v4808 = vsub.s32 %v4805, %v4807
    %v4809 = vrot.slane %v4676, %v4808
    %vm4810 = vcmask 654912
    %v4811 = vsel %vm4810, %v4809, %v4804
    %v4812 = vadd.s32 %v4744, 4294967216
    %v4813 = vlaneseq
    %v4814 = vshrl.u32 %v4813, 7
    %v4815 = vsub.s32 %v4812, %v4814
    %v4816 = vrot.slane %v4679, %v4815
    %vm4817 = vcmask 720512
    %v4818 = vsel %vm4817, %v4816, %v4811
    %v4819 = vadd.s32 %v4744, 4294967208
    %v4820 = vlaneseq
    %v4821 = vshrl.u32 %v4820, 7
    %v4822 = vsub.s32 %v4819, %v4821
    %v4823 = vrot.slane %v4682, %v4822
    %vm4824 = vcmask 786112
    %v4825 = vsel %vm4824, %v4823, %v4818
    %v4826 = vadd.s32 %v4744, 4294967200
    %v4827 = vlaneseq
    %v4828 = vshrl.u32 %v4827, 7
    %v4829 = vsub.s32 %v4826, %v4828
    %v4830 = vrot.slane %v4685, %v4829
    %vm4831 = vcmask 851712
    %v4832 = vsel %vm4831, %v4830, %v4825
    %v4833 = vadd.s32 %v4744, 4294967192
    %v4834 = vlaneseq
    %v4835 = vshrl.u32 %v4834, 7
    %v4836 = vsub.s32 %v4833, %v4835
    %v4837 = vrot.slane %v4688, %v4836
    %vm4838 = vcmask 917312
    %v4839 = vsel %vm4838, %v4837, %v4832
    %v4840 = vadd.s32 %v4744, 4294967184
    %v4841 = vlaneseq
    %v4842 = vshrl.u32 %v4841, 7
    %v4843 = vsub.s32 %v4840, %v4842
    %v4844 = vrot.slane %v4691, %v4843
    %vm4845 = vcmask 982912
    %v4846 = vsel %vm4845, %v4844, %v4839
    %v4847 = vadd.s32 %v4744, 4294967176
    %v4848 = vlaneseq
    %v4849 = vshrl.u32 %v4848, 7
    %v4850 = vsub.s32 %v4847, %v4849
    %v4851 = vrot.slane %v4694, %v4850
    %vm4852 = vcmask 1048512
    %v4853 = vsel %vm4852, %v4851, %v4846
    %v4854 = vlaneseq
    %v4855 = vshrl.u32 %v4854, 7
    %v4856 = vsub.s32 %v4744, %v4855
    %v4857 = vrot.slane %v4697, %v4856
    %v4858 = vlaneseq
    %v4859 = vshrl.u32 %v4858, 7
    %v4860 = vsub.s32 %v4749, %v4859
    %v4861 = vrot.slane %v4700, %v4860
    %v4862 = vsel %vm4754, %v4861, %v4857
    %v4863 = vlaneseq
    %v4864 = vshrl.u32 %v4863, 7
    %v4865 = vsub.s32 %v4756, %v4864
    %v4866 = vrot.slane %v4703, %v4865
    %v4867 = vsel %vm4761, %v4866, %v4862
    %v4868 = vlaneseq
    %v4869 = vshrl.u32 %v4868, 7
    %v4870 = vsub.s32 %v4763, %v4869
    %v4871 = vrot.slane %v4706, %v4870
    %v4872 = vsel %vm4768, %v4871, %v4867
    %v4873 = vlaneseq
    %v4874 = vshrl.u32 %v4873, 7
    %v4875 = vsub.s32 %v4770, %v4874
    %v4876 = vrot.slane %v4709, %v4875
    %v4877 = vsel %vm4775, %v4876, %v4872
    %v4878 = vlaneseq
    %v4879 = vshrl.u32 %v4878, 7
    %v4880 = vsub.s32 %v4777, %v4879
    %v4881 = vrot.slane %v4712, %v4880
    %v4882 = vsel %vm4782, %v4881, %v4877
    %v4883 = vlaneseq
    %v4884 = vshrl.u32 %v4883, 7
    %v4885 = vsub.s32 %v4784, %v4884
    %v4886 = vrot.slane %v4715, %v4885
    %v4887 = vsel %vm4789, %v4886, %v4882
    %v4888 = vlaneseq
    %v4889 = vshrl.u32 %v4888, 7
    %v4890 = vsub.s32 %v4791, %v4889
    %v4891 = vrot.slane %v4718, %v4890
    %v4892 = vsel %vm4796, %v4891, %v4887
    %v4893 = vlaneseq
    %v4894 = vshrl.u32 %v4893, 7
    %v4895 = vsub.s32 %v4798, %v4894
    %v4896 = vrot.slane %v4721, %v4895
    %v4897 = vsel %vm4803, %v4896, %v4892
    %v4898 = vlaneseq
    %v4899 = vshrl.u32 %v4898, 7
    %v4900 = vsub.s32 %v4805, %v4899
    %v4901 = vrot.slane %v4724, %v4900
    %v4902 = vsel %vm4810, %v4901, %v4897
    %v4903 = vlaneseq
    %v4904 = vshrl.u32 %v4903, 7
    %v4905 = vsub.s32 %v4812, %v4904
    %v4906 = vrot.slane %v4727, %v4905
    %v4907 = vsel %vm4817, %v4906, %v4902
    %v4908 = vlaneseq
    %v4909 = vshrl.u32 %v4908, 7
    %v4910 = vsub.s32 %v4819, %v4909
    %v4911 = vrot.slane %v4730, %v4910
    %v4912 = vsel %vm4824, %v4911, %v4907
    %v4913 = vlaneseq
    %v4914 = vshrl.u32 %v4913, 7
    %v4915 = vsub.s32 %v4826, %v4914
    %v4916 = vrot.slane %v4733, %v4915
    %v4917 = vsel %vm4831, %v4916, %v4912
    %v4918 = vlaneseq
    %v4919 = vshrl.u32 %v4918, 7
    %v4920 = vsub.s32 %v4833, %v4919
    %v4921 = vrot.slane %v4736, %v4920
    %v4922 = vsel %vm4838, %v4921, %v4917
    %v4923 = vlaneseq
    %v4924 = vshrl.u32 %v4923, 7
    %v4925 = vsub.s32 %v4840, %v4924
    %v4926 = vrot.slane %v4739, %v4925
    %v4927 = vsel %vm4845, %v4926, %v4922
    %v4928 = vlaneseq
    %v4929 = vshrl.u32 %v4928, 7
    %v4930 = vsub.s32 %v4847, %v4929
    %v4931 = vrot.slane %v4742, %v4930
    %v4932 = vsel %vm4852, %v4931, %v4927
    %v4933 = vcombine.low %v4853, %v4932
    %v4935 = vunpack.c.l.s4 1966171168
    %v4936 = vunpack.c.0.s8 %v4935
    %v4937 = vlaneseq
    %v4938 = vshrl.u32 %v4937, 7
    %v4939 = vsub.s32 %v4936, %v4938
    %v4940 = vrot.slane %v4933, %v4939
    %v4942 = vunpack.c.l.s4 1966171168
    %v4943 = vunpack.c.0.s8 %v4942
    %v4944 = vlaneseq
    %v4945 = vshrl.u32 %v4944, 7
    %v4946 = vsub.s32 %v4943, %v4945
    %v4947 = vrot.slane %v4940, %v4946
    %v4949 = vlaneseq
    %vm4950 = vcmp.ge.s32.totalorder %v4949, 0
    %vm4951 = vcmp.lt.s32.totalorder %v4949, 256
    %vm4952 = vmand %vm4950, %vm4951
    %4953 = vst.msk [vmem:[#allocation11] sm:$0x3] %vm4952, %v4947
    // Predicated region
    $region38: #{tpu_custom_call.1} parent=1 // pred_check
      _
    $region39: #{tpu_custom_call.1} parent=1 // pred_check_branch
      %4955 = sbr.rel (0) target = $region41
    $region40: #{tpu_custom_call.1} parent=1 // pred_region
      %s4957 = ssub.s32 32, 32
      %4958 = vsyncadd [#allocation5], %s4957
      %s4960 = sshll.u32 [#allocation11], 4
      %s4961 = int_to_ptr.vmem [resolvable:$true] %s4960
      %4963 = dma.vmem_to_hbm [thread:$0]  %s4961, 32, %s5, [#allocation5]
    $region41: #{tpu_custom_call.1} parent=1 // pred_fallthru
      _
    // Predicated region
    $region42: #{tpu_custom_call.1} parent=1 // pred_check
      _
    $region43: #{tpu_custom_call.1} parent=1 // pred_check_branch
      %4965 = sbr.rel (0) target = $region45
    $region44: #{tpu_custom_call.1} parent=1 // pred_region
      %4966 = dma.done [#allocation5], 32
    $region45: #{tpu_custom_call.1} parent=1 // pred_fallthru
      _
    %4967 = vsyncpa [#allocation4], 1
    %4968 = vsyncpa [#allocation7], 1
    %4969 = vsyncpa [#allocation10], 1
    %4970 = vsyncpa [#allocation5], 1

</llo_original>
